<compile_context>
chip_gen: v6e
topology: v6e:2x2x1
jax: 0.10.0
libtpu: 0.0.40
codegen_flags: <defaults>
</compile_context>

<pallas_src>
import functools

import jax
import jax.numpy as jnp
import numpy as np
from jax import lax
from jax.experimental import pallas as pl
from jax.experimental.pallas import tpu as pltpu


def _round_up(x, m):
    return ((x + m - 1) // m) * m


# ----------------------------------------------------------------------------
# Fused kernel: all LSTM layers + eval BatchNorm + mu/logvar heads.
# ----------------------------------------------------------------------------
def _fused_dalstm_kernel(x_ref, wih1_ref, whh1_ref, b1_ref,
                         wih2_ref, whh2_ref, b2_ref,
                         scale_ref, shift_ref, wh_ref, bh_ref,
                         out_ref, gx_ref, y_ref,
                         *, n_layers, seq_len, batch_pad, hidden, packed,
                         unroll):
    # x_ref:       (T*Bp, F)    time-major, batch-padded, flattened input
    # wih*_ref:    (K,  Gc)     W_ih^T, gates packed / lane-aligned
    # whh*_ref:    (Hc, Gc)     W_hh^T, rows [H:Hc) zero
    # b*_ref:      (1,  Gc)     b_ih + b_hh
    # scale/shift: (T*Bp, Hc)   folded eval BatchNorm, lane-dense
    # wh_ref:      (Hc, 2)      [mu | logvar] head weights, rows [H:Hc) zero
    # bh_ref:      (1,  2)
    # out_ref:     (Bp, 2)
    # gx_ref:      (T*Bp, Gc)   scratch: hoisted input projection
    # y_ref:       (T*Bp, Hc)   scratch: per-layer LSTM outputs (then BN'd)
    T = seq_len
    Bp = batch_pad
    H = hidden
    Hc = y_ref.shape[1]
    Gc = gx_ref.shape[1]

    if packed:
        # Gate order i|f|g|o packed contiguously in one 128-lane block.
        # Only the g gate gets tanh; everything else gets sigmoid.
        lane = lax.broadcasted_iota(jnp.int32, (Bp, Gc), 1)
        g_mask = (lane >= 2 * H) & (lane < 3 * H)

    def project(src_ref, wih_ref, b_ref):
        # Hoisted input projection: one (T*Bp, K) x (K, Gc) matmul written
        # straight into VMEM scratch (no large live value carried around).
        gx_ref[...] = jnp.dot(src_ref[...], wih_ref[...],
                              preferred_element_type=jnp.float32) + b_ref[...]

    def recur(whh_ref, h0, c0):
        # Serial recurrence: only h @ W_hh^T + gate math on the critical path.
        # Weights are streamed from VMEM through the ref (never hoisted).
        def step(t, carry):
            h, c = carry
            row = pl.multiple_of(t * Bp, Bp)
            gates = gx_ref[pl.ds(row, Bp), :] + jnp.dot(
                h, whh_ref[...], preferred_element_type=jnp.float32)
            if packed:
                # One sigmoid + one tanh over the full 128-lane gate vreg
                # (2 EUP pushes); gate alignment via XLU rolls (spare slot).
                act = jnp.where(g_mask, jnp.tanh(gates),
                                jax.nn.sigmoid(gates))
                f_al = pltpu.roll(act, Gc - 1 * H, 1)   # f -> lanes [0, H)
                g_al = pltpu.roll(act, Gc - 2 * H, 1)   # g -> lanes [0, H)
                o_al = pltpu.roll(act, Gc - 3 * H, 1)   # o -> lanes [0, H)
                c_new = f_al * c + act * g_al           # act[:, :H] == i gate
                h_new = o_al * jnp.tanh(c_new)
            else:
                # Lane-aligned per-gate blocks (4*H > 128 fallback).
                i_g = jax.nn.sigmoid(gates[:, 0 * Hc:1 * Hc])
                f_g = jax.nn.sigmoid(gates[:, 1 * Hc:2 * Hc])
                g_g = jnp.tanh(gates[:, 2 * Hc:3 * Hc])
                o_g = jax.nn.sigmoid(gates[:, 3 * Hc:4 * Hc])
                c_new = f_g * c + i_g * g_g
                h_new = o_g * jnp.tanh(c_new)
            y_ref[pl.ds(row, Bp), :] = h_new   # raw h; BN applied post-loop
            return h_new, c_new

        return lax.fori_loop(0, T, step, (h0, c0), unroll=unroll)

    def batchnorm():
        # Eval BatchNorm1d folded into per-(t, b) scale/shift; one lane-dense
        # vectorized pass over the whole layer output, in place, off the
        # recurrence.
        y_ref[...] = y_ref[...] * scale_ref[...] + shift_ref[...]

    zeros = jnp.zeros((Bp, Hc), jnp.float32)

    # Layer 1.
    project(x_ref, wih1_ref, b1_ref)
    h, c = recur(whh1_ref, zeros, zeros)
    batchnorm()

    # Layers 2..n reuse lstm2 weights, (h, c) carried forward (as in PyTorch).
    for _ in range(n_layers - 1):
        project(y_ref, wih2_ref, b2_ref)
        h, c = recur(whh2_ref, h, c)
        batchnorm()

    # Fused mu/logvar heads on the last timestep: one (Bp, Hc) x (Hc, 2) dot.
    x_last = y_ref[pl.ds((T - 1) * Bp, Bp), :]
    out_ref[...] = jnp.dot(x_last, wh_ref[...],
                           preferred_element_type=jnp.float32) + bh_ref[...]


# ----------------------------------------------------------------------------
# One-time parameter prep (all re-layout hoisted out of the per-call path).
# ----------------------------------------------------------------------------
def prepare_params(params, max_len, batch_size, bn_eps=1e-5):
    H = params["lstm1_whh"].shape[1]
    T = max_len
    Bp = _round_up(max(batch_size, 1), 8)      # sublane multiple
    packed = 4 * H <= 128

    if packed:
        Hc = 128                                # hidden / gate container lanes
        Gc = 128

        def pack_cols(w_t):                     # (K, 4H) -> (K, Gc) contiguous
            w_t = jnp.asarray(w_t, jnp.float32)
            return jnp.pad(w_t, ((0, 0), (0, Gc - 4 * H)))
    else:
        Hc = _round_up(H, 128)
        Gc = 4 * Hc

        def pack_cols(w_t):                     # gate g at cols [g*Hc, g*Hc+H)
            w_t = jnp.asarray(w_t, jnp.float32)
            K = w_t.shape[0]
            out = jnp.zeros((K, Gc), jnp.float32)
            for g in range(4):
                out = out.at[:, g * Hc:g * Hc + H].set(
                    w_t[:, g * H:(g + 1) * H])
            return out

    def pad_rows(w, Kp):
        # Rows [H:Kp) are zero -> padded hidden lanes can never reach gates.
        return jnp.pad(w, ((0, Kp - w.shape[0]), (0, 0)))

    wih1 = pack_cols(params["lstm1_wih"].T)                          # (F, Gc)
    whh1 = pad_rows(pack_cols(params["lstm1_whh"].T), Hc)            # (Hc, Gc)
    b1 = pack_cols((params["lstm1_bih"] + params["lstm1_bhh"]).reshape(1, -1))
    wih2 = pad_rows(pack_cols(params["lstm2_wih"].T), Hc)            # (Hc, Gc)
    whh2 = pad_rows(pack_cols(params["lstm2_whh"].T), Hc)            # (Hc, Gc)
    b2 = pack_cols((params["lstm2_bih"] + params["lstm2_bhh"]).reshape(1, -1))

    # Eval BatchNorm1d(T) folded into per-timestep scale/shift, expanded to
    # the flattened (t, b) row layout and pre-broadcast to the lane dim.
    sc = params["bn_gamma"] / jnp.sqrt(params["bn_var"] + bn_eps)    # (T,)
    sh = params["bn_beta"] - params["bn_mean"] * sc                  # (T,)
    scale = jnp.broadcast_to(jnp.repeat(sc, Bp)[:, None], (T * Bp, Hc))
    shift = jnp.broadcast_to(jnp.repeat(sh, Bp)[:, None], (T * Bp, Hc))
    scale = jnp.asarray(scale, jnp.float32)
    shift = jnp.asarray(shift, jnp.float32)

    # Fused heads: columns [mu | logvar]; rows [H:Hc) zero.
    wh = jnp.zeros((Hc, 2), jnp.float32)
    wh = wh.at[:H, 0].set(params["mu_w"][0])
    wh = wh.at[:H, 1].set(params["lv_w"][0])
    bh = jnp.concatenate([params["mu_b"], params["lv_b"]]).reshape(1, 2)
    bh = jnp.asarray(bh, jnp.float32)

    prepped = dict(wih1=wih1, whh1=whh1, b1=b1, wih2=wih2, whh2=whh2, b2=b2,
                   scale=scale, shift=shift, wh=wh, bh=bh)
    meta = dict(hidden=int(H), seq_len=int(T), batch_pad=int(Bp),
                packed=bool(packed))
    return prepped, meta


# ----------------------------------------------------------------------------
# Jitted forward: only per-call x reshaping + ONE fused pallas_call.
# ----------------------------------------------------------------------------
@functools.partial(
    jax.jit,
    static_argnames=("hidden", "seq_len", "batch_pad", "packed",
                     "n_layers", "return_squeezed"))
def dalstm_forward(x, prepped, *, hidden, seq_len, batch_pad, packed,
                   n_layers=2, return_squeezed=True):
    x = x.astype(jnp.float32)
    B, T, F = x.shape
    assert T == seq_len and B <= batch_pad
    Bp = batch_pad
    Hc = prepped["whh1"].shape[0]
    Gc = prepped["whh1"].shape[1]

    # time-major, batch-padded, flattened to (T*Bp, F) — cheap under jit.
    x_tm = jnp.transpose(x, (1, 0, 2))
    if Bp != B:
        x_tm = jnp.pad(x_tm, ((0, 0), (0, Bp - B), (0, 0)))
    x_flat = x_tm.reshape(T * Bp, F)

    unroll = T if T <= 32 else 8   # full unroll for short seqs, capped for long

    vmem = pl.BlockSpec(memory_space=pltpu.MemorySpace.VMEM)
    out = pl.pallas_call(
        functools.partial(_fused_dalstm_kernel, n_layers=n_layers, seq_len=T,
                          batch_pad=Bp, hidden=hidden, packed=packed,
                          unroll=unroll),
        out_shape=jax.ShapeDtypeStruct((Bp, 2), jnp.float32),
        in_specs=[vmem] * 11,
        out_specs=vmem,
        scratch_shapes=[pltpu.VMEM((T * Bp, Gc), jnp.float32),
                        pltpu.VMEM((T * Bp, Hc), jnp.float32)],
        compiler_params=pltpu.CompilerParams(
            vmem_limit_bytes=32 * 1024 * 1024),
    )(x_flat, prepped["wih1"], prepped["whh1"], prepped["b1"],
      prepped["wih2"], prepped["whh2"], prepped["b2"],
      prepped["scale"], prepped["shift"], prepped["wh"], prepped["bh"])

    mu = out[:B, 0]
    logvar = out[:B, 1]
    if return_squeezed:
        return mu, logvar
    return mu[:, None], logvar[:, None]


# ----------------------------------------------------------------------------
# Parameter init (deterministic, mirrors PyTorch shapes)
# ----------------------------------------------------------------------------
def init_params(key, input_size, hidden_size, max_len):
    ks = jax.random.split(key, 16)
    bound = 1.0 / np.sqrt(hidden_size)

    def u(kk, shape, b=bound):
        return jax.random.uniform(kk, shape, jnp.float32, -b, b)

    H = hidden_size
    return {
        "lstm1_wih": u(ks[0], (4 * H, input_size)),
        "lstm1_whh": u(ks[1], (4 * H, H)),
        "lstm1_bih": u(ks[2], (4 * H,)),
        "lstm1_bhh": u(ks[3], (4 * H,)),
        "lstm2_wih": u(ks[4], (4 * H, H)),
        "lstm2_whh": u(ks[5], (4 * H, H)),
        "lstm2_bih": u(ks[6], (4 * H,)),
        "lstm2_bhh": u(ks[7], (4 * H,)),
        "bn_gamma": jax.random.uniform(ks[8], (max_len,), jnp.float32, 0.5, 1.5),
        "bn_beta": 0.1 * jax.random.normal(ks[9], (max_len,), jnp.float32),
        "bn_mean": 0.1 * jax.random.normal(ks[10], (max_len,), jnp.float32),
        "bn_var": jax.random.uniform(ks[11], (max_len,), jnp.float32, 0.5, 1.5),
        "mu_w": u(ks[12], (1, H)),
        "mu_b": u(ks[13], (1,)),
        "lv_w": u(ks[14], (1, H)),
        "lv_b": u(ks[15], (1,)),
    }


# ----------------------------------------------------------------------------
# Pure-JAX reference (same eval semantics) for a correctness check.
# ----------------------------------------------------------------------------
def _ref_lstm(x_tm, wih, whh, bih, bhh, h0, c0):
    H = h0.shape[1]

    def step(carry, x_t):
        h, c = carry
        gates = x_t @ wih.T + bih + h @ whh.T + bhh
        i_g = jax.nn.sigmoid(gates[:, 0 * H:1 * H])
        f_g = jax.nn.sigmoid(gates[:, 1 * H:2 * H])
        g_g = jnp.tanh(gates[:, 2 * H:3 * H])
        o_g = jax.nn.sigmoid(gates[:, 3 * H:4 * H])
        c_new = f_g * c + i_g * g_g
        h_new = o_g * jnp.tanh(c_new)
        return (h_new, c_new), h_new

    (h, c), ys = lax.scan(step, (h0, c0), x_tm)
    return ys, h, c


def reference_forward(x, params, n_layers=2, bn_eps=1e-5):
    x = x.astype(jnp.float32)
    B, T, _ = x.shape
    H = params["lstm1_whh"].shape[1]
    x_tm = jnp.transpose(x, (1, 0, 2))
    sc = params["bn_gamma"] / jnp.sqrt(params["bn_var"] + bn_eps)
    scale = sc.reshape(T, 1, 1)
    shift = (params["bn_beta"] - params["bn_mean"] * sc).reshape(T, 1, 1)
    h0 = jnp.zeros((B, H), jnp.float32)
    c0 = jnp.zeros((B, H), jnp.float32)

    ys, h, c = _ref_lstm(x_tm, params["lstm1_wih"], params["lstm1_whh"],
                         params["lstm1_bih"], params["lstm1_bhh"], h0, c0)
    y = ys * scale + shift
    for _ in range(n_layers - 1):
        ys, h, c = _ref_lstm(y, params["lstm2_wih"], params["lstm2_whh"],
                             params["lstm2_bih"], params["lstm2_bhh"], h, c)
        y = ys * scale + shift
    x_last = y[T - 1]
    mu = x_last @ params["mu_w"].T + params["mu_b"]
    lv = x_last @ params["lv_w"].T + params["lv_b"]
    return mu[:, 0], lv[:, 0]


if __name__ == "__main__":
    B, T, F, H = 4, 8, 8, 32        # batch, max_len, input_size, hidden_size
    n_layers = 2

    key = jax.random.PRNGKey(0)
    k_param, k_x = jax.random.split(key)
    params = init_params(k_param, input_size=F, hidden_size=H, max_len=T)
    x = jax.random.normal(k_x, (B, T, F), dtype=jnp.float32)

    # One-time weight re-layout; the per-call forward is jitted.
    prepped, meta = prepare_params(params, max_len=T, batch_size=B)

    mu, logvar = dalstm_forward(x, prepped, n_layers=n_layers,
                                return_squeezed=True, **meta)
    mu = jax.block_until_ready(mu)
    logvar = jax.block_until_ready(logvar)
    assert mu.shape == (B,) and logvar.shape == (B,)

    mu_ref, lv_ref = reference_forward(x, params, n_layers=n_layers)
    np.testing.assert_allclose(np.asarray(mu), np.asarray(mu_ref),
                               rtol=2e-2, atol=2e-2)
    np.testing.assert_allclose(np.asarray(logvar), np.asarray(lv_ref),
                               rtol=2e-2, atol=2e-2)

    print("KERNEL_OK")
</pallas_src>

<mosaic_0001>
module attributes {stable_mosaic.version = 11 : i64} {
  func.func @_fused_dalstm_kernel(%arg0: memref<64x8xf32, #tpu.memory_space<vmem>>, %arg1: memref<8x128xf32, #tpu.memory_space<vmem>>, %arg2: memref<128x128xf32, #tpu.memory_space<vmem>>, %arg3: memref<1x128xf32, #tpu.memory_space<vmem>>, %arg4: memref<128x128xf32, #tpu.memory_space<vmem>>, %arg5: memref<128x128xf32, #tpu.memory_space<vmem>>, %arg6: memref<1x128xf32, #tpu.memory_space<vmem>>, %arg7: memref<64x128xf32, #tpu.memory_space<vmem>>, %arg8: memref<64x128xf32, #tpu.memory_space<vmem>>, %arg9: memref<128x2xf32, #tpu.memory_space<vmem>>, %arg10: memref<1x2xf32, #tpu.memory_space<vmem>>, %arg11: memref<8x2xf32, #tpu.memory_space<vmem>>, %arg12: memref<64x128xf32, #tpu.memory_space<vmem>>, %arg13: memref<64x128xf32, #tpu.memory_space<vmem>>) attributes {dimension_semantics = [], scalar_prefetch = 0 : i64, scratch_operands = 2 : i64, tpu.core_type = #tpu.core_type<tc>} {
    %0 = tpu.iota {dimensions = array<i32: 1>} : vector<8x128xi32>
    %c64_i32 = arith.constant 64 : i32
    %1 = vector.broadcast %c64_i32 : i32 to vector<8x128xi32>
    %2 = arith.cmpi sge, %0, %1 : vector<8x128xi32>
    %c96_i32 = arith.constant 96 : i32
    %3 = vector.broadcast %c96_i32 : i32 to vector<8x128xi32>
    %4 = arith.cmpi slt, %0, %3 : vector<8x128xi32>
    %5 = arith.andi %2, %4 : vector<8x128xi1>
    %cst = arith.constant 0.000000e+00 : f32
    %6 = vector.broadcast %cst : f32 to vector<8x128xf32>
    %c0 = arith.constant 0 : index
    %c0_0 = arith.constant 0 : index
    %7 = vector.load %arg0[%c0, %c0_0] : memref<64x8xf32, #tpu.memory_space<vmem>>, vector<64x8xf32>
    %c0_1 = arith.constant 0 : index
    %c0_2 = arith.constant 0 : index
    %8 = vector.load %arg1[%c0_1, %c0_2] : memref<8x128xf32, #tpu.memory_space<vmem>>, vector<8x128xf32>
    %cst_3 = arith.constant dense<0.000000e+00> : vector<64x128xf32>
    %9 = tpu.matmul %7, %8, %cst_3 {dimension_numbers = #tpu.dot_dimension_numbers<[1], [0], [0], [1], [0, 0, 1, 1], [], []>} : vector<64x8xf32>, vector<8x128xf32>, vector<64x128xf32> -> vector<64x128xf32>
    %c0_4 = arith.constant 0 : index
    %c0_5 = arith.constant 0 : index
    %10 = vector.load %arg3[%c0_4, %c0_5] : memref<1x128xf32, #tpu.memory_space<vmem>>, vector<1x128xf32>
    %11 = vector.broadcast %10 : vector<1x128xf32> to vector<64x128xf32>
    %12 = arith.addf %9, %11 : vector<64x128xf32>
    %c0_6 = arith.constant 0 : index
    %c0_7 = arith.constant 0 : index
    %13 = vector.load %arg12[%c0_6, %c0_7] : memref<64x128xf32, #tpu.memory_space<vmem>>, vector<64x128xf32>
    tpu.vector_store %arg12[%c0_6, %c0_7], %12 {strides = array<i32>} : memref<64x128xf32, #tpu.memory_space<vmem>>, vector<64x128xf32>,
    %c0_i32 = arith.constant 0 : i32
    %c8_i32 = arith.constant 8 : i32
    %14 = arith.muli %c0_i32, %c8_i32 : i32
    %15 = tpu.assume_multiple %14, 8 : i32
    %16 = arith.index_cast %15 : i32 to index
    %c0_8 = arith.constant 0 : index
    %17 = vector.load %arg12[%16, %c0_8] : memref<64x128xf32, #tpu.memory_space<vmem>>, vector<8x128xf32>
    %c0_9 = arith.constant 0 : index
    %c0_10 = arith.constant 0 : index
    %18 = vector.load %arg2[%c0_9, %c0_10] : memref<128x128xf32, #tpu.memory_space<vmem>>, vector<128x128xf32>
    %cst_11 = arith.constant dense<0.000000e+00> : vector<8x128xf32>
    %19 = tpu.matmul %6, %18, %cst_11 {dimension_numbers = #tpu.dot_dimension_numbers<[1], [0], [0], [1], [0, 0, 1, 1], [], []>} : vector<8x128xf32>, vector<128x128xf32>, vector<8x128xf32> -> vector<8x128xf32>
    %20 = arith.addf %17, %19 : vector<8x128xf32>
    %21 = math.tanh %20 : vector<8x128xf32>
    %22 = arith.negf %20 : vector<8x128xf32>
    %23 = math.exp %22 : vector<8x128xf32>
    %cst_12 = arith.constant 1.000000e+00 : f32
    %24 = vector.broadcast %cst_12 : f32 to vector<8x128xf32>
    %25 = arith.addf %24, %23 : vector<8x128xf32>
    %26 = arith.divf %24, %25 : vector<8x128xf32>
    %27 = arith.select %5, %21, %26 : vector<8x128xi1>, vector<8x128xf32>
    %c96_i32_13 = arith.constant 96 : i32
    %28 = tpu.dynamic_rotate %27 by %c96_i32_13 dim 1 : vector<8x128xf32>, i32 -> vector<8x128xf32>
    %c64_i32_14 = arith.constant 64 : i32
    %29 = tpu.dynamic_rotate %27 by %c64_i32_14 dim 1 : vector<8x128xf32>, i32 -> vector<8x128xf32>
    %c32_i32 = arith.constant 32 : i32
    %30 = tpu.dynamic_rotate %27 by %c32_i32 dim 1 : vector<8x128xf32>, i32 -> vector<8x128xf32>
    %31 = arith.mulf %28, %6 : vector<8x128xf32>
    %32 = arith.mulf %27, %29 : vector<8x128xf32>
    %33 = arith.addf %31, %32 : vector<8x128xf32>
    %34 = math.tanh %33 : vector<8x128xf32>
    %35 = arith.mulf %30, %34 : vector<8x128xf32>
    %36 = arith.index_cast %15 : i32 to index
    %c0_15 = arith.constant 0 : index
    %37 = vector.load %arg13[%36, %c0_15] : memref<64x128xf32, #tpu.memory_space<vmem>>, vector<8x128xf32>
    tpu.vector_store %arg13[%36, %c0_15], %35 {strides = array<i32>} : memref<64x128xf32, #tpu.memory_space<vmem>>, vector<8x128xf32>,
    %c1_i32 = arith.constant 1 : i32
    %c8_i32_16 = arith.constant 8 : i32
    %38 = arith.muli %c1_i32, %c8_i32_16 : i32
    %39 = tpu.assume_multiple %38, 8 : i32
    %40 = arith.index_cast %39 : i32 to index
    %c0_17 = arith.constant 0 : index
    %41 = vector.load %arg12[%40, %c0_17] : memref<64x128xf32, #tpu.memory_space<vmem>>, vector<8x128xf32>
    %c0_18 = arith.constant 0 : index
    %c0_19 = arith.constant 0 : index
    %42 = vector.load %arg2[%c0_18, %c0_19] : memref<128x128xf32, #tpu.memory_space<vmem>>, vector<128x128xf32>
    %cst_20 = arith.constant dense<0.000000e+00> : vector<8x128xf32>
    %43 = tpu.matmul %35, %42, %cst_20 {dimension_numbers = #tpu.dot_dimension_numbers<[1], [0], [0], [1], [0, 0, 1, 1], [], []>} : vector<8x128xf32>, vector<128x128xf32>, vector<8x128xf32> -> vector<8x128xf32>
    %44 = arith.addf %41, %43 : vector<8x128xf32>
    %45 = math.tanh %44 : vector<8x128xf32>
    %46 = arith.negf %44 : vector<8x128xf32>
    %47 = math.exp %46 : vector<8x128xf32>
    %cst_21 = arith.constant 1.000000e+00 : f32
    %48 = vector.broadcast %cst_21 : f32 to vector<8x128xf32>
    %49 = arith.addf %48, %47 : vector<8x128xf32>
    %50 = arith.divf %48, %49 : vector<8x128xf32>
    %51 = arith.select %5, %45, %50 : vector<8x128xi1>, vector<8x128xf32>
    %c96_i32_22 = arith.constant 96 : i32
    %52 = tpu.dynamic_rotate %51 by %c96_i32_22 dim 1 : vector<8x128xf32>, i32 -> vector<8x128xf32>
    %c64_i32_23 = arith.constant 64 : i32
    %53 = tpu.dynamic_rotate %51 by %c64_i32_23 dim 1 : vector<8x128xf32>, i32 -> vector<8x128xf32>
    %c32_i32_24 = arith.constant 32 : i32
    %54 = tpu.dynamic_rotate %51 by %c32_i32_24 dim 1 : vector<8x128xf32>, i32 -> vector<8x128xf32>
    %55 = arith.mulf %52, %33 : vector<8x128xf32>
    %56 = arith.mulf %51, %53 : vector<8x128xf32>
    %57 = arith.addf %55, %56 : vector<8x128xf32>
    %58 = math.tanh %57 : vector<8x128xf32>
    %59 = arith.mulf %54, %58 : vector<8x128xf32>
    %60 = arith.index_cast %39 : i32 to index
    %c0_25 = arith.constant 0 : index
    %61 = vector.load %arg13[%60, %c0_25] : memref<64x128xf32, #tpu.memory_space<vmem>>, vector<8x128xf32>
    tpu.vector_store %arg13[%60, %c0_25], %59 {strides = array<i32>} : memref<64x128xf32, #tpu.memory_space<vmem>>, vector<8x128xf32>,
    %c2_i32 = arith.constant 2 : i32
    %c8_i32_26 = arith.constant 8 : i32
    %62 = arith.muli %c2_i32, %c8_i32_26 : i32
    %63 = tpu.assume_multiple %62, 8 : i32
    %64 = arith.index_cast %63 : i32 to index
    %c0_27 = arith.constant 0 : index
    %65 = vector.load %arg12[%64, %c0_27] : memref<64x128xf32, #tpu.memory_space<vmem>>, vector<8x128xf32>
    %c0_28 = arith.constant 0 : index
    %c0_29 = arith.constant 0 : index
    %66 = vector.load %arg2[%c0_28, %c0_29] : memref<128x128xf32, #tpu.memory_space<vmem>>, vector<128x128xf32>
    %cst_30 = arith.constant dense<0.000000e+00> : vector<8x128xf32>
    %67 = tpu.matmul %59, %66, %cst_30 {dimension_numbers = #tpu.dot_dimension_numbers<[1], [0], [0], [1], [0, 0, 1, 1], [], []>} : vector<8x128xf32>, vector<128x128xf32>, vector<8x128xf32> -> vector<8x128xf32>
    %68 = arith.addf %65, %67 : vector<8x128xf32>
    %69 = math.tanh %68 : vector<8x128xf32>
    %70 = arith.negf %68 : vector<8x128xf32>
    %71 = math.exp %70 : vector<8x128xf32>
    %cst_31 = arith.constant 1.000000e+00 : f32
    %72 = vector.broadcast %cst_31 : f32 to vector<8x128xf32>
    %73 = arith.addf %72, %71 : vector<8x128xf32>
    %74 = arith.divf %72, %73 : vector<8x128xf32>
    %75 = arith.select %5, %69, %74 : vector<8x128xi1>, vector<8x128xf32>
    %c96_i32_32 = arith.constant 96 : i32
    %76 = tpu.dynamic_rotate %75 by %c96_i32_32 dim 1 : vector<8x128xf32>, i32 -> vector<8x128xf32>
    %c64_i32_33 = arith.constant 64 : i32
    %77 = tpu.dynamic_rotate %75 by %c64_i32_33 dim 1 : vector<8x128xf32>, i32 -> vector<8x128xf32>
    %c32_i32_34 = arith.constant 32 : i32
    %78 = tpu.dynamic_rotate %75 by %c32_i32_34 dim 1 : vector<8x128xf32>, i32 -> vector<8x128xf32>
    %79 = arith.mulf %76, %57 : vector<8x128xf32>
    %80 = arith.mulf %75, %77 : vector<8x128xf32>
    %81 = arith.addf %79, %80 : vector<8x128xf32>
    %82 = math.tanh %81 : vector<8x128xf32>
    %83 = arith.mulf %78, %82 : vector<8x128xf32>
    %84 = arith.index_cast %63 : i32 to index
    %c0_35 = arith.constant 0 : index
    %85 = vector.load %arg13[%84, %c0_35] : memref<64x128xf32, #tpu.memory_space<vmem>>, vector<8x128xf32>
    tpu.vector_store %arg13[%84, %c0_35], %83 {strides = array<i32>} : memref<64x128xf32, #tpu.memory_space<vmem>>, vector<8x128xf32>,
    %c3_i32 = arith.constant 3 : i32
    %c8_i32_36 = arith.constant 8 : i32
    %86 = arith.muli %c3_i32, %c8_i32_36 : i32
    %87 = tpu.assume_multiple %86, 8 : i32
    %88 = arith.index_cast %87 : i32 to index
    %c0_37 = arith.constant 0 : index
    %89 = vector.load %arg12[%88, %c0_37] : memref<64x128xf32, #tpu.memory_space<vmem>>, vector<8x128xf32>
    %c0_38 = arith.constant 0 : index
    %c0_39 = arith.constant 0 : index
    %90 = vector.load %arg2[%c0_38, %c0_39] : memref<128x128xf32, #tpu.memory_space<vmem>>, vector<128x128xf32>
    %cst_40 = arith.constant dense<0.000000e+00> : vector<8x128xf32>
    %91 = tpu.matmul %83, %90, %cst_40 {dimension_numbers = #tpu.dot_dimension_numbers<[1], [0], [0], [1], [0, 0, 1, 1], [], []>} : vector<8x128xf32>, vector<128x128xf32>, vector<8x128xf32> -> vector<8x128xf32>
    %92 = arith.addf %89, %91 : vector<8x128xf32>
    %93 = math.tanh %92 : vector<8x128xf32>
    %94 = arith.negf %92 : vector<8x128xf32>
    %95 = math.exp %94 : vector<8x128xf32>
    %cst_41 = arith.constant 1.000000e+00 : f32
    %96 = vector.broadcast %cst_41 : f32 to vector<8x128xf32>
    %97 = arith.addf %96, %95 : vector<8x128xf32>
    %98 = arith.divf %96, %97 : vector<8x128xf32>
    %99 = arith.select %5, %93, %98 : vector<8x128xi1>, vector<8x128xf32>
    %c96_i32_42 = arith.constant 96 : i32
    %100 = tpu.dynamic_rotate %99 by %c96_i32_42 dim 1 : vector<8x128xf32>, i32 -> vector<8x128xf32>
    %c64_i32_43 = arith.constant 64 : i32
    %101 = tpu.dynamic_rotate %99 by %c64_i32_43 dim 1 : vector<8x128xf32>, i32 -> vector<8x128xf32>
    %c32_i32_44 = arith.constant 32 : i32
    %102 = tpu.dynamic_rotate %99 by %c32_i32_44 dim 1 : vector<8x128xf32>, i32 -> vector<8x128xf32>
    %103 = arith.mulf %100, %81 : vector<8x128xf32>
    %104 = arith.mulf %99, %101 : vector<8x128xf32>
    %105 = arith.addf %103, %104 : vector<8x128xf32>
    %106 = math.tanh %105 : vector<8x128xf32>
    %107 = arith.mulf %102, %106 : vector<8x128xf32>
    %108 = arith.index_cast %87 : i32 to index
    %c0_45 = arith.constant 0 : index
    %109 = vector.load %arg13[%108, %c0_45] : memref<64x128xf32, #tpu.memory_space<vmem>>, vector<8x128xf32>
    tpu.vector_store %arg13[%108, %c0_45], %107 {strides = array<i32>} : memref<64x128xf32, #tpu.memory_space<vmem>>, vector<8x128xf32>,
    %c4_i32 = arith.constant 4 : i32
    %c8_i32_46 = arith.constant 8 : i32
    %110 = arith.muli %c4_i32, %c8_i32_46 : i32
    %111 = tpu.assume_multiple %110, 8 : i32
    %112 = arith.index_cast %111 : i32 to index
    %c0_47 = arith.constant 0 : index
    %113 = vector.load %arg12[%112, %c0_47] : memref<64x128xf32, #tpu.memory_space<vmem>>, vector<8x128xf32>
    %c0_48 = arith.constant 0 : index
    %c0_49 = arith.constant 0 : index
    %114 = vector.load %arg2[%c0_48, %c0_49] : memref<128x128xf32, #tpu.memory_space<vmem>>, vector<128x128xf32>
    %cst_50 = arith.constant dense<0.000000e+00> : vector<8x128xf32>
    %115 = tpu.matmul %107, %114, %cst_50 {dimension_numbers = #tpu.dot_dimension_numbers<[1], [0], [0], [1], [0, 0, 1, 1], [], []>} : vector<8x128xf32>, vector<128x128xf32>, vector<8x128xf32> -> vector<8x128xf32>
    %116 = arith.addf %113, %115 : vector<8x128xf32>
    %117 = math.tanh %116 : vector<8x128xf32>
    %118 = arith.negf %116 : vector<8x128xf32>
    %119 = math.exp %118 : vector<8x128xf32>
    %cst_51 = arith.constant 1.000000e+00 : f32
    %120 = vector.broadcast %cst_51 : f32 to vector<8x128xf32>
    %121 = arith.addf %120, %119 : vector<8x128xf32>
    %122 = arith.divf %120, %121 : vector<8x128xf32>
    %123 = arith.select %5, %117, %122 : vector<8x128xi1>, vector<8x128xf32>
    %c96_i32_52 = arith.constant 96 : i32
    %124 = tpu.dynamic_rotate %123 by %c96_i32_52 dim 1 : vector<8x128xf32>, i32 -> vector<8x128xf32>
    %c64_i32_53 = arith.constant 64 : i32
    %125 = tpu.dynamic_rotate %123 by %c64_i32_53 dim 1 : vector<8x128xf32>, i32 -> vector<8x128xf32>
    %c32_i32_54 = arith.constant 32 : i32
    %126 = tpu.dynamic_rotate %123 by %c32_i32_54 dim 1 : vector<8x128xf32>, i32 -> vector<8x128xf32>
    %127 = arith.mulf %124, %105 : vector<8x128xf32>
    %128 = arith.mulf %123, %125 : vector<8x128xf32>
    %129 = arith.addf %127, %128 : vector<8x128xf32>
    %130 = math.tanh %129 : vector<8x128xf32>
    %131 = arith.mulf %126, %130 : vector<8x128xf32>
    %132 = arith.index_cast %111 : i32 to index
    %c0_55 = arith.constant 0 : index
    %133 = vector.load %arg13[%132, %c0_55] : memref<64x128xf32, #tpu.memory_space<vmem>>, vector<8x128xf32>
    tpu.vector_store %arg13[%132, %c0_55], %131 {strides = array<i32>} : memref<64x128xf32, #tpu.memory_space<vmem>>, vector<8x128xf32>,
    %c5_i32 = arith.constant 5 : i32
    %c8_i32_56 = arith.constant 8 : i32
    %134 = arith.muli %c5_i32, %c8_i32_56 : i32
    %135 = tpu.assume_multiple %134, 8 : i32
    %136 = arith.index_cast %135 : i32 to index
    %c0_57 = arith.constant 0 : index
    %137 = vector.load %arg12[%136, %c0_57] : memref<64x128xf32, #tpu.memory_space<vmem>>, vector<8x128xf32>
    %c0_58 = arith.constant 0 : index
    %c0_59 = arith.constant 0 : index
    %138 = vector.load %arg2[%c0_58, %c0_59] : memref<128x128xf32, #tpu.memory_space<vmem>>, vector<128x128xf32>
    %cst_60 = arith.constant dense<0.000000e+00> : vector<8x128xf32>
    %139 = tpu.matmul %131, %138, %cst_60 {dimension_numbers = #tpu.dot_dimension_numbers<[1], [0], [0], [1], [0, 0, 1, 1], [], []>} : vector<8x128xf32>, vector<128x128xf32>, vector<8x128xf32> -> vector<8x128xf32>
    %140 = arith.addf %137, %139 : vector<8x128xf32>
    %141 = math.tanh %140 : vector<8x128xf32>
    %142 = arith.negf %140 : vector<8x128xf32>
    %143 = math.exp %142 : vector<8x128xf32>
    %cst_61 = arith.constant 1.000000e+00 : f32
    %144 = vector.broadcast %cst_61 : f32 to vector<8x128xf32>
    %145 = arith.addf %144, %143 : vector<8x128xf32>
    %146 = arith.divf %144, %145 : vector<8x128xf32>
    %147 = arith.select %5, %141, %146 : vector<8x128xi1>, vector<8x128xf32>
    %c96_i32_62 = arith.constant 96 : i32
    %148 = tpu.dynamic_rotate %147 by %c96_i32_62 dim 1 : vector<8x128xf32>, i32 -> vector<8x128xf32>
    %c64_i32_63 = arith.constant 64 : i32
    %149 = tpu.dynamic_rotate %147 by %c64_i32_63 dim 1 : vector<8x128xf32>, i32 -> vector<8x128xf32>
    %c32_i32_64 = arith.constant 32 : i32
    %150 = tpu.dynamic_rotate %147 by %c32_i32_64 dim 1 : vector<8x128xf32>, i32 -> vector<8x128xf32>
    %151 = arith.mulf %148, %129 : vector<8x128xf32>
    %152 = arith.mulf %147, %149 : vector<8x128xf32>
    %153 = arith.addf %151, %152 : vector<8x128xf32>
    %154 = math.tanh %153 : vector<8x128xf32>
    %155 = arith.mulf %150, %154 : vector<8x128xf32>
    %156 = arith.index_cast %135 : i32 to index
    %c0_65 = arith.constant 0 : index
    %157 = vector.load %arg13[%156, %c0_65] : memref<64x128xf32, #tpu.memory_space<vmem>>, vector<8x128xf32>
    tpu.vector_store %arg13[%156, %c0_65], %155 {strides = array<i32>} : memref<64x128xf32, #tpu.memory_space<vmem>>, vector<8x128xf32>,
    %c6_i32 = arith.constant 6 : i32
    %c8_i32_66 = arith.constant 8 : i32
    %158 = arith.muli %c6_i32, %c8_i32_66 : i32
    %159 = tpu.assume_multiple %158, 8 : i32
    %160 = arith.index_cast %159 : i32 to index
    %c0_67 = arith.constant 0 : index
    %161 = vector.load %arg12[%160, %c0_67] : memref<64x128xf32, #tpu.memory_space<vmem>>, vector<8x128xf32>
    %c0_68 = arith.constant 0 : index
    %c0_69 = arith.constant 0 : index
    %162 = vector.load %arg2[%c0_68, %c0_69] : memref<128x128xf32, #tpu.memory_space<vmem>>, vector<128x128xf32>
    %cst_70 = arith.constant dense<0.000000e+00> : vector<8x128xf32>
    %163 = tpu.matmul %155, %162, %cst_70 {dimension_numbers = #tpu.dot_dimension_numbers<[1], [0], [0], [1], [0, 0, 1, 1], [], []>} : vector<8x128xf32>, vector<128x128xf32>, vector<8x128xf32> -> vector<8x128xf32>
    %164 = arith.addf %161, %163 : vector<8x128xf32>
    %165 = math.tanh %164 : vector<8x128xf32>
    %166 = arith.negf %164 : vector<8x128xf32>
    %167 = math.exp %166 : vector<8x128xf32>
    %cst_71 = arith.constant 1.000000e+00 : f32
    %168 = vector.broadcast %cst_71 : f32 to vector<8x128xf32>
    %169 = arith.addf %168, %167 : vector<8x128xf32>
    %170 = arith.divf %168, %169 : vector<8x128xf32>
    %171 = arith.select %5, %165, %170 : vector<8x128xi1>, vector<8x128xf32>
    %c96_i32_72 = arith.constant 96 : i32
    %172 = tpu.dynamic_rotate %171 by %c96_i32_72 dim 1 : vector<8x128xf32>, i32 -> vector<8x128xf32>
    %c64_i32_73 = arith.constant 64 : i32
    %173 = tpu.dynamic_rotate %171 by %c64_i32_73 dim 1 : vector<8x128xf32>, i32 -> vector<8x128xf32>
    %c32_i32_74 = arith.constant 32 : i32
    %174 = tpu.dynamic_rotate %171 by %c32_i32_74 dim 1 : vector<8x128xf32>, i32 -> vector<8x128xf32>
    %175 = arith.mulf %172, %153 : vector<8x128xf32>
    %176 = arith.mulf %171, %173 : vector<8x128xf32>
    %177 = arith.addf %175, %176 : vector<8x128xf32>
    %178 = math.tanh %177 : vector<8x128xf32>
    %179 = arith.mulf %174, %178 : vector<8x128xf32>
    %180 = arith.index_cast %159 : i32 to index
    %c0_75 = arith.constant 0 : index
    %181 = vector.load %arg13[%180, %c0_75] : memref<64x128xf32, #tpu.memory_space<vmem>>, vector<8x128xf32>
    tpu.vector_store %arg13[%180, %c0_75], %179 {strides = array<i32>} : memref<64x128xf32, #tpu.memory_space<vmem>>, vector<8x128xf32>,
    %c7_i32 = arith.constant 7 : i32
    %c8_i32_76 = arith.constant 8 : i32
    %182 = arith.muli %c7_i32, %c8_i32_76 : i32
    %183 = tpu.assume_multiple %182, 8 : i32
    %184 = arith.index_cast %183 : i32 to index
    %c0_77 = arith.constant 0 : index
    %185 = vector.load %arg12[%184, %c0_77] : memref<64x128xf32, #tpu.memory_space<vmem>>, vector<8x128xf32>
    %c0_78 = arith.constant 0 : index
    %c0_79 = arith.constant 0 : index
    %186 = vector.load %arg2[%c0_78, %c0_79] : memref<128x128xf32, #tpu.memory_space<vmem>>, vector<128x128xf32>
    %cst_80 = arith.constant dense<0.000000e+00> : vector<8x128xf32>
    %187 = tpu.matmul %179, %186, %cst_80 {dimension_numbers = #tpu.dot_dimension_numbers<[1], [0], [0], [1], [0, 0, 1, 1], [], []>} : vector<8x128xf32>, vector<128x128xf32>, vector<8x128xf32> -> vector<8x128xf32>
    %188 = arith.addf %185, %187 : vector<8x128xf32>
    %189 = math.tanh %188 : vector<8x128xf32>
    %190 = arith.negf %188 : vector<8x128xf32>
    %191 = math.exp %190 : vector<8x128xf32>
    %cst_81 = arith.constant 1.000000e+00 : f32
    %192 = vector.broadcast %cst_81 : f32 to vector<8x128xf32>
    %193 = arith.addf %192, %191 : vector<8x128xf32>
    %194 = arith.divf %192, %193 : vector<8x128xf32>
    %195 = arith.select %5, %189, %194 : vector<8x128xi1>, vector<8x128xf32>
    %c96_i32_82 = arith.constant 96 : i32
    %196 = tpu.dynamic_rotate %195 by %c96_i32_82 dim 1 : vector<8x128xf32>, i32 -> vector<8x128xf32>
    %c64_i32_83 = arith.constant 64 : i32
    %197 = tpu.dynamic_rotate %195 by %c64_i32_83 dim 1 : vector<8x128xf32>, i32 -> vector<8x128xf32>
    %c32_i32_84 = arith.constant 32 : i32
    %198 = tpu.dynamic_rotate %195 by %c32_i32_84 dim 1 : vector<8x128xf32>, i32 -> vector<8x128xf32>
    %199 = arith.mulf %196, %177 : vector<8x128xf32>
    %200 = arith.mulf %195, %197 : vector<8x128xf32>
    %201 = arith.addf %199, %200 : vector<8x128xf32>
    %202 = math.tanh %201 : vector<8x128xf32>
    %203 = arith.mulf %198, %202 : vector<8x128xf32>
    %204 = arith.index_cast %183 : i32 to index
    %c0_85 = arith.constant 0 : index
    %205 = vector.load %arg13[%204, %c0_85] : memref<64x128xf32, #tpu.memory_space<vmem>>, vector<8x128xf32>
    tpu.vector_store %arg13[%204, %c0_85], %203 {strides = array<i32>} : memref<64x128xf32, #tpu.memory_space<vmem>>, vector<8x128xf32>,
    %c8_i32_86 = arith.constant 8 : i32
    %c0_87 = arith.constant 0 : index
    %c0_88 = arith.constant 0 : index
    %206 = vector.load %arg13[%c0_87, %c0_88] : memref<64x128xf32, #tpu.memory_space<vmem>>, vector<64x128xf32>
    %c0_89 = arith.constant 0 : index
    %c0_90 = arith.constant 0 : index
    %207 = vector.load %arg7[%c0_89, %c0_90] : memref<64x128xf32, #tpu.memory_space<vmem>>, vector<64x128xf32>
    %208 = arith.mulf %206, %207 : vector<64x128xf32>
    %c0_91 = arith.constant 0 : index
    %c0_92 = arith.constant 0 : index
    %209 = vector.load %arg8[%c0_91, %c0_92] : memref<64x128xf32, #tpu.memory_space<vmem>>, vector<64x128xf32>
    %210 = arith.addf %208, %209 : vector<64x128xf32>
    %c0_93 = arith.constant 0 : index
    %c0_94 = arith.constant 0 : index
    %211 = vector.load %arg13[%c0_93, %c0_94] : memref<64x128xf32, #tpu.memory_space<vmem>>, vector<64x128xf32>
    tpu.vector_store %arg13[%c0_93, %c0_94], %210 {strides = array<i32>} : memref<64x128xf32, #tpu.memory_space<vmem>>, vector<64x128xf32>,
    %c0_95 = arith.constant 0 : index
    %c0_96 = arith.constant 0 : index
    %212 = vector.load %arg13[%c0_95, %c0_96] : memref<64x128xf32, #tpu.memory_space<vmem>>, vector<64x128xf32>
    %c0_97 = arith.constant 0 : index
    %c0_98 = arith.constant 0 : index
    %213 = vector.load %arg4[%c0_97, %c0_98] : memref<128x128xf32, #tpu.memory_space<vmem>>, vector<128x128xf32>
    %cst_99 = arith.constant dense<0.000000e+00> : vector<64x128xf32>
    %214 = tpu.matmul %212, %213, %cst_99 {dimension_numbers = #tpu.dot_dimension_numbers<[1], [0], [0], [1], [0, 0, 1, 1], [], []>} : vector<64x128xf32>, vector<128x128xf32>, vector<64x128xf32> -> vector<64x128xf32>
    %c0_100 = arith.constant 0 : index
    %c0_101 = arith.constant 0 : index
    %215 = vector.load %arg6[%c0_100, %c0_101] : memref<1x128xf32, #tpu.memory_space<vmem>>, vector<1x128xf32>
    %216 = vector.broadcast %215 : vector<1x128xf32> to vector<64x128xf32>
    %217 = arith.addf %214, %216 : vector<64x128xf32>
    %c0_102 = arith.constant 0 : index
    %c0_103 = arith.constant 0 : index
    %218 = vector.load %arg12[%c0_102, %c0_103] : memref<64x128xf32, #tpu.memory_space<vmem>>, vector<64x128xf32>
    tpu.vector_store %arg12[%c0_102, %c0_103], %217 {strides = array<i32>} : memref<64x128xf32, #tpu.memory_space<vmem>>, vector<64x128xf32>,
    %c0_i32_104 = arith.constant 0 : i32
    %c8_i32_105 = arith.constant 8 : i32
    %219 = arith.muli %c0_i32_104, %c8_i32_105 : i32
    %220 = tpu.assume_multiple %219, 8 : i32
    %221 = arith.index_cast %220 : i32 to index
    %c0_106 = arith.constant 0 : index
    %222 = vector.load %arg12[%221, %c0_106] : memref<64x128xf32, #tpu.memory_space<vmem>>, vector<8x128xf32>
    %c0_107 = arith.constant 0 : index
    %c0_108 = arith.constant 0 : index
    %223 = vector.load %arg5[%c0_107, %c0_108] : memref<128x128xf32, #tpu.memory_space<vmem>>, vector<128x128xf32>
    %cst_109 = arith.constant dense<0.000000e+00> : vector<8x128xf32>
    %224 = tpu.matmul %203, %223, %cst_109 {dimension_numbers = #tpu.dot_dimension_numbers<[1], [0], [0], [1], [0, 0, 1, 1], [], []>} : vector<8x128xf32>, vector<128x128xf32>, vector<8x128xf32> -> vector<8x128xf32>
    %225 = arith.addf %222, %224 : vector<8x128xf32>
    %226 = math.tanh %225 : vector<8x128xf32>
    %227 = arith.negf %225 : vector<8x128xf32>
    %228 = math.exp %227 : vector<8x128xf32>
    %cst_110 = arith.constant 1.000000e+00 : f32
    %229 = vector.broadcast %cst_110 : f32 to vector<8x128xf32>
    %230 = arith.addf %229, %228 : vector<8x128xf32>
    %231 = arith.divf %229, %230 : vector<8x128xf32>
    %232 = arith.select %5, %226, %231 : vector<8x128xi1>, vector<8x128xf32>
    %c96_i32_111 = arith.constant 96 : i32
    %233 = tpu.dynamic_rotate %232 by %c96_i32_111 dim 1 : vector<8x128xf32>, i32 -> vector<8x128xf32>
    %c64_i32_112 = arith.constant 64 : i32
    %234 = tpu.dynamic_rotate %232 by %c64_i32_112 dim 1 : vector<8x128xf32>, i32 -> vector<8x128xf32>
    %c32_i32_113 = arith.constant 32 : i32
    %235 = tpu.dynamic_rotate %232 by %c32_i32_113 dim 1 : vector<8x128xf32>, i32 -> vector<8x128xf32>
    %236 = arith.mulf %233, %201 : vector<8x128xf32>
    %237 = arith.mulf %232, %234 : vector<8x128xf32>
    %238 = arith.addf %236, %237 : vector<8x128xf32>
    %239 = math.tanh %238 : vector<8x128xf32>
    %240 = arith.mulf %235, %239 : vector<8x128xf32>
    %241 = arith.index_cast %220 : i32 to index
    %c0_114 = arith.constant 0 : index
    %242 = vector.load %arg13[%241, %c0_114] : memref<64x128xf32, #tpu.memory_space<vmem>>, vector<8x128xf32>
    tpu.vector_store %arg13[%241, %c0_114], %240 {strides = array<i32>} : memref<64x128xf32, #tpu.memory_space<vmem>>, vector<8x128xf32>,
    %c1_i32_115 = arith.constant 1 : i32
    %c8_i32_116 = arith.constant 8 : i32
    %243 = arith.muli %c1_i32_115, %c8_i32_116 : i32
    %244 = tpu.assume_multiple %243, 8 : i32
    %245 = arith.index_cast %244 : i32 to index
    %c0_117 = arith.constant 0 : index
    %246 = vector.load %arg12[%245, %c0_117] : memref<64x128xf32, #tpu.memory_space<vmem>>, vector<8x128xf32>
    %c0_118 = arith.constant 0 : index
    %c0_119 = arith.constant 0 : index
    %247 = vector.load %arg5[%c0_118, %c0_119] : memref<128x128xf32, #tpu.memory_space<vmem>>, vector<128x128xf32>
    %cst_120 = arith.constant dense<0.000000e+00> : vector<8x128xf32>
    %248 = tpu.matmul %240, %247, %cst_120 {dimension_numbers = #tpu.dot_dimension_numbers<[1], [0], [0], [1], [0, 0, 1, 1], [], []>} : vector<8x128xf32>, vector<128x128xf32>, vector<8x128xf32> -> vector<8x128xf32>
    %249 = arith.addf %246, %248 : vector<8x128xf32>
    %250 = math.tanh %249 : vector<8x128xf32>
    %251 = arith.negf %249 : vector<8x128xf32>
    %252 = math.exp %251 : vector<8x128xf32>
    %cst_121 = arith.constant 1.000000e+00 : f32
    %253 = vector.broadcast %cst_121 : f32 to vector<8x128xf32>
    %254 = arith.addf %253, %252 : vector<8x128xf32>
    %255 = arith.divf %253, %254 : vector<8x128xf32>
    %256 = arith.select %5, %250, %255 : vector<8x128xi1>, vector<8x128xf32>
    %c96_i32_122 = arith.constant 96 : i32
    %257 = tpu.dynamic_rotate %256 by %c96_i32_122 dim 1 : vector<8x128xf32>, i32 -> vector<8x128xf32>
    %c64_i32_123 = arith.constant 64 : i32
    %258 = tpu.dynamic_rotate %256 by %c64_i32_123 dim 1 : vector<8x128xf32>, i32 -> vector<8x128xf32>
    %c32_i32_124 = arith.constant 32 : i32
    %259 = tpu.dynamic_rotate %256 by %c32_i32_124 dim 1 : vector<8x128xf32>, i32 -> vector<8x128xf32>
    %260 = arith.mulf %257, %238 : vector<8x128xf32>
    %261 = arith.mulf %256, %258 : vector<8x128xf32>
    %262 = arith.addf %260, %261 : vector<8x128xf32>
    %263 = math.tanh %262 : vector<8x128xf32>
    %264 = arith.mulf %259, %263 : vector<8x128xf32>
    %265 = arith.index_cast %244 : i32 to index
    %c0_125 = arith.constant 0 : index
    %266 = vector.load %arg13[%265, %c0_125] : memref<64x128xf32, #tpu.memory_space<vmem>>, vector<8x128xf32>
    tpu.vector_store %arg13[%265, %c0_125], %264 {strides = array<i32>} : memref<64x128xf32, #tpu.memory_space<vmem>>, vector<8x128xf32>,
    %c2_i32_126 = arith.constant 2 : i32
    %c8_i32_127 = arith.constant 8 : i32
    %267 = arith.muli %c2_i32_126, %c8_i32_127 : i32
    %268 = tpu.assume_multiple %267, 8 : i32
    %269 = arith.index_cast %268 : i32 to index
    %c0_128 = arith.constant 0 : index
    %270 = vector.load %arg12[%269, %c0_128] : memref<64x128xf32, #tpu.memory_space<vmem>>, vector<8x128xf32>
    %c0_129 = arith.constant 0 : index
    %c0_130 = arith.constant 0 : index
    %271 = vector.load %arg5[%c0_129, %c0_130] : memref<128x128xf32, #tpu.memory_space<vmem>>, vector<128x128xf32>
    %cst_131 = arith.constant dense<0.000000e+00> : vector<8x128xf32>
    %272 = tpu.matmul %264, %271, %cst_131 {dimension_numbers = #tpu.dot_dimension_numbers<[1], [0], [0], [1], [0, 0, 1, 1], [], []>} : vector<8x128xf32>, vector<128x128xf32>, vector<8x128xf32> -> vector<8x128xf32>
    %273 = arith.addf %270, %272 : vector<8x128xf32>
    %274 = math.tanh %273 : vector<8x128xf32>
    %275 = arith.negf %273 : vector<8x128xf32>
    %276 = math.exp %275 : vector<8x128xf32>
    %cst_132 = arith.constant 1.000000e+00 : f32
    %277 = vector.broadcast %cst_132 : f32 to vector<8x128xf32>
    %278 = arith.addf %277, %276 : vector<8x128xf32>
    %279 = arith.divf %277, %278 : vector<8x128xf32>
    %280 = arith.select %5, %274, %279 : vector<8x128xi1>, vector<8x128xf32>
    %c96_i32_133 = arith.constant 96 : i32
    %281 = tpu.dynamic_rotate %280 by %c96_i32_133 dim 1 : vector<8x128xf32>, i32 -> vector<8x128xf32>
    %c64_i32_134 = arith.constant 64 : i32
    %282 = tpu.dynamic_rotate %280 by %c64_i32_134 dim 1 : vector<8x128xf32>, i32 -> vector<8x128xf32>
    %c32_i32_135 = arith.constant 32 : i32
    %283 = tpu.dynamic_rotate %280 by %c32_i32_135 dim 1 : vector<8x128xf32>, i32 -> vector<8x128xf32>
    %284 = arith.mulf %281, %262 : vector<8x128xf32>
    %285 = arith.mulf %280, %282 : vector<8x128xf32>
    %286 = arith.addf %284, %285 : vector<8x128xf32>
    %287 = math.tanh %286 : vector<8x128xf32>
    %288 = arith.mulf %283, %287 : vector<8x128xf32>
    %289 = arith.index_cast %268 : i32 to index
    %c0_136 = arith.constant 0 : index
    %290 = vector.load %arg13[%289, %c0_136] : memref<64x128xf32, #tpu.memory_space<vmem>>, vector<8x128xf32>
    tpu.vector_store %arg13[%289, %c0_136], %288 {strides = array<i32>} : memref<64x128xf32, #tpu.memory_space<vmem>>, vector<8x128xf32>,
    %c3_i32_137 = arith.constant 3 : i32
    %c8_i32_138 = arith.constant 8 : i32
    %291 = arith.muli %c3_i32_137, %c8_i32_138 : i32
    %292 = tpu.assume_multiple %291, 8 : i32
    %293 = arith.index_cast %292 : i32 to index
    %c0_139 = arith.constant 0 : index
    %294 = vector.load %arg12[%293, %c0_139] : memref<64x128xf32, #tpu.memory_space<vmem>>, vector<8x128xf32>
    %c0_140 = arith.constant 0 : index
    %c0_141 = arith.constant 0 : index
    %295 = vector.load %arg5[%c0_140, %c0_141] : memref<128x128xf32, #tpu.memory_space<vmem>>, vector<128x128xf32>
    %cst_142 = arith.constant dense<0.000000e+00> : vector<8x128xf32>
    %296 = tpu.matmul %288, %295, %cst_142 {dimension_numbers = #tpu.dot_dimension_numbers<[1], [0], [0], [1], [0, 0, 1, 1], [], []>} : vector<8x128xf32>, vector<128x128xf32>, vector<8x128xf32> -> vector<8x128xf32>
    %297 = arith.addf %294, %296 : vector<8x128xf32>
    %298 = math.tanh %297 : vector<8x128xf32>
    %299 = arith.negf %297 : vector<8x128xf32>
    %300 = math.exp %299 : vector<8x128xf32>
    %cst_143 = arith.constant 1.000000e+00 : f32
    %301 = vector.broadcast %cst_143 : f32 to vector<8x128xf32>
    %302 = arith.addf %301, %300 : vector<8x128xf32>
    %303 = arith.divf %301, %302 : vector<8x128xf32>
    %304 = arith.select %5, %298, %303 : vector<8x128xi1>, vector<8x128xf32>
    %c96_i32_144 = arith.constant 96 : i32
    %305 = tpu.dynamic_rotate %304 by %c96_i32_144 dim 1 : vector<8x128xf32>, i32 -> vector<8x128xf32>
    %c64_i32_145 = arith.constant 64 : i32
    %306 = tpu.dynamic_rotate %304 by %c64_i32_145 dim 1 : vector<8x128xf32>, i32 -> vector<8x128xf32>
    %c32_i32_146 = arith.constant 32 : i32
    %307 = tpu.dynamic_rotate %304 by %c32_i32_146 dim 1 : vector<8x128xf32>, i32 -> vector<8x128xf32>
    %308 = arith.mulf %305, %286 : vector<8x128xf32>
    %309 = arith.mulf %304, %306 : vector<8x128xf32>
    %310 = arith.addf %308, %309 : vector<8x128xf32>
    %311 = math.tanh %310 : vector<8x128xf32>
    %312 = arith.mulf %307, %311 : vector<8x128xf32>
    %313 = arith.index_cast %292 : i32 to index
    %c0_147 = arith.constant 0 : index
    %314 = vector.load %arg13[%313, %c0_147] : memref<64x128xf32, #tpu.memory_space<vmem>>, vector<8x128xf32>
    tpu.vector_store %arg13[%313, %c0_147], %312 {strides = array<i32>} : memref<64x128xf32, #tpu.memory_space<vmem>>, vector<8x128xf32>,
    %c4_i32_148 = arith.constant 4 : i32
    %c8_i32_149 = arith.constant 8 : i32
    %315 = arith.muli %c4_i32_148, %c8_i32_149 : i32
    %316 = tpu.assume_multiple %315, 8 : i32
    %317 = arith.index_cast %316 : i32 to index
    %c0_150 = arith.constant 0 : index
    %318 = vector.load %arg12[%317, %c0_150] : memref<64x128xf32, #tpu.memory_space<vmem>>, vector<8x128xf32>
    %c0_151 = arith.constant 0 : index
    %c0_152 = arith.constant 0 : index
    %319 = vector.load %arg5[%c0_151, %c0_152] : memref<128x128xf32, #tpu.memory_space<vmem>>, vector<128x128xf32>
    %cst_153 = arith.constant dense<0.000000e+00> : vector<8x128xf32>
    %320 = tpu.matmul %312, %319, %cst_153 {dimension_numbers = #tpu.dot_dimension_numbers<[1], [0], [0], [1], [0, 0, 1, 1], [], []>} : vector<8x128xf32>, vector<128x128xf32>, vector<8x128xf32> -> vector<8x128xf32>
    %321 = arith.addf %318, %320 : vector<8x128xf32>
    %322 = math.tanh %321 : vector<8x128xf32>
    %323 = arith.negf %321 : vector<8x128xf32>
    %324 = math.exp %323 : vector<8x128xf32>
    %cst_154 = arith.constant 1.000000e+00 : f32
    %325 = vector.broadcast %cst_154 : f32 to vector<8x128xf32>
    %326 = arith.addf %325, %324 : vector<8x128xf32>
    %327 = arith.divf %325, %326 : vector<8x128xf32>
    %328 = arith.select %5, %322, %327 : vector<8x128xi1>, vector<8x128xf32>
    %c96_i32_155 = arith.constant 96 : i32
    %329 = tpu.dynamic_rotate %328 by %c96_i32_155 dim 1 : vector<8x128xf32>, i32 -> vector<8x128xf32>
    %c64_i32_156 = arith.constant 64 : i32
    %330 = tpu.dynamic_rotate %328 by %c64_i32_156 dim 1 : vector<8x128xf32>, i32 -> vector<8x128xf32>
    %c32_i32_157 = arith.constant 32 : i32
    %331 = tpu.dynamic_rotate %328 by %c32_i32_157 dim 1 : vector<8x128xf32>, i32 -> vector<8x128xf32>
    %332 = arith.mulf %329, %310 : vector<8x128xf32>
    %333 = arith.mulf %328, %330 : vector<8x128xf32>
    %334 = arith.addf %332, %333 : vector<8x128xf32>
    %335 = math.tanh %334 : vector<8x128xf32>
    %336 = arith.mulf %331, %335 : vector<8x128xf32>
    %337 = arith.index_cast %316 : i32 to index
    %c0_158 = arith.constant 0 : index
    %338 = vector.load %arg13[%337, %c0_158] : memref<64x128xf32, #tpu.memory_space<vmem>>, vector<8x128xf32>
    tpu.vector_store %arg13[%337, %c0_158], %336 {strides = array<i32>} : memref<64x128xf32, #tpu.memory_space<vmem>>, vector<8x128xf32>,
    %c5_i32_159 = arith.constant 5 : i32
    %c8_i32_160 = arith.constant 8 : i32
    %339 = arith.muli %c5_i32_159, %c8_i32_160 : i32
    %340 = tpu.assume_multiple %339, 8 : i32
    %341 = arith.index_cast %340 : i32 to index
    %c0_161 = arith.constant 0 : index
    %342 = vector.load %arg12[%341, %c0_161] : memref<64x128xf32, #tpu.memory_space<vmem>>, vector<8x128xf32>
    %c0_162 = arith.constant 0 : index
    %c0_163 = arith.constant 0 : index
    %343 = vector.load %arg5[%c0_162, %c0_163] : memref<128x128xf32, #tpu.memory_space<vmem>>, vector<128x128xf32>
    %cst_164 = arith.constant dense<0.000000e+00> : vector<8x128xf32>
    %344 = tpu.matmul %336, %343, %cst_164 {dimension_numbers = #tpu.dot_dimension_numbers<[1], [0], [0], [1], [0, 0, 1, 1], [], []>} : vector<8x128xf32>, vector<128x128xf32>, vector<8x128xf32> -> vector<8x128xf32>
    %345 = arith.addf %342, %344 : vector<8x128xf32>
    %346 = math.tanh %345 : vector<8x128xf32>
    %347 = arith.negf %345 : vector<8x128xf32>
    %348 = math.exp %347 : vector<8x128xf32>
    %cst_165 = arith.constant 1.000000e+00 : f32
    %349 = vector.broadcast %cst_165 : f32 to vector<8x128xf32>
    %350 = arith.addf %349, %348 : vector<8x128xf32>
    %351 = arith.divf %349, %350 : vector<8x128xf32>
    %352 = arith.select %5, %346, %351 : vector<8x128xi1>, vector<8x128xf32>
    %c96_i32_166 = arith.constant 96 : i32
    %353 = tpu.dynamic_rotate %352 by %c96_i32_166 dim 1 : vector<8x128xf32>, i32 -> vector<8x128xf32>
    %c64_i32_167 = arith.constant 64 : i32
    %354 = tpu.dynamic_rotate %352 by %c64_i32_167 dim 1 : vector<8x128xf32>, i32 -> vector<8x128xf32>
    %c32_i32_168 = arith.constant 32 : i32
    %355 = tpu.dynamic_rotate %352 by %c32_i32_168 dim 1 : vector<8x128xf32>, i32 -> vector<8x128xf32>
    %356 = arith.mulf %353, %334 : vector<8x128xf32>
    %357 = arith.mulf %352, %354 : vector<8x128xf32>
    %358 = arith.addf %356, %357 : vector<8x128xf32>
    %359 = math.tanh %358 : vector<8x128xf32>
    %360 = arith.mulf %355, %359 : vector<8x128xf32>
    %361 = arith.index_cast %340 : i32 to index
    %c0_169 = arith.constant 0 : index
    %362 = vector.load %arg13[%361, %c0_169] : memref<64x128xf32, #tpu.memory_space<vmem>>, vector<8x128xf32>
    tpu.vector_store %arg13[%361, %c0_169], %360 {strides = array<i32>} : memref<64x128xf32, #tpu.memory_space<vmem>>, vector<8x128xf32>,
    %c6_i32_170 = arith.constant 6 : i32
    %c8_i32_171 = arith.constant 8 : i32
    %363 = arith.muli %c6_i32_170, %c8_i32_171 : i32
    %364 = tpu.assume_multiple %363, 8 : i32
    %365 = arith.index_cast %364 : i32 to index
    %c0_172 = arith.constant 0 : index
    %366 = vector.load %arg12[%365, %c0_172] : memref<64x128xf32, #tpu.memory_space<vmem>>, vector<8x128xf32>
    %c0_173 = arith.constant 0 : index
    %c0_174 = arith.constant 0 : index
    %367 = vector.load %arg5[%c0_173, %c0_174] : memref<128x128xf32, #tpu.memory_space<vmem>>, vector<128x128xf32>
    %cst_175 = arith.constant dense<0.000000e+00> : vector<8x128xf32>
    %368 = tpu.matmul %360, %367, %cst_175 {dimension_numbers = #tpu.dot_dimension_numbers<[1], [0], [0], [1], [0, 0, 1, 1], [], []>} : vector<8x128xf32>, vector<128x128xf32>, vector<8x128xf32> -> vector<8x128xf32>
    %369 = arith.addf %366, %368 : vector<8x128xf32>
    %370 = math.tanh %369 : vector<8x128xf32>
    %371 = arith.negf %369 : vector<8x128xf32>
    %372 = math.exp %371 : vector<8x128xf32>
    %cst_176 = arith.constant 1.000000e+00 : f32
    %373 = vector.broadcast %cst_176 : f32 to vector<8x128xf32>
    %374 = arith.addf %373, %372 : vector<8x128xf32>
    %375 = arith.divf %373, %374 : vector<8x128xf32>
    %376 = arith.select %5, %370, %375 : vector<8x128xi1>, vector<8x128xf32>
    %c96_i32_177 = arith.constant 96 : i32
    %377 = tpu.dynamic_rotate %376 by %c96_i32_177 dim 1 : vector<8x128xf32>, i32 -> vector<8x128xf32>
    %c64_i32_178 = arith.constant 64 : i32
    %378 = tpu.dynamic_rotate %376 by %c64_i32_178 dim 1 : vector<8x128xf32>, i32 -> vector<8x128xf32>
    %c32_i32_179 = arith.constant 32 : i32
    %379 = tpu.dynamic_rotate %376 by %c32_i32_179 dim 1 : vector<8x128xf32>, i32 -> vector<8x128xf32>
    %380 = arith.mulf %377, %358 : vector<8x128xf32>
    %381 = arith.mulf %376, %378 : vector<8x128xf32>
    %382 = arith.addf %380, %381 : vector<8x128xf32>
    %383 = math.tanh %382 : vector<8x128xf32>
    %384 = arith.mulf %379, %383 : vector<8x128xf32>
    %385 = arith.index_cast %364 : i32 to index
    %c0_180 = arith.constant 0 : index
    %386 = vector.load %arg13[%385, %c0_180] : memref<64x128xf32, #tpu.memory_space<vmem>>, vector<8x128xf32>
    tpu.vector_store %arg13[%385, %c0_180], %384 {strides = array<i32>} : memref<64x128xf32, #tpu.memory_space<vmem>>, vector<8x128xf32>,
    %c7_i32_181 = arith.constant 7 : i32
    %c8_i32_182 = arith.constant 8 : i32
    %387 = arith.muli %c7_i32_181, %c8_i32_182 : i32
    %388 = tpu.assume_multiple %387, 8 : i32
    %389 = arith.index_cast %388 : i32 to index
    %c0_183 = arith.constant 0 : index
    %390 = vector.load %arg12[%389, %c0_183] : memref<64x128xf32, #tpu.memory_space<vmem>>, vector<8x128xf32>
    %c0_184 = arith.constant 0 : index
    %c0_185 = arith.constant 0 : index
    %391 = vector.load %arg5[%c0_184, %c0_185] : memref<128x128xf32, #tpu.memory_space<vmem>>, vector<128x128xf32>
    %cst_186 = arith.constant dense<0.000000e+00> : vector<8x128xf32>
    %392 = tpu.matmul %384, %391, %cst_186 {dimension_numbers = #tpu.dot_dimension_numbers<[1], [0], [0], [1], [0, 0, 1, 1], [], []>} : vector<8x128xf32>, vector<128x128xf32>, vector<8x128xf32> -> vector<8x128xf32>
    %393 = arith.addf %390, %392 : vector<8x128xf32>
    %394 = math.tanh %393 : vector<8x128xf32>
    %395 = arith.negf %393 : vector<8x128xf32>
    %396 = math.exp %395 : vector<8x128xf32>
    %cst_187 = arith.constant 1.000000e+00 : f32
    %397 = vector.broadcast %cst_187 : f32 to vector<8x128xf32>
    %398 = arith.addf %397, %396 : vector<8x128xf32>
    %399 = arith.divf %397, %398 : vector<8x128xf32>
    %400 = arith.select %5, %394, %399 : vector<8x128xi1>, vector<8x128xf32>
    %c96_i32_188 = arith.constant 96 : i32
    %401 = tpu.dynamic_rotate %400 by %c96_i32_188 dim 1 : vector<8x128xf32>, i32 -> vector<8x128xf32>
    %c64_i32_189 = arith.constant 64 : i32
    %402 = tpu.dynamic_rotate %400 by %c64_i32_189 dim 1 : vector<8x128xf32>, i32 -> vector<8x128xf32>
    %c32_i32_190 = arith.constant 32 : i32
    %403 = tpu.dynamic_rotate %400 by %c32_i32_190 dim 1 : vector<8x128xf32>, i32 -> vector<8x128xf32>
    %404 = arith.mulf %401, %382 : vector<8x128xf32>
    %405 = arith.mulf %400, %402 : vector<8x128xf32>
    %406 = arith.addf %404, %405 : vector<8x128xf32>
    %407 = math.tanh %406 : vector<8x128xf32>
    %408 = arith.mulf %403, %407 : vector<8x128xf32>
    %409 = arith.index_cast %388 : i32 to index
    %c0_191 = arith.constant 0 : index
    %410 = vector.load %arg13[%409, %c0_191] : memref<64x128xf32, #tpu.memory_space<vmem>>, vector<8x128xf32>
    tpu.vector_store %arg13[%409, %c0_191], %408 {strides = array<i32>} : memref<64x128xf32, #tpu.memory_space<vmem>>, vector<8x128xf32>,
    %c8_i32_192 = arith.constant 8 : i32
    %c0_193 = arith.constant 0 : index
    %c0_194 = arith.constant 0 : index
    %411 = vector.load %arg13[%c0_193, %c0_194] : memref<64x128xf32, #tpu.memory_space<vmem>>, vector<64x128xf32>
    %c0_195 = arith.constant 0 : index
    %c0_196 = arith.constant 0 : index
    %412 = vector.load %arg7[%c0_195, %c0_196] : memref<64x128xf32, #tpu.memory_space<vmem>>, vector<64x128xf32>
    %413 = arith.mulf %411, %412 : vector<64x128xf32>
    %c0_197 = arith.constant 0 : index
    %c0_198 = arith.constant 0 : index
    %414 = vector.load %arg8[%c0_197, %c0_198] : memref<64x128xf32, #tpu.memory_space<vmem>>, vector<64x128xf32>
    %415 = arith.addf %413, %414 : vector<64x128xf32>
    %c0_199 = arith.constant 0 : index
    %c0_200 = arith.constant 0 : index
    %416 = vector.load %arg13[%c0_199, %c0_200] : memref<64x128xf32, #tpu.memory_space<vmem>>, vector<64x128xf32>
    tpu.vector_store %arg13[%c0_199, %c0_200], %415 {strides = array<i32>} : memref<64x128xf32, #tpu.memory_space<vmem>>, vector<64x128xf32>,
    %c56 = arith.constant 56 : index
    %c0_201 = arith.constant 0 : index
    %417 = vector.load %arg13[%c56, %c0_201] : memref<64x128xf32, #tpu.memory_space<vmem>>, vector<8x128xf32>
    %c0_202 = arith.constant 0 : index
    %c0_203 = arith.constant 0 : index
    %418 = vector.load %arg9[%c0_202, %c0_203] : memref<128x2xf32, #tpu.memory_space<vmem>>, vector<128x2xf32>
    %cst_204 = arith.constant dense<0.000000e+00> : vector<8x2xf32>
    %419 = tpu.matmul %417, %418, %cst_204 {dimension_numbers = #tpu.dot_dimension_numbers<[1], [0], [0], [1], [0, 0, 1, 1], [], []>} : vector<8x128xf32>, vector<128x2xf32>, vector<8x2xf32> -> vector<8x2xf32>
    %c0_205 = arith.constant 0 : index
    %c0_206 = arith.constant 0 : index
    %420 = vector.load %arg10[%c0_205, %c0_206] : memref<1x2xf32, #tpu.memory_space<vmem>>, vector<1x2xf32>
    %421 = vector.broadcast %420 : vector<1x2xf32> to vector<8x2xf32>
    %422 = arith.addf %419, %421 : vector<8x2xf32>
    %c0_207 = arith.constant 0 : index
    %c0_208 = arith.constant 0 : index
    %423 = vector.load %arg11[%c0_207, %c0_208] : memref<8x2xf32, #tpu.memory_space<vmem>>, vector<8x2xf32>
    tpu.vector_store %arg11[%c0_207, %c0_208], %422 {strides = array<i32>} : memref<8x2xf32, #tpu.memory_space<vmem>>, vector<8x2xf32>,
    return
  }
}

</mosaic_0001>

<llo_original>
// kernel: dalstm_forward.1
$region0: #{dalstm_forward.1}
  #allocation0 [shape = 'u32[]', space=smem, size = 0x4, offset = 0x4, fixed_abs, tag = 'smem constant byte address 0x4 - core index']
  #allocation1 [shape = 'u32[144,128]{1,0:T(1,128)}', space=vmem, size = 0x12000, scoped, tag = 'internal scratch']
  #allocation2 [shape = 'f32[64,128]{1,0:T(8,128)}', space=vmem, size = 0x8000, scoped, tag = 'scratch operand']
  #allocation3 [shape = 'f32[64,128]{1,0:T(8,128)}', space=vmem, size = 0x8000, scoped, tag = 'scratch operand']
  %s0 = inlined_call_operand.vmem [shape: f32[64,8], index: 0, kind: input, shape index: {}]
  %s1 = inlined_call_operand.vmem [shape: f32[8,128], index: 1, kind: input, shape index: {}]
  %s2 = inlined_call_operand.vmem [shape: f32[128,128], index: 2, kind: input, shape index: {}]
  %s3 = inlined_call_operand.vmem [shape: f32[1,128], index: 3, kind: input, shape index: {}]
  %s4 = inlined_call_operand.vmem [shape: f32[128,128], index: 4, kind: input, shape index: {}]
  %s5 = inlined_call_operand.hbm [shape: f32[128,128], index: 5, kind: input, shape index: {}]
  %s6 = inlined_call_operand.vmem [shape: f32[1,128], index: 6, kind: input, shape index: {}]
  %s7 = inlined_call_operand.hbm [shape: f32[64,128], index: 7, kind: input, shape index: {}]
  %s8 = inlined_call_operand.hbm [shape: f32[64,128], index: 8, kind: input, shape index: {}]
  %s9 = inlined_call_operand.vmem [shape: f32[128,2], index: 9, kind: input, shape index: {}]
  %s10 = inlined_call_operand.vmem [shape: f32[1,2], index: 10, kind: input, shape index: {}]
  %s11 = inlined_call_operand.vmem [shape: f32[8,2], index: 11, kind: output, shape index: {}]
  %s12 = sld [smem:[#allocation0]]
  $region66: #{dalstm_forward.1} parent=0
    _
  %s14 = ssub.s32 1, %s12
  %s15 = scalar_select 0, %s14, %s12
  $region1: #{dalstm_forward.1} parent=0
    #allocation4 [shape = 'u8[65536]{0}', space=vmem, size = 0x10000, scoped, tag = 'input window, operand 5, single buffered']
    #allocation5 [shape = 's32[1]{0}', space=sflag, size = 0x4, scoped, tag = 'scoped memory for dalstm_forward.1']
    #allocation6 [shape = 'u8[32768]{0}', space=vmem, size = 0x8000, scoped, tag = 'input window, operand 7, single buffered']
    #allocation7 [shape = 's32[1]{0}', space=sflag, size = 0x4, scoped, tag = 'scoped memory for dalstm_forward.1']
    #allocation8 [shape = 'u8[32768]{0}', space=vmem, size = 0x8000, scoped, tag = 'input window, operand 8, single buffered']
    %16 = vsyncpa [#allocation5], 0
    %17 = vsyncpa [#allocation7], 0
    // Predicated region
    $region2: #{dalstm_forward.1} parent=1 // pred_check
      _
    $region3: #{dalstm_forward.1} parent=1 // pred_check_branch
      %19 = sbr.rel (0) target = $region5
    $region4: #{dalstm_forward.1} parent=1 // pred_region
      _
    $region5: #{dalstm_forward.1} parent=1 // pred_fallthru
      _
    // Predicated region
    $region6: #{dalstm_forward.1} parent=1 // pred_check
      _
    $region7: #{dalstm_forward.1} parent=1 // pred_check_branch
      %21 = sbr.rel (0) target = $region9
    $region8: #{dalstm_forward.1} parent=1 // pred_region
      _
    $region9: #{dalstm_forward.1} parent=1 // pred_fallthru
      _
    // Predicated region
    $region10: #{dalstm_forward.1} parent=1 // pred_check
      _
    $region11: #{dalstm_forward.1} parent=1 // pred_check_branch
      %23 = sbr.rel (0) target = $region13
    $region12: #{dalstm_forward.1} parent=1 // pred_region
      _
    $region13: #{dalstm_forward.1} parent=1 // pred_fallthru
      _
    // Predicated region
    $region14: #{dalstm_forward.1} parent=1 // pred_check
      _
    $region15: #{dalstm_forward.1} parent=1 // pred_check_branch
      %25 = sbr.rel (0) target = $region17
    $region16: #{dalstm_forward.1} parent=1 // pred_region
      _
    $region17: #{dalstm_forward.1} parent=1 // pred_fallthru
      _
    // Predicated region
    $region18: #{dalstm_forward.1} parent=1 // pred_check
      _
    $region19: #{dalstm_forward.1} parent=1 // pred_check_branch
      %27 = sbr.rel (0) target = $region21
    $region20: #{dalstm_forward.1} parent=1 // pred_region
      _
    $region21: #{dalstm_forward.1} parent=1 // pred_fallthru
      _
    // Predicated region
    $region22: #{dalstm_forward.1} parent=1 // pred_check
      _
    $region23: #{dalstm_forward.1} parent=1 // pred_check_branch
      %29 = sbr.rel (0) target = $region25
    $region24: #{dalstm_forward.1} parent=1 // pred_region
      %s31 = ssub.s32 2048, 2048
      %32 = vsyncadd [#allocation5], %s31
      %s33 = sshll.u32 [#allocation4], 4
      %s34 = int_to_ptr.vmem [resolvable:$true] %s33
      %39 = dma.hbm_to_vmem [thread:$0]  %s5, 2048, %s34, [#allocation5], 128, 128, 8
    $region25: #{dalstm_forward.1} parent=1 // pred_fallthru
      _
    // Predicated region
    $region26: #{dalstm_forward.1} parent=1 // pred_check
      _
    $region27: #{dalstm_forward.1} parent=1 // pred_check_branch
      %41 = sbr.rel (0) target = $region29
    $region28: #{dalstm_forward.1} parent=1 // pred_region
      _
    $region29: #{dalstm_forward.1} parent=1 // pred_fallthru
      _
    // Predicated region
    $region30: #{dalstm_forward.1} parent=1 // pred_check
      _
    $region31: #{dalstm_forward.1} parent=1 // pred_check_branch
      %43 = sbr.rel (0) target = $region33
    $region32: #{dalstm_forward.1} parent=1 // pred_region
      %s45 = ssub.s32 1024, 1024
      %46 = vsyncadd [#allocation7], %s45
      %s47 = sshll.u32 [#allocation6], 4
      %s48 = int_to_ptr.vmem [resolvable:$true] %s47
      %53 = dma.hbm_to_vmem [thread:$0]  %s7, 1024, %s48, [#allocation7], 128, 128, 8
    $region33: #{dalstm_forward.1} parent=1 // pred_fallthru
      _
    // Predicated region
    $region34: #{dalstm_forward.1} parent=1 // pred_check
      _
    $region35: #{dalstm_forward.1} parent=1 // pred_check_branch
      %55 = sbr.rel (0) target = $region37
    $region36: #{dalstm_forward.1} parent=1 // pred_region
      %s57 = ssub.s32 1024, 1024
      %58 = vsyncadd [#allocation7], %s57
      %s59 = sshll.u32 [#allocation8], 4
      %s60 = int_to_ptr.vmem [resolvable:$true] %s59
      %65 = dma.hbm_to_vmem [thread:$0]  %s8, 1024, %s60, [#allocation7], 128, 128, 8
    $region37: #{dalstm_forward.1} parent=1 // pred_fallthru
      _
    // Predicated region
    $region38: #{dalstm_forward.1} parent=1 // pred_check
      _
    $region39: #{dalstm_forward.1} parent=1 // pred_check_branch
      %67 = sbr.rel (0) target = $region41
    $region40: #{dalstm_forward.1} parent=1 // pred_region
      _
    $region41: #{dalstm_forward.1} parent=1 // pred_fallthru
      _
    // Predicated region
    $region42: #{dalstm_forward.1} parent=1 // pred_check
      _
    $region43: #{dalstm_forward.1} parent=1 // pred_check_branch
      %69 = sbr.rel (0) target = $region45
    $region44: #{dalstm_forward.1} parent=1 // pred_region
      _
    $region45: #{dalstm_forward.1} parent=1 // pred_fallthru
      _
    // Predicated region
    $region46: #{dalstm_forward.1} parent=1 // pred_check
      _
    $region47: #{dalstm_forward.1} parent=1 // pred_check_branch
      %71 = sbr.rel (0) target = $region49
    $region48: #{dalstm_forward.1} parent=1 // pred_region
      %72 = dma.done [#allocation5], 2048
    $region49: #{dalstm_forward.1} parent=1 // pred_fallthru
      _
    // Predicated region
    $region50: #{dalstm_forward.1} parent=1 // pred_check
      _
    $region51: #{dalstm_forward.1} parent=1 // pred_check_branch
      %74 = sbr.rel (0) target = $region53
    $region52: #{dalstm_forward.1} parent=1 // pred_region
      %75 = dma.done [#allocation7], 1024
    $region53: #{dalstm_forward.1} parent=1 // pred_fallthru
      _
    // Predicated region
    $region54: #{dalstm_forward.1} parent=1 // pred_check
      _
    $region55: #{dalstm_forward.1} parent=1 // pred_check_branch
      %77 = sbr.rel (0) target = $region57
    $region56: #{dalstm_forward.1} parent=1 // pred_region
      %78 = dma.done [#allocation7], 1024
    $region57: #{dalstm_forward.1} parent=1 // pred_fallthru
      _
    %v79 = vlaneseq
    %v80 = vand.u32 %v79, 127
    %vm81 = vcmp.ge.s32.totalorder %v80, 64
    %vm82 = vcmp.lt.s32.totalorder %v80, 96
    %vm83 = vmand %vm81, %vm82
    %v84 = vld [vmem:[%s0] sm:$0xff]
    %v85 = vld [vmem:[%s0 + $0x8] sm:$0xff]
    %v86 = vld [vmem:[%s0 + $0x10] sm:$0xff]
    %v87 = vld [vmem:[%s0 + $0x18] sm:$0xff]
    %v88 = vld [vmem:[%s0 + $0x20] sm:$0xff]
    %v89 = vld [vmem:[%s0 + $0x28] sm:$0xff]
    %v90 = vld [vmem:[%s0 + $0x30] sm:$0xff]
    %v91 = vld [vmem:[%s0 + $0x38] sm:$0xff]
    %v92 = vld [vmem:[%s1] sm:$0xff]
    %v93 = vld [vmem:[%s3] sm:$0x1]
    %v95 = vlaneseq
    %v96 = vshrl.u32 %v95, 7
    %v97 = vsub.s32 0, %v96
    %v98 = vrot.slane %v93, %v97
    %vm100 = vcmask 64512
    %v102 = vsel %vm100, %v84, 0
    %v105 = vsel %vm100, %v85, 0
    %v108 = vsel %vm100, %v86, 0
    %v111 = vsel %vm100, %v87, 0
    %v114 = vsel %vm100, %v88, 0
    %v117 = vsel %vm100, %v89, 0
    %v120 = vsel %vm100, %v90, 0
    %v123 = vsel %vm100, %v91, 0
    %125 = vmatprep.subr.mxu0 0.0
    %126 = vmatpush1.msra.mxu0 0.0
    %127 = vmatprep.subr.mxu0 0.0
    %128 = vmatpush1.msra.mxu0 0.0
    %129 = vmatprep.subr.mxu0 0.0
    %130 = vmatpush1.msra.mxu0 0.0
    %131 = vmatprep.subr.mxu0 0.0
    %132 = vmatpush1.msra.mxu0 0.0
    %133 = vmatprep.subr.mxu0 0.0
    %134 = vmatpush1.msra.mxu0 0.0
    %135 = vmatprep.subr.mxu0 0.0
    %136 = vmatpush1.msra.mxu0 0.0
    %137 = vmatprep.subr.mxu0 0.0
    %138 = vmatpush1.msra.mxu0 0.0
    %139 = vmatprep.subr.mxu0 0.0
    %140 = vmatpush1.msra.mxu0 0.0
    %141 = vmatprep.subr.mxu0 0.0
    %142 = vmatpush1.msra.mxu0 0.0
    %143 = vmatprep.subr.mxu0 0.0
    %144 = vmatpush1.msra.mxu0 0.0
    %145 = vmatprep.subr.mxu0 0.0
    %146 = vmatpush1.msra.mxu0 0.0
    %147 = vmatprep.subr.mxu0 0.0
    %148 = vmatpush1.msra.mxu0 0.0
    %149 = vmatprep.subr.mxu0 0.0
    %150 = vmatpush1.msra.mxu0 0.0
    %151 = vmatprep.subr.mxu0 0.0
    %152 = vmatpush1.msra.mxu0 0.0
    %153 = vmatprep.subr.mxu0 0.0
    %154 = vmatpush1.msra.mxu0 0.0
    %155 = vmatprep.subr.mxu0 0.0
    %156 = vmatpush1.msra.mxu0 %v92
    %157 = vmatprep.subr.mxu0 0.0
    %158 = vmatpush2.msra.mxu0 0.0
    %159 = vmatprep.subr.mxu0 0.0
    %160 = vmatpush2.msra.mxu0 0.0
    %161 = vmatprep.subr.mxu0 0.0
    %162 = vmatpush2.msra.mxu0 0.0
    %163 = vmatprep.subr.mxu0 0.0
    %164 = vmatpush2.msra.mxu0 0.0
    %165 = vmatprep.subr.mxu0 0.0
    %166 = vmatpush2.msra.mxu0 0.0
    %167 = vmatprep.subr.mxu0 0.0
    %168 = vmatpush2.msra.mxu0 0.0
    %169 = vmatprep.subr.mxu0 0.0
    %170 = vmatpush2.msra.mxu0 0.0
    %171 = vmatprep.subr.mxu0 0.0
    %172 = vmatpush2.msra.mxu0 0.0
    %173 = vmatprep.subr.mxu0 0.0
    %174 = vmatpush2.msra.mxu0 0.0
    %175 = vmatprep.subr.mxu0 0.0
    %176 = vmatpush2.msra.mxu0 0.0
    %177 = vmatprep.subr.mxu0 0.0
    %178 = vmatpush2.msra.mxu0 0.0
    %179 = vmatprep.subr.mxu0 0.0
    %180 = vmatpush2.msra.mxu0 0.0
    %181 = vmatprep.subr.mxu0 0.0
    %182 = vmatpush2.msra.mxu0 0.0
    %183 = vmatprep.subr.mxu0 0.0
    %184 = vmatpush2.msra.mxu0 0.0
    %185 = vmatprep.subr.mxu0 0.0
    %186 = vmatpush2.msra.mxu0 0.0
    %187 = vmatprep.subr.mxu0 0.0
    %188 = vmatpush2.msra.mxu0 0.0
    %189 = vmatprep.mubr.f32.mxu0 0.0
    %190 = vmatmul.mubr.f32.gmra.mxu0 %v102
    %v191 = vpop.f32.mrf.mxu0
    %v192 = vadd.f32 %v98, %v191
    %v193 = vpop.f32.mrf.mxu0
    %194 = vmatprep.mubr.f32.mxu0 0.0
    %195 = vmatmul.mubr.f32.gmra.mxu0 %v105
    %v196 = vpop.f32.mrf.mxu0
    %v197 = vadd.f32 %v98, %v196
    %v198 = vpop.f32.mrf.mxu0
    %199 = vmatprep.mubr.f32.mxu0 0.0
    %200 = vmatmul.mubr.f32.gmra.mxu0 %v108
    %v201 = vpop.f32.mrf.mxu0
    %v202 = vadd.f32 %v98, %v201
    %v203 = vpop.f32.mrf.mxu0
    %204 = vmatprep.mubr.f32.mxu0 0.0
    %205 = vmatmul.mubr.f32.gmra.mxu0 %v111
    %v206 = vpop.f32.mrf.mxu0
    %v207 = vadd.f32 %v98, %v206
    %v208 = vpop.f32.mrf.mxu0
    %209 = vmatprep.mubr.f32.mxu0 0.0
    %210 = vmatmul.mubr.f32.gmra.mxu0 %v114
    %v211 = vpop.f32.mrf.mxu0
    %v212 = vadd.f32 %v98, %v211
    %v213 = vpop.f32.mrf.mxu0
    %214 = vmatprep.mubr.f32.mxu0 0.0
    %215 = vmatmul.mubr.f32.gmra.mxu0 %v117
    %v216 = vpop.f32.mrf.mxu0
    %v217 = vadd.f32 %v98, %v216
    %v218 = vpop.f32.mrf.mxu0
    %219 = vmatprep.mubr.f32.mxu0 0.0
    %220 = vmatmul.mubr.f32.gmra.mxu0 %v120
    %v221 = vpop.f32.mrf.mxu0
    %v222 = vadd.f32 %v98, %v221
    %v223 = vpop.f32.mrf.mxu0
    %224 = vmatprep.mubr.f32.mxu0 0.0
    %225 = vmatmul.mubr.f32.gmra.mxu0 %v123
    %v226 = vpop.f32.mrf.mxu0
    %v227 = vadd.f32 %v98, %v226
    %v228 = vpop.f32.mrf.mxu0
    %229 = vdwg.mxu0
    %230 = vst [vmem:[#allocation2] sm:$0xff] %v192
    %231 = vst [vmem:[#allocation2 + $0x8] sm:$0xff] %v197
    %232 = vst [vmem:[#allocation2 + $0x10] sm:$0xff] %v202
    %233 = vst [vmem:[#allocation2 + $0x18] sm:$0xff] %v207
    %234 = vst [vmem:[#allocation2 + $0x20] sm:$0xff] %v212
    %235 = vst [vmem:[#allocation2 + $0x28] sm:$0xff] %v217
    %236 = vst [vmem:[#allocation2 + $0x30] sm:$0xff] %v222
    %237 = vst [vmem:[#allocation2 + $0x38] sm:$0xff] %v227
    %v238 = vld [vmem:[#allocation2] sm:$0xff]
    %v239 = vld [vmem:[%s2] sm:$0xff]
    %v240 = vld [vmem:[%s2 + $0x8] sm:$0xff]
    %v241 = vld [vmem:[%s2 + $0x10] sm:$0xff]
    %v242 = vld [vmem:[%s2 + $0x18] sm:$0xff]
    %v243 = vld [vmem:[%s2 + $0x20] sm:$0xff]
    %v244 = vld [vmem:[%s2 + $0x28] sm:$0xff]
    %v245 = vld [vmem:[%s2 + $0x30] sm:$0xff]
    %v246 = vld [vmem:[%s2 + $0x38] sm:$0xff]
    %v247 = vld [vmem:[%s2 + $0x40] sm:$0xff]
    %v248 = vld [vmem:[%s2 + $0x48] sm:$0xff]
    %v249 = vld [vmem:[%s2 + $0x50] sm:$0xff]
    %v250 = vld [vmem:[%s2 + $0x58] sm:$0xff]
    %v251 = vld [vmem:[%s2 + $0x60] sm:$0xff]
    %v252 = vld [vmem:[%s2 + $0x68] sm:$0xff]
    %v253 = vld [vmem:[%s2 + $0x70] sm:$0xff]
    %v254 = vld [vmem:[%s2 + $0x78] sm:$0xff]
    %255 = vmatprep.subr.mxu0 0.0
    %256 = vmatpush1.msra.mxu0 %v254
    %257 = vmatprep.subr.mxu0 0.0
    %258 = vmatpush1.msra.mxu0 %v253
    %259 = vmatprep.subr.mxu0 0.0
    %260 = vmatpush1.msra.mxu0 %v252
    %261 = vmatprep.subr.mxu0 0.0
    %262 = vmatpush1.msra.mxu0 %v251
    %263 = vmatprep.subr.mxu0 0.0
    %264 = vmatpush1.msra.mxu0 %v250
    %265 = vmatprep.subr.mxu0 0.0
    %266 = vmatpush1.msra.mxu0 %v249
    %267 = vmatprep.subr.mxu0 0.0
    %268 = vmatpush1.msra.mxu0 %v248
    %269 = vmatprep.subr.mxu0 0.0
    %270 = vmatpush1.msra.mxu0 %v247
    %271 = vmatprep.subr.mxu0 0.0
    %272 = vmatpush1.msra.mxu0 %v246
    %273 = vmatprep.subr.mxu0 0.0
    %274 = vmatpush1.msra.mxu0 %v245
    %275 = vmatprep.subr.mxu0 0.0
    %276 = vmatpush1.msra.mxu0 %v244
    %277 = vmatprep.subr.mxu0 0.0
    %278 = vmatpush1.msra.mxu0 %v243
    %279 = vmatprep.subr.mxu0 0.0
    %280 = vmatpush1.msra.mxu0 %v242
    %281 = vmatprep.subr.mxu0 0.0
    %282 = vmatpush1.msra.mxu0 %v241
    %283 = vmatprep.subr.mxu0 0.0
    %284 = vmatpush1.msra.mxu0 %v240
    %285 = vmatprep.subr.mxu0 0.0
    %286 = vmatpush1.msra.mxu0 %v239
    %287 = vmatprep.subr.mxu0 0.0
    %288 = vmatpush2.msra.mxu0 0.0
    %289 = vmatprep.subr.mxu0 0.0
    %290 = vmatpush2.msra.mxu0 0.0
    %291 = vmatprep.subr.mxu0 0.0
    %292 = vmatpush2.msra.mxu0 0.0
    %293 = vmatprep.subr.mxu0 0.0
    %294 = vmatpush2.msra.mxu0 0.0
    %295 = vmatprep.subr.mxu0 0.0
    %296 = vmatpush2.msra.mxu0 0.0
    %297 = vmatprep.subr.mxu0 0.0
    %298 = vmatpush2.msra.mxu0 0.0
    %299 = vmatprep.subr.mxu0 0.0
    %300 = vmatpush2.msra.mxu0 0.0
    %301 = vmatprep.subr.mxu0 0.0
    %302 = vmatpush2.msra.mxu0 0.0
    %303 = vmatprep.subr.mxu0 0.0
    %304 = vmatpush2.msra.mxu0 0.0
    %305 = vmatprep.subr.mxu0 0.0
    %306 = vmatpush2.msra.mxu0 0.0
    %307 = vmatprep.subr.mxu0 0.0
    %308 = vmatpush2.msra.mxu0 0.0
    %309 = vmatprep.subr.mxu0 0.0
    %310 = vmatpush2.msra.mxu0 0.0
    %311 = vmatprep.subr.mxu0 0.0
    %312 = vmatpush2.msra.mxu0 0.0
    %313 = vmatprep.subr.mxu0 0.0
    %314 = vmatpush2.msra.mxu0 0.0
    %315 = vmatprep.subr.mxu0 0.0
    %316 = vmatpush2.msra.mxu0 0.0
    %317 = vmatprep.subr.mxu0 0.0
    %318 = vmatpush2.msra.mxu0 0.0
    %319 = vmatprep.mubr.f32.mxu0 0.0
    %320 = vmatmul.mubr.f32.gmra.mxu0 0.0
    %v321 = vpop.f32.mrf.mxu0
    %v322 = vadd.f32 0.0, %v321
    %v323 = vpop.f32.mrf.mxu0
    %324 = vdwg.mxu0
    %v325 = vadd.f32 %v238, %v322
    %v326 = vtanh.pop %v325
    %v327 = vxor.u32 %v325, 2147483648
    %v328 = vmul.f32 %v327, 1.442695
    %v329 = vpow.pop %v328
    %v330 = vadd.f32 %v329, 1.0
    %v331 = vrcp.pop %v330
    %v332 = vmul.f32 1.0, %v331
    %v333 = vsel %vm83, %v326, %v332
    %334 = vrot.lane.b32.xlu0 %v333, 96
    %v335 = vpop.permute.xlu0 %334
    %336 = vrot.lane.b32.xlu0 %v333, 64
    %v337 = vpop.permute.xlu0 %336
    %338 = vrot.lane.b32.xlu0 %v333, 32
    %v339 = vpop.permute.xlu0 %338
    %v340 = vmul.f32 %v335, 0.0
    %v341 = vmul.f32 %v333, %v337
    %v342 = vadd.f32 %v340, %v341
    %v343 = vtanh.pop %v342
    %v344 = vmul.f32 %v339, %v343
    %345 = vst [vmem:[#allocation3] sm:$0xff] %v344
    %s346 = scalar_lea.vmem [#allocation2], 8
    %v347 = vld [vmem:[%s346] sm:$0xff]
    %v348 = vld [vmem:[%s2] sm:$0xff]
    %v349 = vld [vmem:[%s2 + $0x8] sm:$0xff]
    %v350 = vld [vmem:[%s2 + $0x10] sm:$0xff]
    %v351 = vld [vmem:[%s2 + $0x18] sm:$0xff]
    %v352 = vld [vmem:[%s2 + $0x20] sm:$0xff]
    %v353 = vld [vmem:[%s2 + $0x28] sm:$0xff]
    %v354 = vld [vmem:[%s2 + $0x30] sm:$0xff]
    %v355 = vld [vmem:[%s2 + $0x38] sm:$0xff]
    %v356 = vld [vmem:[%s2 + $0x40] sm:$0xff]
    %v357 = vld [vmem:[%s2 + $0x48] sm:$0xff]
    %v358 = vld [vmem:[%s2 + $0x50] sm:$0xff]
    %v359 = vld [vmem:[%s2 + $0x58] sm:$0xff]
    %v360 = vld [vmem:[%s2 + $0x60] sm:$0xff]
    %v361 = vld [vmem:[%s2 + $0x68] sm:$0xff]
    %v362 = vld [vmem:[%s2 + $0x70] sm:$0xff]
    %v363 = vld [vmem:[%s2 + $0x78] sm:$0xff]
    %364 = vmatprep.subr.mxu0 0.0
    %365 = vmatpush1.msra.mxu0 %v363
    %366 = vmatprep.subr.mxu0 0.0
    %367 = vmatpush1.msra.mxu0 %v362
    %368 = vmatprep.subr.mxu0 0.0
    %369 = vmatpush1.msra.mxu0 %v361
    %370 = vmatprep.subr.mxu0 0.0
    %371 = vmatpush1.msra.mxu0 %v360
    %372 = vmatprep.subr.mxu0 0.0
    %373 = vmatpush1.msra.mxu0 %v359
    %374 = vmatprep.subr.mxu0 0.0
    %375 = vmatpush1.msra.mxu0 %v358
    %376 = vmatprep.subr.mxu0 0.0
    %377 = vmatpush1.msra.mxu0 %v357
    %378 = vmatprep.subr.mxu0 0.0
    %379 = vmatpush1.msra.mxu0 %v356
    %380 = vmatprep.subr.mxu0 0.0
    %381 = vmatpush1.msra.mxu0 %v355
    %382 = vmatprep.subr.mxu0 0.0
    %383 = vmatpush1.msra.mxu0 %v354
    %384 = vmatprep.subr.mxu0 0.0
    %385 = vmatpush1.msra.mxu0 %v353
    %386 = vmatprep.subr.mxu0 0.0
    %387 = vmatpush1.msra.mxu0 %v352
    %388 = vmatprep.subr.mxu0 0.0
    %389 = vmatpush1.msra.mxu0 %v351
    %390 = vmatprep.subr.mxu0 0.0
    %391 = vmatpush1.msra.mxu0 %v350
    %392 = vmatprep.subr.mxu0 0.0
    %393 = vmatpush1.msra.mxu0 %v349
    %394 = vmatprep.subr.mxu0 0.0
    %395 = vmatpush1.msra.mxu0 %v348
    %396 = vmatprep.subr.mxu0 0.0
    %397 = vmatpush2.msra.mxu0 0.0
    %398 = vmatprep.subr.mxu0 0.0
    %399 = vmatpush2.msra.mxu0 0.0
    %400 = vmatprep.subr.mxu0 0.0
    %401 = vmatpush2.msra.mxu0 0.0
    %402 = vmatprep.subr.mxu0 0.0
    %403 = vmatpush2.msra.mxu0 0.0
    %404 = vmatprep.subr.mxu0 0.0
    %405 = vmatpush2.msra.mxu0 0.0
    %406 = vmatprep.subr.mxu0 0.0
    %407 = vmatpush2.msra.mxu0 0.0
    %408 = vmatprep.subr.mxu0 0.0
    %409 = vmatpush2.msra.mxu0 0.0
    %410 = vmatprep.subr.mxu0 0.0
    %411 = vmatpush2.msra.mxu0 0.0
    %412 = vmatprep.subr.mxu0 0.0
    %413 = vmatpush2.msra.mxu0 0.0
    %414 = vmatprep.subr.mxu0 0.0
    %415 = vmatpush2.msra.mxu0 0.0
    %416 = vmatprep.subr.mxu0 0.0
    %417 = vmatpush2.msra.mxu0 0.0
    %418 = vmatprep.subr.mxu0 0.0
    %419 = vmatpush2.msra.mxu0 0.0
    %420 = vmatprep.subr.mxu0 0.0
    %421 = vmatpush2.msra.mxu0 0.0
    %422 = vmatprep.subr.mxu0 0.0
    %423 = vmatpush2.msra.mxu0 0.0
    %424 = vmatprep.subr.mxu0 0.0
    %425 = vmatpush2.msra.mxu0 0.0
    %426 = vmatprep.subr.mxu0 0.0
    %427 = vmatpush2.msra.mxu0 0.0
    %428 = vmatprep.mubr.f32.mxu0 0.0
    %429 = vmatmul.mubr.f32.gmra.mxu0 %v344
    %v430 = vpop.f32.mrf.mxu0
    %v431 = vadd.f32 0.0, %v430
    %v432 = vpop.f32.mrf.mxu0
    %433 = vdwg.mxu0
    %v434 = vadd.f32 %v347, %v431
    %v435 = vtanh.pop %v434
    %v436 = vxor.u32 %v434, 2147483648
    %v437 = vmul.f32 %v436, 1.442695
    %v438 = vpow.pop %v437
    %v439 = vadd.f32 %v438, 1.0
    %v440 = vrcp.pop %v439
    %v441 = vmul.f32 1.0, %v440
    %v442 = vsel %vm83, %v435, %v441
    %443 = vrot.lane.b32.xlu0 %v442, 96
    %v444 = vpop.permute.xlu0 %443
    %445 = vrot.lane.b32.xlu0 %v442, 64
    %v446 = vpop.permute.xlu0 %445
    %447 = vrot.lane.b32.xlu0 %v442, 32
    %v448 = vpop.permute.xlu0 %447
    %v449 = vmul.f32 %v444, %v342
    %v450 = vmul.f32 %v442, %v446
    %v451 = vadd.f32 %v449, %v450
    %v452 = vtanh.pop %v451
    %v453 = vmul.f32 %v448, %v452
    %s454 = scalar_lea.vmem [#allocation3], 8
    %455 = vst [vmem:[%s454] sm:$0xff] %v453
    %s456 = scalar_lea.vmem [#allocation2], 16
    %v457 = vld [vmem:[%s456] sm:$0xff]
    %v458 = vld [vmem:[%s2] sm:$0xff]
    %v459 = vld [vmem:[%s2 + $0x8] sm:$0xff]
    %v460 = vld [vmem:[%s2 + $0x10] sm:$0xff]
    %v461 = vld [vmem:[%s2 + $0x18] sm:$0xff]
    %v462 = vld [vmem:[%s2 + $0x20] sm:$0xff]
    %v463 = vld [vmem:[%s2 + $0x28] sm:$0xff]
    %v464 = vld [vmem:[%s2 + $0x30] sm:$0xff]
    %v465 = vld [vmem:[%s2 + $0x38] sm:$0xff]
    %v466 = vld [vmem:[%s2 + $0x40] sm:$0xff]
    %v467 = vld [vmem:[%s2 + $0x48] sm:$0xff]
    %v468 = vld [vmem:[%s2 + $0x50] sm:$0xff]
    %v469 = vld [vmem:[%s2 + $0x58] sm:$0xff]
    %v470 = vld [vmem:[%s2 + $0x60] sm:$0xff]
    %v471 = vld [vmem:[%s2 + $0x68] sm:$0xff]
    %v472 = vld [vmem:[%s2 + $0x70] sm:$0xff]
    %v473 = vld [vmem:[%s2 + $0x78] sm:$0xff]
    %474 = vmatprep.subr.mxu0 0.0
    %475 = vmatpush1.msra.mxu0 %v473
    %476 = vmatprep.subr.mxu0 0.0
    %477 = vmatpush1.msra.mxu0 %v472
    %478 = vmatprep.subr.mxu0 0.0
    %479 = vmatpush1.msra.mxu0 %v471
    %480 = vmatprep.subr.mxu0 0.0
    %481 = vmatpush1.msra.mxu0 %v470
    %482 = vmatprep.subr.mxu0 0.0
    %483 = vmatpush1.msra.mxu0 %v469
    %484 = vmatprep.subr.mxu0 0.0
    %485 = vmatpush1.msra.mxu0 %v468
    %486 = vmatprep.subr.mxu0 0.0
    %487 = vmatpush1.msra.mxu0 %v467
    %488 = vmatprep.subr.mxu0 0.0
    %489 = vmatpush1.msra.mxu0 %v466
    %490 = vmatprep.subr.mxu0 0.0
    %491 = vmatpush1.msra.mxu0 %v465
    %492 = vmatprep.subr.mxu0 0.0
    %493 = vmatpush1.msra.mxu0 %v464
    %494 = vmatprep.subr.mxu0 0.0
    %495 = vmatpush1.msra.mxu0 %v463
    %496 = vmatprep.subr.mxu0 0.0
    %497 = vmatpush1.msra.mxu0 %v462
    %498 = vmatprep.subr.mxu0 0.0
    %499 = vmatpush1.msra.mxu0 %v461
    %500 = vmatprep.subr.mxu0 0.0
    %501 = vmatpush1.msra.mxu0 %v460
    %502 = vmatprep.subr.mxu0 0.0
    %503 = vmatpush1.msra.mxu0 %v459
    %504 = vmatprep.subr.mxu0 0.0
    %505 = vmatpush1.msra.mxu0 %v458
    %506 = vmatprep.subr.mxu0 0.0
    %507 = vmatpush2.msra.mxu0 0.0
    %508 = vmatprep.subr.mxu0 0.0
    %509 = vmatpush2.msra.mxu0 0.0
    %510 = vmatprep.subr.mxu0 0.0
    %511 = vmatpush2.msra.mxu0 0.0
    %512 = vmatprep.subr.mxu0 0.0
    %513 = vmatpush2.msra.mxu0 0.0
    %514 = vmatprep.subr.mxu0 0.0
    %515 = vmatpush2.msra.mxu0 0.0
    %516 = vmatprep.subr.mxu0 0.0
    %517 = vmatpush2.msra.mxu0 0.0
    %518 = vmatprep.subr.mxu0 0.0
    %519 = vmatpush2.msra.mxu0 0.0
    %520 = vmatprep.subr.mxu0 0.0
    %521 = vmatpush2.msra.mxu0 0.0
    %522 = vmatprep.subr.mxu0 0.0
    %523 = vmatpush2.msra.mxu0 0.0
    %524 = vmatprep.subr.mxu0 0.0
    %525 = vmatpush2.msra.mxu0 0.0
    %526 = vmatprep.subr.mxu0 0.0
    %527 = vmatpush2.msra.mxu0 0.0
    %528 = vmatprep.subr.mxu0 0.0
    %529 = vmatpush2.msra.mxu0 0.0
    %530 = vmatprep.subr.mxu0 0.0
    %531 = vmatpush2.msra.mxu0 0.0
    %532 = vmatprep.subr.mxu0 0.0
    %533 = vmatpush2.msra.mxu0 0.0
    %534 = vmatprep.subr.mxu0 0.0
    %535 = vmatpush2.msra.mxu0 0.0
    %536 = vmatprep.subr.mxu0 0.0
    %537 = vmatpush2.msra.mxu0 0.0
    %538 = vmatprep.mubr.f32.mxu0 0.0
    %539 = vmatmul.mubr.f32.gmra.mxu0 %v453
    %v540 = vpop.f32.mrf.mxu0
    %v541 = vadd.f32 0.0, %v540
    %v542 = vpop.f32.mrf.mxu0
    %543 = vdwg.mxu0
    %v544 = vadd.f32 %v457, %v541
    %v545 = vtanh.pop %v544
    %v546 = vxor.u32 %v544, 2147483648
    %v547 = vmul.f32 %v546, 1.442695
    %v548 = vpow.pop %v547
    %v549 = vadd.f32 %v548, 1.0
    %v550 = vrcp.pop %v549
    %v551 = vmul.f32 1.0, %v550
    %v552 = vsel %vm83, %v545, %v551
    %553 = vrot.lane.b32.xlu0 %v552, 96
    %v554 = vpop.permute.xlu0 %553
    %555 = vrot.lane.b32.xlu0 %v552, 64
    %v556 = vpop.permute.xlu0 %555
    %557 = vrot.lane.b32.xlu0 %v552, 32
    %v558 = vpop.permute.xlu0 %557
    %v559 = vmul.f32 %v554, %v451
    %v560 = vmul.f32 %v552, %v556
    %v561 = vadd.f32 %v559, %v560
    %v562 = vtanh.pop %v561
    %v563 = vmul.f32 %v558, %v562
    %s564 = scalar_lea.vmem [#allocation3], 16
    %565 = vst [vmem:[%s564] sm:$0xff] %v563
    %s566 = scalar_lea.vmem [#allocation2], 24
    %v567 = vld [vmem:[%s566] sm:$0xff]
    %v568 = vld [vmem:[%s2] sm:$0xff]
    %v569 = vld [vmem:[%s2 + $0x8] sm:$0xff]
    %v570 = vld [vmem:[%s2 + $0x10] sm:$0xff]
    %v571 = vld [vmem:[%s2 + $0x18] sm:$0xff]
    %v572 = vld [vmem:[%s2 + $0x20] sm:$0xff]
    %v573 = vld [vmem:[%s2 + $0x28] sm:$0xff]
    %v574 = vld [vmem:[%s2 + $0x30] sm:$0xff]
    %v575 = vld [vmem:[%s2 + $0x38] sm:$0xff]
    %v576 = vld [vmem:[%s2 + $0x40] sm:$0xff]
    %v577 = vld [vmem:[%s2 + $0x48] sm:$0xff]
    %v578 = vld [vmem:[%s2 + $0x50] sm:$0xff]
    %v579 = vld [vmem:[%s2 + $0x58] sm:$0xff]
    %v580 = vld [vmem:[%s2 + $0x60] sm:$0xff]
    %v581 = vld [vmem:[%s2 + $0x68] sm:$0xff]
    %v582 = vld [vmem:[%s2 + $0x70] sm:$0xff]
    %v583 = vld [vmem:[%s2 + $0x78] sm:$0xff]
    %584 = vmatprep.subr.mxu0 0.0
    %585 = vmatpush1.msra.mxu0 %v583
    %586 = vmatprep.subr.mxu0 0.0
    %587 = vmatpush1.msra.mxu0 %v582
    %588 = vmatprep.subr.mxu0 0.0
    %589 = vmatpush1.msra.mxu0 %v581
    %590 = vmatprep.subr.mxu0 0.0
    %591 = vmatpush1.msra.mxu0 %v580
    %592 = vmatprep.subr.mxu0 0.0
    %593 = vmatpush1.msra.mxu0 %v579
    %594 = vmatprep.subr.mxu0 0.0
    %595 = vmatpush1.msra.mxu0 %v578
    %596 = vmatprep.subr.mxu0 0.0
    %597 = vmatpush1.msra.mxu0 %v577
    %598 = vmatprep.subr.mxu0 0.0
    %599 = vmatpush1.msra.mxu0 %v576
    %600 = vmatprep.subr.mxu0 0.0
    %601 = vmatpush1.msra.mxu0 %v575
    %602 = vmatprep.subr.mxu0 0.0
    %603 = vmatpush1.msra.mxu0 %v574
    %604 = vmatprep.subr.mxu0 0.0
    %605 = vmatpush1.msra.mxu0 %v573
    %606 = vmatprep.subr.mxu0 0.0
    %607 = vmatpush1.msra.mxu0 %v572
    %608 = vmatprep.subr.mxu0 0.0
    %609 = vmatpush1.msra.mxu0 %v571
    %610 = vmatprep.subr.mxu0 0.0
    %611 = vmatpush1.msra.mxu0 %v570
    %612 = vmatprep.subr.mxu0 0.0
    %613 = vmatpush1.msra.mxu0 %v569
    %614 = vmatprep.subr.mxu0 0.0
    %615 = vmatpush1.msra.mxu0 %v568
    %616 = vmatprep.subr.mxu0 0.0
    %617 = vmatpush2.msra.mxu0 0.0
    %618 = vmatprep.subr.mxu0 0.0
    %619 = vmatpush2.msra.mxu0 0.0
    %620 = vmatprep.subr.mxu0 0.0
    %621 = vmatpush2.msra.mxu0 0.0
    %622 = vmatprep.subr.mxu0 0.0
    %623 = vmatpush2.msra.mxu0 0.0
    %624 = vmatprep.subr.mxu0 0.0
    %625 = vmatpush2.msra.mxu0 0.0
    %626 = vmatprep.subr.mxu0 0.0
    %627 = vmatpush2.msra.mxu0 0.0
    %628 = vmatprep.subr.mxu0 0.0
    %629 = vmatpush2.msra.mxu0 0.0
    %630 = vmatprep.subr.mxu0 0.0
    %631 = vmatpush2.msra.mxu0 0.0
    %632 = vmatprep.subr.mxu0 0.0
    %633 = vmatpush2.msra.mxu0 0.0
    %634 = vmatprep.subr.mxu0 0.0
    %635 = vmatpush2.msra.mxu0 0.0
    %636 = vmatprep.subr.mxu0 0.0
    %637 = vmatpush2.msra.mxu0 0.0
    %638 = vmatprep.subr.mxu0 0.0
    %639 = vmatpush2.msra.mxu0 0.0
    %640 = vmatprep.subr.mxu0 0.0
    %641 = vmatpush2.msra.mxu0 0.0
    %642 = vmatprep.subr.mxu0 0.0
    %643 = vmatpush2.msra.mxu0 0.0
    %644 = vmatprep.subr.mxu0 0.0
    %645 = vmatpush2.msra.mxu0 0.0
    %646 = vmatprep.subr.mxu0 0.0
    %647 = vmatpush2.msra.mxu0 0.0
    %648 = vmatprep.mubr.f32.mxu0 0.0
    %649 = vmatmul.mubr.f32.gmra.mxu0 %v563
    %v650 = vpop.f32.mrf.mxu0
    %v651 = vadd.f32 0.0, %v650
    %v652 = vpop.f32.mrf.mxu0
    %653 = vdwg.mxu0
    %v654 = vadd.f32 %v567, %v651
    %v655 = vtanh.pop %v654
    %v656 = vxor.u32 %v654, 2147483648
    %v657 = vmul.f32 %v656, 1.442695
    %v658 = vpow.pop %v657
    %v659 = vadd.f32 %v658, 1.0
    %v660 = vrcp.pop %v659
    %v661 = vmul.f32 1.0, %v660
    %v662 = vsel %vm83, %v655, %v661
    %663 = vrot.lane.b32.xlu0 %v662, 96
    %v664 = vpop.permute.xlu0 %663
    %665 = vrot.lane.b32.xlu0 %v662, 64
    %v666 = vpop.permute.xlu0 %665
    %667 = vrot.lane.b32.xlu0 %v662, 32
    %v668 = vpop.permute.xlu0 %667
    %v669 = vmul.f32 %v664, %v561
    %v670 = vmul.f32 %v662, %v666
    %v671 = vadd.f32 %v669, %v670
    %v672 = vtanh.pop %v671
    %v673 = vmul.f32 %v668, %v672
    %s674 = scalar_lea.vmem [#allocation3], 24
    %675 = vst [vmem:[%s674] sm:$0xff] %v673
    %s676 = scalar_lea.vmem [#allocation2], 32
    %v677 = vld [vmem:[%s676] sm:$0xff]
    %v678 = vld [vmem:[%s2] sm:$0xff]
    %v679 = vld [vmem:[%s2 + $0x8] sm:$0xff]
    %v680 = vld [vmem:[%s2 + $0x10] sm:$0xff]
    %v681 = vld [vmem:[%s2 + $0x18] sm:$0xff]
    %v682 = vld [vmem:[%s2 + $0x20] sm:$0xff]
    %v683 = vld [vmem:[%s2 + $0x28] sm:$0xff]
    %v684 = vld [vmem:[%s2 + $0x30] sm:$0xff]
    %v685 = vld [vmem:[%s2 + $0x38] sm:$0xff]
    %v686 = vld [vmem:[%s2 + $0x40] sm:$0xff]
    %v687 = vld [vmem:[%s2 + $0x48] sm:$0xff]
    %v688 = vld [vmem:[%s2 + $0x50] sm:$0xff]
    %v689 = vld [vmem:[%s2 + $0x58] sm:$0xff]
    %v690 = vld [vmem:[%s2 + $0x60] sm:$0xff]
    %v691 = vld [vmem:[%s2 + $0x68] sm:$0xff]
    %v692 = vld [vmem:[%s2 + $0x70] sm:$0xff]
    %v693 = vld [vmem:[%s2 + $0x78] sm:$0xff]
    %694 = vmatprep.subr.mxu0 0.0
    %695 = vmatpush1.msra.mxu0 %v693
    %696 = vmatprep.subr.mxu0 0.0
    %697 = vmatpush1.msra.mxu0 %v692
    %698 = vmatprep.subr.mxu0 0.0
    %699 = vmatpush1.msra.mxu0 %v691
    %700 = vmatprep.subr.mxu0 0.0
    %701 = vmatpush1.msra.mxu0 %v690
    %702 = vmatprep.subr.mxu0 0.0
    %703 = vmatpush1.msra.mxu0 %v689
    %704 = vmatprep.subr.mxu0 0.0
    %705 = vmatpush1.msra.mxu0 %v688
    %706 = vmatprep.subr.mxu0 0.0
    %707 = vmatpush1.msra.mxu0 %v687
    %708 = vmatprep.subr.mxu0 0.0
    %709 = vmatpush1.msra.mxu0 %v686
    %710 = vmatprep.subr.mxu0 0.0
    %711 = vmatpush1.msra.mxu0 %v685
    %712 = vmatprep.subr.mxu0 0.0
    %713 = vmatpush1.msra.mxu0 %v684
    %714 = vmatprep.subr.mxu0 0.0
    %715 = vmatpush1.msra.mxu0 %v683
    %716 = vmatprep.subr.mxu0 0.0
    %717 = vmatpush1.msra.mxu0 %v682
    %718 = vmatprep.subr.mxu0 0.0
    %719 = vmatpush1.msra.mxu0 %v681
    %720 = vmatprep.subr.mxu0 0.0
    %721 = vmatpush1.msra.mxu0 %v680
    %722 = vmatprep.subr.mxu0 0.0
    %723 = vmatpush1.msra.mxu0 %v679
    %724 = vmatprep.subr.mxu0 0.0
    %725 = vmatpush1.msra.mxu0 %v678
    %726 = vmatprep.subr.mxu0 0.0
    %727 = vmatpush2.msra.mxu0 0.0
    %728 = vmatprep.subr.mxu0 0.0
    %729 = vmatpush2.msra.mxu0 0.0
    %730 = vmatprep.subr.mxu0 0.0
    %731 = vmatpush2.msra.mxu0 0.0
    %732 = vmatprep.subr.mxu0 0.0
    %733 = vmatpush2.msra.mxu0 0.0
    %734 = vmatprep.subr.mxu0 0.0
    %735 = vmatpush2.msra.mxu0 0.0
    %736 = vmatprep.subr.mxu0 0.0
    %737 = vmatpush2.msra.mxu0 0.0
    %738 = vmatprep.subr.mxu0 0.0
    %739 = vmatpush2.msra.mxu0 0.0
    %740 = vmatprep.subr.mxu0 0.0
    %741 = vmatpush2.msra.mxu0 0.0
    %742 = vmatprep.subr.mxu0 0.0
    %743 = vmatpush2.msra.mxu0 0.0
    %744 = vmatprep.subr.mxu0 0.0
    %745 = vmatpush2.msra.mxu0 0.0
    %746 = vmatprep.subr.mxu0 0.0
    %747 = vmatpush2.msra.mxu0 0.0
    %748 = vmatprep.subr.mxu0 0.0
    %749 = vmatpush2.msra.mxu0 0.0
    %750 = vmatprep.subr.mxu0 0.0
    %751 = vmatpush2.msra.mxu0 0.0
    %752 = vmatprep.subr.mxu0 0.0
    %753 = vmatpush2.msra.mxu0 0.0
    %754 = vmatprep.subr.mxu0 0.0
    %755 = vmatpush2.msra.mxu0 0.0
    %756 = vmatprep.subr.mxu0 0.0
    %757 = vmatpush2.msra.mxu0 0.0
    %758 = vmatprep.mubr.f32.mxu0 0.0
    %759 = vmatmul.mubr.f32.gmra.mxu0 %v673
    %v760 = vpop.f32.mrf.mxu0
    %v761 = vadd.f32 0.0, %v760
    %v762 = vpop.f32.mrf.mxu0
    %763 = vdwg.mxu0
    %v764 = vadd.f32 %v677, %v761
    %v765 = vtanh.pop %v764
    %v766 = vxor.u32 %v764, 2147483648
    %v767 = vmul.f32 %v766, 1.442695
    %v768 = vpow.pop %v767
    %v769 = vadd.f32 %v768, 1.0
    %v770 = vrcp.pop %v769
    %v771 = vmul.f32 1.0, %v770
    %v772 = vsel %vm83, %v765, %v771
    %773 = vrot.lane.b32.xlu0 %v772, 96
    %v774 = vpop.permute.xlu0 %773
    %775 = vrot.lane.b32.xlu0 %v772, 64
    %v776 = vpop.permute.xlu0 %775
    %777 = vrot.lane.b32.xlu0 %v772, 32
    %v778 = vpop.permute.xlu0 %777
    %v779 = vmul.f32 %v774, %v671
    %v780 = vmul.f32 %v772, %v776
    %v781 = vadd.f32 %v779, %v780
    %v782 = vtanh.pop %v781
    %v783 = vmul.f32 %v778, %v782
    %s784 = scalar_lea.vmem [#allocation3], 32
    %785 = vst [vmem:[%s784] sm:$0xff] %v783
    %s786 = scalar_lea.vmem [#allocation2], 40
    %v787 = vld [vmem:[%s786] sm:$0xff]
    %v788 = vld [vmem:[%s2] sm:$0xff]
    %v789 = vld [vmem:[%s2 + $0x8] sm:$0xff]
    %v790 = vld [vmem:[%s2 + $0x10] sm:$0xff]
    %v791 = vld [vmem:[%s2 + $0x18] sm:$0xff]
    %v792 = vld [vmem:[%s2 + $0x20] sm:$0xff]
    %v793 = vld [vmem:[%s2 + $0x28] sm:$0xff]
    %v794 = vld [vmem:[%s2 + $0x30] sm:$0xff]
    %v795 = vld [vmem:[%s2 + $0x38] sm:$0xff]
    %v796 = vld [vmem:[%s2 + $0x40] sm:$0xff]
    %v797 = vld [vmem:[%s2 + $0x48] sm:$0xff]
    %v798 = vld [vmem:[%s2 + $0x50] sm:$0xff]
    %v799 = vld [vmem:[%s2 + $0x58] sm:$0xff]
    %v800 = vld [vmem:[%s2 + $0x60] sm:$0xff]
    %v801 = vld [vmem:[%s2 + $0x68] sm:$0xff]
    %v802 = vld [vmem:[%s2 + $0x70] sm:$0xff]
    %v803 = vld [vmem:[%s2 + $0x78] sm:$0xff]
    %804 = vmatprep.subr.mxu0 0.0
    %805 = vmatpush1.msra.mxu0 %v803
    %806 = vmatprep.subr.mxu0 0.0
    %807 = vmatpush1.msra.mxu0 %v802
    %808 = vmatprep.subr.mxu0 0.0
    %809 = vmatpush1.msra.mxu0 %v801
    %810 = vmatprep.subr.mxu0 0.0
    %811 = vmatpush1.msra.mxu0 %v800
    %812 = vmatprep.subr.mxu0 0.0
    %813 = vmatpush1.msra.mxu0 %v799
    %814 = vmatprep.subr.mxu0 0.0
    %815 = vmatpush1.msra.mxu0 %v798
    %816 = vmatprep.subr.mxu0 0.0
    %817 = vmatpush1.msra.mxu0 %v797
    %818 = vmatprep.subr.mxu0 0.0
    %819 = vmatpush1.msra.mxu0 %v796
    %820 = vmatprep.subr.mxu0 0.0
    %821 = vmatpush1.msra.mxu0 %v795
    %822 = vmatprep.subr.mxu0 0.0
    %823 = vmatpush1.msra.mxu0 %v794
    %824 = vmatprep.subr.mxu0 0.0
    %825 = vmatpush1.msra.mxu0 %v793
    %826 = vmatprep.subr.mxu0 0.0
    %827 = vmatpush1.msra.mxu0 %v792
    %828 = vmatprep.subr.mxu0 0.0
    %829 = vmatpush1.msra.mxu0 %v791
    %830 = vmatprep.subr.mxu0 0.0
    %831 = vmatpush1.msra.mxu0 %v790
    %832 = vmatprep.subr.mxu0 0.0
    %833 = vmatpush1.msra.mxu0 %v789
    %834 = vmatprep.subr.mxu0 0.0
    %835 = vmatpush1.msra.mxu0 %v788
    %836 = vmatprep.subr.mxu0 0.0
    %837 = vmatpush2.msra.mxu0 0.0
    %838 = vmatprep.subr.mxu0 0.0
    %839 = vmatpush2.msra.mxu0 0.0
    %840 = vmatprep.subr.mxu0 0.0
    %841 = vmatpush2.msra.mxu0 0.0
    %842 = vmatprep.subr.mxu0 0.0
    %843 = vmatpush2.msra.mxu0 0.0
    %844 = vmatprep.subr.mxu0 0.0
    %845 = vmatpush2.msra.mxu0 0.0
    %846 = vmatprep.subr.mxu0 0.0
    %847 = vmatpush2.msra.mxu0 0.0
    %848 = vmatprep.subr.mxu0 0.0
    %849 = vmatpush2.msra.mxu0 0.0
    %850 = vmatprep.subr.mxu0 0.0
    %851 = vmatpush2.msra.mxu0 0.0
    %852 = vmatprep.subr.mxu0 0.0
    %853 = vmatpush2.msra.mxu0 0.0
    %854 = vmatprep.subr.mxu0 0.0
    %855 = vmatpush2.msra.mxu0 0.0
    %856 = vmatprep.subr.mxu0 0.0
    %857 = vmatpush2.msra.mxu0 0.0
    %858 = vmatprep.subr.mxu0 0.0
    %859 = vmatpush2.msra.mxu0 0.0
    %860 = vmatprep.subr.mxu0 0.0
    %861 = vmatpush2.msra.mxu0 0.0
    %862 = vmatprep.subr.mxu0 0.0
    %863 = vmatpush2.msra.mxu0 0.0
    %864 = vmatprep.subr.mxu0 0.0
    %865 = vmatpush2.msra.mxu0 0.0
    %866 = vmatprep.subr.mxu0 0.0
    %867 = vmatpush2.msra.mxu0 0.0
    %868 = vmatprep.mubr.f32.mxu0 0.0
    %869 = vmatmul.mubr.f32.gmra.mxu0 %v783
    %v870 = vpop.f32.mrf.mxu0
    %v871 = vadd.f32 0.0, %v870
    %v872 = vpop.f32.mrf.mxu0
    %873 = vdwg.mxu0
    %v874 = vadd.f32 %v787, %v871
    %v875 = vtanh.pop %v874
    %v876 = vxor.u32 %v874, 2147483648
    %v877 = vmul.f32 %v876, 1.442695
    %v878 = vpow.pop %v877
    %v879 = vadd.f32 %v878, 1.0
    %v880 = vrcp.pop %v879
    %v881 = vmul.f32 1.0, %v880
    %v882 = vsel %vm83, %v875, %v881
    %883 = vrot.lane.b32.xlu0 %v882, 96
    %v884 = vpop.permute.xlu0 %883
    %885 = vrot.lane.b32.xlu0 %v882, 64
    %v886 = vpop.permute.xlu0 %885
    %887 = vrot.lane.b32.xlu0 %v882, 32
    %v888 = vpop.permute.xlu0 %887
    %v889 = vmul.f32 %v884, %v781
    %v890 = vmul.f32 %v882, %v886
    %v891 = vadd.f32 %v889, %v890
    %v892 = vtanh.pop %v891
    %v893 = vmul.f32 %v888, %v892
    %s894 = scalar_lea.vmem [#allocation3], 40
    %895 = vst [vmem:[%s894] sm:$0xff] %v893
    %s896 = scalar_lea.vmem [#allocation2], 48
    %v897 = vld [vmem:[%s896] sm:$0xff]
    %v898 = vld [vmem:[%s2] sm:$0xff]
    %v899 = vld [vmem:[%s2 + $0x8] sm:$0xff]
    %v900 = vld [vmem:[%s2 + $0x10] sm:$0xff]
    %v901 = vld [vmem:[%s2 + $0x18] sm:$0xff]
    %v902 = vld [vmem:[%s2 + $0x20] sm:$0xff]
    %v903 = vld [vmem:[%s2 + $0x28] sm:$0xff]
    %v904 = vld [vmem:[%s2 + $0x30] sm:$0xff]
    %v905 = vld [vmem:[%s2 + $0x38] sm:$0xff]
    %v906 = vld [vmem:[%s2 + $0x40] sm:$0xff]
    %v907 = vld [vmem:[%s2 + $0x48] sm:$0xff]
    %v908 = vld [vmem:[%s2 + $0x50] sm:$0xff]
    %v909 = vld [vmem:[%s2 + $0x58] sm:$0xff]
    %v910 = vld [vmem:[%s2 + $0x60] sm:$0xff]
    %v911 = vld [vmem:[%s2 + $0x68] sm:$0xff]
    %v912 = vld [vmem:[%s2 + $0x70] sm:$0xff]
    %v913 = vld [vmem:[%s2 + $0x78] sm:$0xff]
    %914 = vmatprep.subr.mxu0 0.0
    %915 = vmatpush1.msra.mxu0 %v913
    %916 = vmatprep.subr.mxu0 0.0
    %917 = vmatpush1.msra.mxu0 %v912
    %918 = vmatprep.subr.mxu0 0.0
    %919 = vmatpush1.msra.mxu0 %v911
    %920 = vmatprep.subr.mxu0 0.0
    %921 = vmatpush1.msra.mxu0 %v910
    %922 = vmatprep.subr.mxu0 0.0
    %923 = vmatpush1.msra.mxu0 %v909
    %924 = vmatprep.subr.mxu0 0.0
    %925 = vmatpush1.msra.mxu0 %v908
    %926 = vmatprep.subr.mxu0 0.0
    %927 = vmatpush1.msra.mxu0 %v907
    %928 = vmatprep.subr.mxu0 0.0
    %929 = vmatpush1.msra.mxu0 %v906
    %930 = vmatprep.subr.mxu0 0.0
    %931 = vmatpush1.msra.mxu0 %v905
    %932 = vmatprep.subr.mxu0 0.0
    %933 = vmatpush1.msra.mxu0 %v904
    %934 = vmatprep.subr.mxu0 0.0
    %935 = vmatpush1.msra.mxu0 %v903
    %936 = vmatprep.subr.mxu0 0.0
    %937 = vmatpush1.msra.mxu0 %v902
    %938 = vmatprep.subr.mxu0 0.0
    %939 = vmatpush1.msra.mxu0 %v901
    %940 = vmatprep.subr.mxu0 0.0
    %941 = vmatpush1.msra.mxu0 %v900
    %942 = vmatprep.subr.mxu0 0.0
    %943 = vmatpush1.msra.mxu0 %v899
    %944 = vmatprep.subr.mxu0 0.0
    %945 = vmatpush1.msra.mxu0 %v898
    %946 = vmatprep.subr.mxu0 0.0
    %947 = vmatpush2.msra.mxu0 0.0
    %948 = vmatprep.subr.mxu0 0.0
    %949 = vmatpush2.msra.mxu0 0.0
    %950 = vmatprep.subr.mxu0 0.0
    %951 = vmatpush2.msra.mxu0 0.0
    %952 = vmatprep.subr.mxu0 0.0
    %953 = vmatpush2.msra.mxu0 0.0
    %954 = vmatprep.subr.mxu0 0.0
    %955 = vmatpush2.msra.mxu0 0.0
    %956 = vmatprep.subr.mxu0 0.0
    %957 = vmatpush2.msra.mxu0 0.0
    %958 = vmatprep.subr.mxu0 0.0
    %959 = vmatpush2.msra.mxu0 0.0
    %960 = vmatprep.subr.mxu0 0.0
    %961 = vmatpush2.msra.mxu0 0.0
    %962 = vmatprep.subr.mxu0 0.0
    %963 = vmatpush2.msra.mxu0 0.0
    %964 = vmatprep.subr.mxu0 0.0
    %965 = vmatpush2.msra.mxu0 0.0
    %966 = vmatprep.subr.mxu0 0.0
    %967 = vmatpush2.msra.mxu0 0.0
    %968 = vmatprep.subr.mxu0 0.0
    %969 = vmatpush2.msra.mxu0 0.0
    %970 = vmatprep.subr.mxu0 0.0
    %971 = vmatpush2.msra.mxu0 0.0
    %972 = vmatprep.subr.mxu0 0.0
    %973 = vmatpush2.msra.mxu0 0.0
    %974 = vmatprep.subr.mxu0 0.0
    %975 = vmatpush2.msra.mxu0 0.0
    %976 = vmatprep.subr.mxu0 0.0
    %977 = vmatpush2.msra.mxu0 0.0
    %978 = vmatprep.mubr.f32.mxu0 0.0
    %979 = vmatmul.mubr.f32.gmra.mxu0 %v893
    %v980 = vpop.f32.mrf.mxu0
    %v981 = vadd.f32 0.0, %v980
    %v982 = vpop.f32.mrf.mxu0
    %983 = vdwg.mxu0
    %v984 = vadd.f32 %v897, %v981
    %v985 = vtanh.pop %v984
    %v986 = vxor.u32 %v984, 2147483648
    %v987 = vmul.f32 %v986, 1.442695
    %v988 = vpow.pop %v987
    %v989 = vadd.f32 %v988, 1.0
    %v990 = vrcp.pop %v989
    %v991 = vmul.f32 1.0, %v990
    %v992 = vsel %vm83, %v985, %v991
    %993 = vrot.lane.b32.xlu0 %v992, 96
    %v994 = vpop.permute.xlu0 %993
    %995 = vrot.lane.b32.xlu0 %v992, 64
    %v996 = vpop.permute.xlu0 %995
    %997 = vrot.lane.b32.xlu0 %v992, 32
    %v998 = vpop.permute.xlu0 %997
    %v999 = vmul.f32 %v994, %v891
    %v1000 = vmul.f32 %v992, %v996
    %v1001 = vadd.f32 %v999, %v1000
    %v1002 = vtanh.pop %v1001
    %v1003 = vmul.f32 %v998, %v1002
    %s1004 = scalar_lea.vmem [#allocation3], 48
    %1005 = vst [vmem:[%s1004] sm:$0xff] %v1003
    %s1006 = scalar_lea.vmem [#allocation2], 56
    %v1007 = vld [vmem:[%s1006] sm:$0xff]
    %v1008 = vld [vmem:[%s2] sm:$0xff]
    %v1009 = vld [vmem:[%s2 + $0x8] sm:$0xff]
    %v1010 = vld [vmem:[%s2 + $0x10] sm:$0xff]
    %v1011 = vld [vmem:[%s2 + $0x18] sm:$0xff]
    %v1012 = vld [vmem:[%s2 + $0x20] sm:$0xff]
    %v1013 = vld [vmem:[%s2 + $0x28] sm:$0xff]
    %v1014 = vld [vmem:[%s2 + $0x30] sm:$0xff]
    %v1015 = vld [vmem:[%s2 + $0x38] sm:$0xff]
    %v1016 = vld [vmem:[%s2 + $0x40] sm:$0xff]
    %v1017 = vld [vmem:[%s2 + $0x48] sm:$0xff]
    %v1018 = vld [vmem:[%s2 + $0x50] sm:$0xff]
    %v1019 = vld [vmem:[%s2 + $0x58] sm:$0xff]
    %v1020 = vld [vmem:[%s2 + $0x60] sm:$0xff]
    %v1021 = vld [vmem:[%s2 + $0x68] sm:$0xff]
    %v1022 = vld [vmem:[%s2 + $0x70] sm:$0xff]
    %v1023 = vld [vmem:[%s2 + $0x78] sm:$0xff]
    %1024 = vmatprep.subr.mxu0 0.0
    %1025 = vmatpush1.msra.mxu0 %v1023
    %1026 = vmatprep.subr.mxu0 0.0
    %1027 = vmatpush1.msra.mxu0 %v1022
    %1028 = vmatprep.subr.mxu0 0.0
    %1029 = vmatpush1.msra.mxu0 %v1021
    %1030 = vmatprep.subr.mxu0 0.0
    %1031 = vmatpush1.msra.mxu0 %v1020
    %1032 = vmatprep.subr.mxu0 0.0
    %1033 = vmatpush1.msra.mxu0 %v1019
    %1034 = vmatprep.subr.mxu0 0.0
    %1035 = vmatpush1.msra.mxu0 %v1018
    %1036 = vmatprep.subr.mxu0 0.0
    %1037 = vmatpush1.msra.mxu0 %v1017
    %1038 = vmatprep.subr.mxu0 0.0
    %1039 = vmatpush1.msra.mxu0 %v1016
    %1040 = vmatprep.subr.mxu0 0.0
    %1041 = vmatpush1.msra.mxu0 %v1015
    %1042 = vmatprep.subr.mxu0 0.0
    %1043 = vmatpush1.msra.mxu0 %v1014
    %1044 = vmatprep.subr.mxu0 0.0
    %1045 = vmatpush1.msra.mxu0 %v1013
    %1046 = vmatprep.subr.mxu0 0.0
    %1047 = vmatpush1.msra.mxu0 %v1012
    %1048 = vmatprep.subr.mxu0 0.0
    %1049 = vmatpush1.msra.mxu0 %v1011
    %1050 = vmatprep.subr.mxu0 0.0
    %1051 = vmatpush1.msra.mxu0 %v1010
    %1052 = vmatprep.subr.mxu0 0.0
    %1053 = vmatpush1.msra.mxu0 %v1009
    %1054 = vmatprep.subr.mxu0 0.0
    %1055 = vmatpush1.msra.mxu0 %v1008
    %1056 = vmatprep.subr.mxu0 0.0
    %1057 = vmatpush2.msra.mxu0 0.0
    %1058 = vmatprep.subr.mxu0 0.0
    %1059 = vmatpush2.msra.mxu0 0.0
    %1060 = vmatprep.subr.mxu0 0.0
    %1061 = vmatpush2.msra.mxu0 0.0
    %1062 = vmatprep.subr.mxu0 0.0
    %1063 = vmatpush2.msra.mxu0 0.0
    %1064 = vmatprep.subr.mxu0 0.0
    %1065 = vmatpush2.msra.mxu0 0.0
    %1066 = vmatprep.subr.mxu0 0.0
    %1067 = vmatpush2.msra.mxu0 0.0
    %1068 = vmatprep.subr.mxu0 0.0
    %1069 = vmatpush2.msra.mxu0 0.0
    %1070 = vmatprep.subr.mxu0 0.0
    %1071 = vmatpush2.msra.mxu0 0.0
    %1072 = vmatprep.subr.mxu0 0.0
    %1073 = vmatpush2.msra.mxu0 0.0
    %1074 = vmatprep.subr.mxu0 0.0
    %1075 = vmatpush2.msra.mxu0 0.0
    %1076 = vmatprep.subr.mxu0 0.0
    %1077 = vmatpush2.msra.mxu0 0.0
    %1078 = vmatprep.subr.mxu0 0.0
    %1079 = vmatpush2.msra.mxu0 0.0
    %1080 = vmatprep.subr.mxu0 0.0
    %1081 = vmatpush2.msra.mxu0 0.0
    %1082 = vmatprep.subr.mxu0 0.0
    %1083 = vmatpush2.msra.mxu0 0.0
    %1084 = vmatprep.subr.mxu0 0.0
    %1085 = vmatpush2.msra.mxu0 0.0
    %1086 = vmatprep.subr.mxu0 0.0
    %1087 = vmatpush2.msra.mxu0 0.0
    %1088 = vmatprep.mubr.f32.mxu0 0.0
    %1089 = vmatmul.mubr.f32.gmra.mxu0 %v1003
    %v1090 = vpop.f32.mrf.mxu0
    %v1091 = vadd.f32 0.0, %v1090
    %v1092 = vpop.f32.mrf.mxu0
    %1093 = vdwg.mxu0
    %v1094 = vadd.f32 %v1007, %v1091
    %v1095 = vtanh.pop %v1094
    %v1096 = vxor.u32 %v1094, 2147483648
    %v1097 = vmul.f32 %v1096, 1.442695
    %v1098 = vpow.pop %v1097
    %v1099 = vadd.f32 %v1098, 1.0
    %v1100 = vrcp.pop %v1099
    %v1101 = vmul.f32 1.0, %v1100
    %v1102 = vsel %vm83, %v1095, %v1101
    %1103 = vrot.lane.b32.xlu0 %v1102, 96
    %v1104 = vpop.permute.xlu0 %1103
    %1105 = vrot.lane.b32.xlu0 %v1102, 64
    %v1106 = vpop.permute.xlu0 %1105
    %1107 = vrot.lane.b32.xlu0 %v1102, 32
    %v1108 = vpop.permute.xlu0 %1107
    %v1109 = vmul.f32 %v1104, %v1001
    %v1110 = vmul.f32 %v1102, %v1106
    %v1111 = vadd.f32 %v1109, %v1110
    %v1112 = vtanh.pop %v1111
    %v1113 = vmul.f32 %v1108, %v1112
    %s1114 = scalar_lea.vmem [#allocation3], 56
    %1115 = vst [vmem:[%s1114] sm:$0xff] %v1113
    %v1116 = vld [vmem:[#allocation3] sm:$0xff]
    %v1117 = vld [vmem:[#allocation3 + $0x8] sm:$0xff]
    %v1118 = vld [vmem:[#allocation3 + $0x10] sm:$0xff]
    %v1119 = vld [vmem:[#allocation3 + $0x18] sm:$0xff]
    %v1120 = vld [vmem:[#allocation3 + $0x20] sm:$0xff]
    %v1121 = vld [vmem:[#allocation3 + $0x28] sm:$0xff]
    %v1122 = vld [vmem:[#allocation3 + $0x30] sm:$0xff]
    %v1123 = vld [vmem:[#allocation3 + $0x38] sm:$0xff]
    %v1124 = vld [vmem:[#allocation6] sm:$0xff]
    %v1125 = vld [vmem:[#allocation6 + $0x8] sm:$0xff]
    %v1126 = vld [vmem:[#allocation6 + $0x10] sm:$0xff]
    %v1127 = vld [vmem:[#allocation6 + $0x18] sm:$0xff]
    %v1128 = vld [vmem:[#allocation6 + $0x20] sm:$0xff]
    %v1129 = vld [vmem:[#allocation6 + $0x28] sm:$0xff]
    %v1130 = vld [vmem:[#allocation6 + $0x30] sm:$0xff]
    %v1131 = vld [vmem:[#allocation6 + $0x38] sm:$0xff]
    %v1132 = vmul.f32 %v1116, %v1124
    %v1133 = vmul.f32 %v1117, %v1125
    %v1134 = vmul.f32 %v1118, %v1126
    %v1135 = vmul.f32 %v1119, %v1127
    %v1136 = vmul.f32 %v1120, %v1128
    %v1137 = vmul.f32 %v1121, %v1129
    %v1138 = vmul.f32 %v1122, %v1130
    %v1139 = vmul.f32 %v1123, %v1131
    %v1140 = vld [vmem:[#allocation8] sm:$0xff]
    %v1141 = vld [vmem:[#allocation8 + $0x8] sm:$0xff]
    %v1142 = vld [vmem:[#allocation8 + $0x10] sm:$0xff]
    %v1143 = vld [vmem:[#allocation8 + $0x18] sm:$0xff]
    %v1144 = vld [vmem:[#allocation8 + $0x20] sm:$0xff]
    %v1145 = vld [vmem:[#allocation8 + $0x28] sm:$0xff]
    %v1146 = vld [vmem:[#allocation8 + $0x30] sm:$0xff]
    %v1147 = vld [vmem:[#allocation8 + $0x38] sm:$0xff]
    %v1148 = vadd.f32 %v1132, %v1140
    %v1149 = vadd.f32 %v1133, %v1141
    %v1150 = vadd.f32 %v1134, %v1142
    %v1151 = vadd.f32 %v1135, %v1143
    %v1152 = vadd.f32 %v1136, %v1144
    %v1153 = vadd.f32 %v1137, %v1145
    %v1154 = vadd.f32 %v1138, %v1146
    %v1155 = vadd.f32 %v1139, %v1147
    %1156 = vst [vmem:[#allocation3] sm:$0xff] %v1148
    %1157 = vst [vmem:[#allocation3 + $0x8] sm:$0xff] %v1149
    %1158 = vst [vmem:[#allocation3 + $0x10] sm:$0xff] %v1150
    %1159 = vst [vmem:[#allocation3 + $0x18] sm:$0xff] %v1151
    %1160 = vst [vmem:[#allocation3 + $0x20] sm:$0xff] %v1152
    %1161 = vst [vmem:[#allocation3 + $0x28] sm:$0xff] %v1153
    %1162 = vst [vmem:[#allocation3 + $0x30] sm:$0xff] %v1154
    %1163 = vst [vmem:[#allocation3 + $0x38] sm:$0xff] %v1155
    %v1164 = vld [vmem:[#allocation3] sm:$0xff]
    %v1165 = vld [vmem:[#allocation3 + $0x8] sm:$0xff]
    %v1166 = vld [vmem:[#allocation3 + $0x10] sm:$0xff]
    %v1167 = vld [vmem:[#allocation3 + $0x18] sm:$0xff]
    %v1168 = vld [vmem:[#allocation3 + $0x20] sm:$0xff]
    %v1169 = vld [vmem:[#allocation3 + $0x28] sm:$0xff]
    %v1170 = vld [vmem:[#allocation3 + $0x30] sm:$0xff]
    %v1171 = vld [vmem:[#allocation3 + $0x38] sm:$0xff]
    %v1172 = vld [vmem:[%s4] sm:$0xff]
    %v1173 = vld [vmem:[%s4 + $0x8] sm:$0xff]
    %v1174 = vld [vmem:[%s4 + $0x10] sm:$0xff]
    %v1175 = vld [vmem:[%s4 + $0x18] sm:$0xff]
    %v1176 = vld [vmem:[%s4 + $0x20] sm:$0xff]
    %v1177 = vld [vmem:[%s4 + $0x28] sm:$0xff]
    %v1178 = vld [vmem:[%s4 + $0x30] sm:$0xff]
    %v1179 = vld [vmem:[%s4 + $0x38] sm:$0xff]
    %v1180 = vld [vmem:[%s4 + $0x40] sm:$0xff]
    %v1181 = vld [vmem:[%s4 + $0x48] sm:$0xff]
    %v1182 = vld [vmem:[%s4 + $0x50] sm:$0xff]
    %v1183 = vld [vmem:[%s4 + $0x58] sm:$0xff]
    %v1184 = vld [vmem:[%s4 + $0x60] sm:$0xff]
    %v1185 = vld [vmem:[%s4 + $0x68] sm:$0xff]
    %v1186 = vld [vmem:[%s4 + $0x70] sm:$0xff]
    %v1187 = vld [vmem:[%s4 + $0x78] sm:$0xff]
    %v1188 = vld [vmem:[%s6] sm:$0x1]
    %v1190 = vlaneseq
    %v1191 = vshrl.u32 %v1190, 7
    %v1192 = vsub.s32 0, %v1191
    %v1193 = vrot.slane %v1188, %v1192
    %1195 = vmatprep.subr.mxu0 0.0
    %1196 = vmatpush1.msra.mxu0 %v1187
    %1197 = vmatprep.subr.mxu0 0.0
    %1198 = vmatpush1.msra.mxu0 %v1186
    %1199 = vmatprep.subr.mxu0 0.0
    %1200 = vmatpush1.msra.mxu0 %v1185
    %1201 = vmatprep.subr.mxu0 0.0
    %1202 = vmatpush1.msra.mxu0 %v1184
    %1203 = vmatprep.subr.mxu0 0.0
    %1204 = vmatpush1.msra.mxu0 %v1183
    %1205 = vmatprep.subr.mxu0 0.0
    %1206 = vmatpush1.msra.mxu0 %v1182
    %1207 = vmatprep.subr.mxu0 0.0
    %1208 = vmatpush1.msra.mxu0 %v1181
    %1209 = vmatprep.subr.mxu0 0.0
    %1210 = vmatpush1.msra.mxu0 %v1180
    %1211 = vmatprep.subr.mxu0 0.0
    %1212 = vmatpush1.msra.mxu0 %v1179
    %1213 = vmatprep.subr.mxu0 0.0
    %1214 = vmatpush1.msra.mxu0 %v1178
    %1215 = vmatprep.subr.mxu0 0.0
    %1216 = vmatpush1.msra.mxu0 %v1177
    %1217 = vmatprep.subr.mxu0 0.0
    %1218 = vmatpush1.msra.mxu0 %v1176
    %1219 = vmatprep.subr.mxu0 0.0
    %1220 = vmatpush1.msra.mxu0 %v1175
    %1221 = vmatprep.subr.mxu0 0.0
    %1222 = vmatpush1.msra.mxu0 %v1174
    %1223 = vmatprep.subr.mxu0 0.0
    %1224 = vmatpush1.msra.mxu0 %v1173
    %1225 = vmatprep.subr.mxu0 0.0
    %1226 = vmatpush1.msra.mxu0 %v1172
    %1227 = vmatprep.subr.mxu0 0.0
    %1228 = vmatpush2.msra.mxu0 0.0
    %1229 = vmatprep.subr.mxu0 0.0
    %1230 = vmatpush2.msra.mxu0 0.0
    %1231 = vmatprep.subr.mxu0 0.0
    %1232 = vmatpush2.msra.mxu0 0.0
    %1233 = vmatprep.subr.mxu0 0.0
    %1234 = vmatpush2.msra.mxu0 0.0
    %1235 = vmatprep.subr.mxu0 0.0
    %1236 = vmatpush2.msra.mxu0 0.0
    %1237 = vmatprep.subr.mxu0 0.0
    %1238 = vmatpush2.msra.mxu0 0.0
    %1239 = vmatprep.subr.mxu0 0.0
    %1240 = vmatpush2.msra.mxu0 0.0
    %1241 = vmatprep.subr.mxu0 0.0
    %1242 = vmatpush2.msra.mxu0 0.0
    %1243 = vmatprep.subr.mxu0 0.0
    %1244 = vmatpush2.msra.mxu0 0.0
    %1245 = vmatprep.subr.mxu0 0.0
    %1246 = vmatpush2.msra.mxu0 0.0
    %1247 = vmatprep.subr.mxu0 0.0
    %1248 = vmatpush2.msra.mxu0 0.0
    %1249 = vmatprep.subr.mxu0 0.0
    %1250 = vmatpush2.msra.mxu0 0.0
    %1251 = vmatprep.subr.mxu0 0.0
    %1252 = vmatpush2.msra.mxu0 0.0
    %1253 = vmatprep.subr.mxu0 0.0
    %1254 = vmatpush2.msra.mxu0 0.0
    %1255 = vmatprep.subr.mxu0 0.0
    %1256 = vmatpush2.msra.mxu0 0.0
    %1257 = vmatprep.subr.mxu0 0.0
    %1258 = vmatpush2.msra.mxu0 0.0
    %1259 = vmatprep.mubr.f32.mxu0 0.0
    %1260 = vmatmul.mubr.f32.gmra.mxu0 %v1164
    %v1261 = vpop.f32.mrf.mxu0
    %v1262 = vadd.f32 %v1193, %v1261
    %v1263 = vpop.f32.mrf.mxu0
    %1264 = vmatprep.mubr.f32.mxu0 0.0
    %1265 = vmatmul.mubr.f32.gmra.mxu0 %v1165
    %v1266 = vpop.f32.mrf.mxu0
    %v1267 = vadd.f32 %v1193, %v1266
    %v1268 = vpop.f32.mrf.mxu0
    %1269 = vmatprep.mubr.f32.mxu0 0.0
    %1270 = vmatmul.mubr.f32.gmra.mxu0 %v1166
    %v1271 = vpop.f32.mrf.mxu0
    %v1272 = vadd.f32 %v1193, %v1271
    %v1273 = vpop.f32.mrf.mxu0
    %1274 = vmatprep.mubr.f32.mxu0 0.0
    %1275 = vmatmul.mubr.f32.gmra.mxu0 %v1167
    %v1276 = vpop.f32.mrf.mxu0
    %v1277 = vadd.f32 %v1193, %v1276
    %v1278 = vpop.f32.mrf.mxu0
    %1279 = vmatprep.mubr.f32.mxu0 0.0
    %1280 = vmatmul.mubr.f32.gmra.mxu0 %v1168
    %v1281 = vpop.f32.mrf.mxu0
    %v1282 = vadd.f32 %v1193, %v1281
    %v1283 = vpop.f32.mrf.mxu0
    %1284 = vmatprep.mubr.f32.mxu0 0.0
    %1285 = vmatmul.mubr.f32.gmra.mxu0 %v1169
    %v1286 = vpop.f32.mrf.mxu0
    %v1287 = vadd.f32 %v1193, %v1286
    %v1288 = vpop.f32.mrf.mxu0
    %1289 = vmatprep.mubr.f32.mxu0 0.0
    %1290 = vmatmul.mubr.f32.gmra.mxu0 %v1170
    %v1291 = vpop.f32.mrf.mxu0
    %v1292 = vadd.f32 %v1193, %v1291
    %v1293 = vpop.f32.mrf.mxu0
    %1294 = vmatprep.mubr.f32.mxu0 0.0
    %1295 = vmatmul.mubr.f32.gmra.mxu0 %v1171
    %v1296 = vpop.f32.mrf.mxu0
    %v1297 = vadd.f32 %v1193, %v1296
    %v1298 = vpop.f32.mrf.mxu0
    %1299 = vdwg.mxu0
    %1300 = vst [vmem:[#allocation2] sm:$0xff] %v1262
    %1301 = vst [vmem:[#allocation2 + $0x8] sm:$0xff] %v1267
    %1302 = vst [vmem:[#allocation2 + $0x10] sm:$0xff] %v1272
    %1303 = vst [vmem:[#allocation2 + $0x18] sm:$0xff] %v1277
    %1304 = vst [vmem:[#allocation2 + $0x20] sm:$0xff] %v1282
    %1305 = vst [vmem:[#allocation2 + $0x28] sm:$0xff] %v1287
    %1306 = vst [vmem:[#allocation2 + $0x30] sm:$0xff] %v1292
    %1307 = vst [vmem:[#allocation2 + $0x38] sm:$0xff] %v1297
    %v1308 = vld [vmem:[#allocation2] sm:$0xff]
    %v1309 = vld [vmem:[#allocation4] sm:$0xff]
    %v1310 = vld [vmem:[#allocation4 + $0x8] sm:$0xff]
    %v1311 = vld [vmem:[#allocation4 + $0x10] sm:$0xff]
    %v1312 = vld [vmem:[#allocation4 + $0x18] sm:$0xff]
    %v1313 = vld [vmem:[#allocation4 + $0x20] sm:$0xff]
    %v1314 = vld [vmem:[#allocation4 + $0x28] sm:$0xff]
    %v1315 = vld [vmem:[#allocation4 + $0x30] sm:$0xff]
    %v1316 = vld [vmem:[#allocation4 + $0x38] sm:$0xff]
    %v1317 = vld [vmem:[#allocation4 + $0x40] sm:$0xff]
    %v1318 = vld [vmem:[#allocation4 + $0x48] sm:$0xff]
    %v1319 = vld [vmem:[#allocation4 + $0x50] sm:$0xff]
    %v1320 = vld [vmem:[#allocation4 + $0x58] sm:$0xff]
    %v1321 = vld [vmem:[#allocation4 + $0x60] sm:$0xff]
    %v1322 = vld [vmem:[#allocation4 + $0x68] sm:$0xff]
    %v1323 = vld [vmem:[#allocation4 + $0x70] sm:$0xff]
    %v1324 = vld [vmem:[#allocation4 + $0x78] sm:$0xff]
    %1325 = vmatprep.subr.mxu0 0.0
    %1326 = vmatpush1.msra.mxu0 %v1324
    %1327 = vmatprep.subr.mxu0 0.0
    %1328 = vmatpush1.msra.mxu0 %v1323
    %1329 = vmatprep.subr.mxu0 0.0
    %1330 = vmatpush1.msra.mxu0 %v1322
    %1331 = vmatprep.subr.mxu0 0.0
    %1332 = vmatpush1.msra.mxu0 %v1321
    %1333 = vmatprep.subr.mxu0 0.0
    %1334 = vmatpush1.msra.mxu0 %v1320
    %1335 = vmatprep.subr.mxu0 0.0
    %1336 = vmatpush1.msra.mxu0 %v1319
    %1337 = vmatprep.subr.mxu0 0.0
    %1338 = vmatpush1.msra.mxu0 %v1318
    %1339 = vmatprep.subr.mxu0 0.0
    %1340 = vmatpush1.msra.mxu0 %v1317
    %1341 = vmatprep.subr.mxu0 0.0
    %1342 = vmatpush1.msra.mxu0 %v1316
    %1343 = vmatprep.subr.mxu0 0.0
    %1344 = vmatpush1.msra.mxu0 %v1315
    %1345 = vmatprep.subr.mxu0 0.0
    %1346 = vmatpush1.msra.mxu0 %v1314
    %1347 = vmatprep.subr.mxu0 0.0
    %1348 = vmatpush1.msra.mxu0 %v1313
    %1349 = vmatprep.subr.mxu0 0.0
    %1350 = vmatpush1.msra.mxu0 %v1312
    %1351 = vmatprep.subr.mxu0 0.0
    %1352 = vmatpush1.msra.mxu0 %v1311
    %1353 = vmatprep.subr.mxu0 0.0
    %1354 = vmatpush1.msra.mxu0 %v1310
    %1355 = vmatprep.subr.mxu0 0.0
    %1356 = vmatpush1.msra.mxu0 %v1309
    %1357 = vmatprep.subr.mxu0 0.0
    %1358 = vmatpush2.msra.mxu0 0.0
    %1359 = vmatprep.subr.mxu0 0.0
    %1360 = vmatpush2.msra.mxu0 0.0
    %1361 = vmatprep.subr.mxu0 0.0
    %1362 = vmatpush2.msra.mxu0 0.0
    %1363 = vmatprep.subr.mxu0 0.0
    %1364 = vmatpush2.msra.mxu0 0.0
    %1365 = vmatprep.subr.mxu0 0.0
    %1366 = vmatpush2.msra.mxu0 0.0
    %1367 = vmatprep.subr.mxu0 0.0
    %1368 = vmatpush2.msra.mxu0 0.0
    %1369 = vmatprep.subr.mxu0 0.0
    %1370 = vmatpush2.msra.mxu0 0.0
    %1371 = vmatprep.subr.mxu0 0.0
    %1372 = vmatpush2.msra.mxu0 0.0
    %1373 = vmatprep.subr.mxu0 0.0
    %1374 = vmatpush2.msra.mxu0 0.0
    %1375 = vmatprep.subr.mxu0 0.0
    %1376 = vmatpush2.msra.mxu0 0.0
    %1377 = vmatprep.subr.mxu0 0.0
    %1378 = vmatpush2.msra.mxu0 0.0
    %1379 = vmatprep.subr.mxu0 0.0
    %1380 = vmatpush2.msra.mxu0 0.0
    %1381 = vmatprep.subr.mxu0 0.0
    %1382 = vmatpush2.msra.mxu0 0.0
    %1383 = vmatprep.subr.mxu0 0.0
    %1384 = vmatpush2.msra.mxu0 0.0
    %1385 = vmatprep.subr.mxu0 0.0
    %1386 = vmatpush2.msra.mxu0 0.0
    %1387 = vmatprep.subr.mxu0 0.0
    %1388 = vmatpush2.msra.mxu0 0.0
    %1389 = vmatprep.mubr.f32.mxu0 0.0
    %1390 = vmatmul.mubr.f32.gmra.mxu0 %v1113
    %v1391 = vpop.f32.mrf.mxu0
    %v1392 = vadd.f32 0.0, %v1391
    %v1393 = vpop.f32.mrf.mxu0
    %1394 = vdwg.mxu0
    %v1395 = vadd.f32 %v1308, %v1392
    %v1396 = vtanh.pop %v1395
    %v1397 = vxor.u32 %v1395, 2147483648
    %v1398 = vmul.f32 %v1397, 1.442695
    %v1399 = vpow.pop %v1398
    %v1400 = vadd.f32 %v1399, 1.0
    %v1401 = vrcp.pop %v1400
    %v1402 = vmul.f32 1.0, %v1401
    %v1403 = vsel %vm83, %v1396, %v1402
    %1404 = vrot.lane.b32.xlu0 %v1403, 96
    %v1405 = vpop.permute.xlu0 %1404
    %1406 = vrot.lane.b32.xlu0 %v1403, 64
    %v1407 = vpop.permute.xlu0 %1406
    %1408 = vrot.lane.b32.xlu0 %v1403, 32
    %v1409 = vpop.permute.xlu0 %1408
    %v1410 = vmul.f32 %v1405, %v1111
    %v1411 = vmul.f32 %v1403, %v1407
    %v1412 = vadd.f32 %v1410, %v1411
    %v1413 = vtanh.pop %v1412
    %v1414 = vmul.f32 %v1409, %v1413
    %1415 = vst [vmem:[#allocation3] sm:$0xff] %v1414
    %v1416 = vld [vmem:[%s346] sm:$0xff]
    %v1417 = vld [vmem:[#allocation4] sm:$0xff]
    %v1418 = vld [vmem:[#allocation4 + $0x8] sm:$0xff]
    %v1419 = vld [vmem:[#allocation4 + $0x10] sm:$0xff]
    %v1420 = vld [vmem:[#allocation4 + $0x18] sm:$0xff]
    %v1421 = vld [vmem:[#allocation4 + $0x20] sm:$0xff]
    %v1422 = vld [vmem:[#allocation4 + $0x28] sm:$0xff]
    %v1423 = vld [vmem:[#allocation4 + $0x30] sm:$0xff]
    %v1424 = vld [vmem:[#allocation4 + $0x38] sm:$0xff]
    %v1425 = vld [vmem:[#allocation4 + $0x40] sm:$0xff]
    %v1426 = vld [vmem:[#allocation4 + $0x48] sm:$0xff]
    %v1427 = vld [vmem:[#allocation4 + $0x50] sm:$0xff]
    %v1428 = vld [vmem:[#allocation4 + $0x58] sm:$0xff]
    %v1429 = vld [vmem:[#allocation4 + $0x60] sm:$0xff]
    %v1430 = vld [vmem:[#allocation4 + $0x68] sm:$0xff]
    %v1431 = vld [vmem:[#allocation4 + $0x70] sm:$0xff]
    %v1432 = vld [vmem:[#allocation4 + $0x78] sm:$0xff]
    %1433 = vmatprep.subr.mxu0 0.0
    %1434 = vmatpush1.msra.mxu0 %v1432
    %1435 = vmatprep.subr.mxu0 0.0
    %1436 = vmatpush1.msra.mxu0 %v1431
    %1437 = vmatprep.subr.mxu0 0.0
    %1438 = vmatpush1.msra.mxu0 %v1430
    %1439 = vmatprep.subr.mxu0 0.0
    %1440 = vmatpush1.msra.mxu0 %v1429
    %1441 = vmatprep.subr.mxu0 0.0
    %1442 = vmatpush1.msra.mxu0 %v1428
    %1443 = vmatprep.subr.mxu0 0.0
    %1444 = vmatpush1.msra.mxu0 %v1427
    %1445 = vmatprep.subr.mxu0 0.0
    %1446 = vmatpush1.msra.mxu0 %v1426
    %1447 = vmatprep.subr.mxu0 0.0
    %1448 = vmatpush1.msra.mxu0 %v1425
    %1449 = vmatprep.subr.mxu0 0.0
    %1450 = vmatpush1.msra.mxu0 %v1424
    %1451 = vmatprep.subr.mxu0 0.0
    %1452 = vmatpush1.msra.mxu0 %v1423
    %1453 = vmatprep.subr.mxu0 0.0
    %1454 = vmatpush1.msra.mxu0 %v1422
    %1455 = vmatprep.subr.mxu0 0.0
    %1456 = vmatpush1.msra.mxu0 %v1421
    %1457 = vmatprep.subr.mxu0 0.0
    %1458 = vmatpush1.msra.mxu0 %v1420
    %1459 = vmatprep.subr.mxu0 0.0
    %1460 = vmatpush1.msra.mxu0 %v1419
    %1461 = vmatprep.subr.mxu0 0.0
    %1462 = vmatpush1.msra.mxu0 %v1418
    %1463 = vmatprep.subr.mxu0 0.0
    %1464 = vmatpush1.msra.mxu0 %v1417
    %1465 = vmatprep.subr.mxu0 0.0
    %1466 = vmatpush2.msra.mxu0 0.0
    %1467 = vmatprep.subr.mxu0 0.0
    %1468 = vmatpush2.msra.mxu0 0.0
    %1469 = vmatprep.subr.mxu0 0.0
    %1470 = vmatpush2.msra.mxu0 0.0
    %1471 = vmatprep.subr.mxu0 0.0
    %1472 = vmatpush2.msra.mxu0 0.0
    %1473 = vmatprep.subr.mxu0 0.0
    %1474 = vmatpush2.msra.mxu0 0.0
    %1475 = vmatprep.subr.mxu0 0.0
    %1476 = vmatpush2.msra.mxu0 0.0
    %1477 = vmatprep.subr.mxu0 0.0
    %1478 = vmatpush2.msra.mxu0 0.0
    %1479 = vmatprep.subr.mxu0 0.0
    %1480 = vmatpush2.msra.mxu0 0.0
    %1481 = vmatprep.subr.mxu0 0.0
    %1482 = vmatpush2.msra.mxu0 0.0
    %1483 = vmatprep.subr.mxu0 0.0
    %1484 = vmatpush2.msra.mxu0 0.0
    %1485 = vmatprep.subr.mxu0 0.0
    %1486 = vmatpush2.msra.mxu0 0.0
    %1487 = vmatprep.subr.mxu0 0.0
    %1488 = vmatpush2.msra.mxu0 0.0
    %1489 = vmatprep.subr.mxu0 0.0
    %1490 = vmatpush2.msra.mxu0 0.0
    %1491 = vmatprep.subr.mxu0 0.0
    %1492 = vmatpush2.msra.mxu0 0.0
    %1493 = vmatprep.subr.mxu0 0.0
    %1494 = vmatpush2.msra.mxu0 0.0
    %1495 = vmatprep.subr.mxu0 0.0
    %1496 = vmatpush2.msra.mxu0 0.0
    %1497 = vmatprep.mubr.f32.mxu0 0.0
    %1498 = vmatmul.mubr.f32.gmra.mxu0 %v1414
    %v1499 = vpop.f32.mrf.mxu0
    %v1500 = vadd.f32 0.0, %v1499
    %v1501 = vpop.f32.mrf.mxu0
    %1502 = vdwg.mxu0
    %v1503 = vadd.f32 %v1416, %v1500
    %v1504 = vtanh.pop %v1503
    %v1505 = vxor.u32 %v1503, 2147483648
    %v1506 = vmul.f32 %v1505, 1.442695
    %v1507 = vpow.pop %v1506
    %v1508 = vadd.f32 %v1507, 1.0
    %v1509 = vrcp.pop %v1508
    %v1510 = vmul.f32 1.0, %v1509
    %v1511 = vsel %vm83, %v1504, %v1510
    %1512 = vrot.lane.b32.xlu0 %v1511, 96
    %v1513 = vpop.permute.xlu0 %1512
    %1514 = vrot.lane.b32.xlu0 %v1511, 64
    %v1515 = vpop.permute.xlu0 %1514
    %1516 = vrot.lane.b32.xlu0 %v1511, 32
    %v1517 = vpop.permute.xlu0 %1516
    %v1518 = vmul.f32 %v1513, %v1412
    %v1519 = vmul.f32 %v1511, %v1515
    %v1520 = vadd.f32 %v1518, %v1519
    %v1521 = vtanh.pop %v1520
    %v1522 = vmul.f32 %v1517, %v1521
    %1523 = vst [vmem:[%s454] sm:$0xff] %v1522
    %v1524 = vld [vmem:[%s456] sm:$0xff]
    %v1525 = vld [vmem:[#allocation4] sm:$0xff]
    %v1526 = vld [vmem:[#allocation4 + $0x8] sm:$0xff]
    %v1527 = vld [vmem:[#allocation4 + $0x10] sm:$0xff]
    %v1528 = vld [vmem:[#allocation4 + $0x18] sm:$0xff]
    %v1529 = vld [vmem:[#allocation4 + $0x20] sm:$0xff]
    %v1530 = vld [vmem:[#allocation4 + $0x28] sm:$0xff]
    %v1531 = vld [vmem:[#allocation4 + $0x30] sm:$0xff]
    %v1532 = vld [vmem:[#allocation4 + $0x38] sm:$0xff]
    %v1533 = vld [vmem:[#allocation4 + $0x40] sm:$0xff]
    %v1534 = vld [vmem:[#allocation4 + $0x48] sm:$0xff]
    %v1535 = vld [vmem:[#allocation4 + $0x50] sm:$0xff]
    %v1536 = vld [vmem:[#allocation4 + $0x58] sm:$0xff]
    %v1537 = vld [vmem:[#allocation4 + $0x60] sm:$0xff]
    %v1538 = vld [vmem:[#allocation4 + $0x68] sm:$0xff]
    %v1539 = vld [vmem:[#allocation4 + $0x70] sm:$0xff]
    %v1540 = vld [vmem:[#allocation4 + $0x78] sm:$0xff]
    %1541 = vmatprep.subr.mxu0 0.0
    %1542 = vmatpush1.msra.mxu0 %v1540
    %1543 = vmatprep.subr.mxu0 0.0
    %1544 = vmatpush1.msra.mxu0 %v1539
    %1545 = vmatprep.subr.mxu0 0.0
    %1546 = vmatpush1.msra.mxu0 %v1538
    %1547 = vmatprep.subr.mxu0 0.0
    %1548 = vmatpush1.msra.mxu0 %v1537
    %1549 = vmatprep.subr.mxu0 0.0
    %1550 = vmatpush1.msra.mxu0 %v1536
    %1551 = vmatprep.subr.mxu0 0.0
    %1552 = vmatpush1.msra.mxu0 %v1535
    %1553 = vmatprep.subr.mxu0 0.0
    %1554 = vmatpush1.msra.mxu0 %v1534
    %1555 = vmatprep.subr.mxu0 0.0
    %1556 = vmatpush1.msra.mxu0 %v1533
    %1557 = vmatprep.subr.mxu0 0.0
    %1558 = vmatpush1.msra.mxu0 %v1532
    %1559 = vmatprep.subr.mxu0 0.0
    %1560 = vmatpush1.msra.mxu0 %v1531
    %1561 = vmatprep.subr.mxu0 0.0
    %1562 = vmatpush1.msra.mxu0 %v1530
    %1563 = vmatprep.subr.mxu0 0.0
    %1564 = vmatpush1.msra.mxu0 %v1529
    %1565 = vmatprep.subr.mxu0 0.0
    %1566 = vmatpush1.msra.mxu0 %v1528
    %1567 = vmatprep.subr.mxu0 0.0
    %1568 = vmatpush1.msra.mxu0 %v1527
    %1569 = vmatprep.subr.mxu0 0.0
    %1570 = vmatpush1.msra.mxu0 %v1526
    %1571 = vmatprep.subr.mxu0 0.0
    %1572 = vmatpush1.msra.mxu0 %v1525
    %1573 = vmatprep.subr.mxu0 0.0
    %1574 = vmatpush2.msra.mxu0 0.0
    %1575 = vmatprep.subr.mxu0 0.0
    %1576 = vmatpush2.msra.mxu0 0.0
    %1577 = vmatprep.subr.mxu0 0.0
    %1578 = vmatpush2.msra.mxu0 0.0
    %1579 = vmatprep.subr.mxu0 0.0
    %1580 = vmatpush2.msra.mxu0 0.0
    %1581 = vmatprep.subr.mxu0 0.0
    %1582 = vmatpush2.msra.mxu0 0.0
    %1583 = vmatprep.subr.mxu0 0.0
    %1584 = vmatpush2.msra.mxu0 0.0
    %1585 = vmatprep.subr.mxu0 0.0
    %1586 = vmatpush2.msra.mxu0 0.0
    %1587 = vmatprep.subr.mxu0 0.0
    %1588 = vmatpush2.msra.mxu0 0.0
    %1589 = vmatprep.subr.mxu0 0.0
    %1590 = vmatpush2.msra.mxu0 0.0
    %1591 = vmatprep.subr.mxu0 0.0
    %1592 = vmatpush2.msra.mxu0 0.0
    %1593 = vmatprep.subr.mxu0 0.0
    %1594 = vmatpush2.msra.mxu0 0.0
    %1595 = vmatprep.subr.mxu0 0.0
    %1596 = vmatpush2.msra.mxu0 0.0
    %1597 = vmatprep.subr.mxu0 0.0
    %1598 = vmatpush2.msra.mxu0 0.0
    %1599 = vmatprep.subr.mxu0 0.0
    %1600 = vmatpush2.msra.mxu0 0.0
    %1601 = vmatprep.subr.mxu0 0.0
    %1602 = vmatpush2.msra.mxu0 0.0
    %1603 = vmatprep.subr.mxu0 0.0
    %1604 = vmatpush2.msra.mxu0 0.0
    %1605 = vmatprep.mubr.f32.mxu0 0.0
    %1606 = vmatmul.mubr.f32.gmra.mxu0 %v1522
    %v1607 = vpop.f32.mrf.mxu0
    %v1608 = vadd.f32 0.0, %v1607
    %v1609 = vpop.f32.mrf.mxu0
    %1610 = vdwg.mxu0
    %v1611 = vadd.f32 %v1524, %v1608
    %v1612 = vtanh.pop %v1611
    %v1613 = vxor.u32 %v1611, 2147483648
    %v1614 = vmul.f32 %v1613, 1.442695
    %v1615 = vpow.pop %v1614
    %v1616 = vadd.f32 %v1615, 1.0
    %v1617 = vrcp.pop %v1616
    %v1618 = vmul.f32 1.0, %v1617
    %v1619 = vsel %vm83, %v1612, %v1618
    %1620 = vrot.lane.b32.xlu0 %v1619, 96
    %v1621 = vpop.permute.xlu0 %1620
    %1622 = vrot.lane.b32.xlu0 %v1619, 64
    %v1623 = vpop.permute.xlu0 %1622
    %1624 = vrot.lane.b32.xlu0 %v1619, 32
    %v1625 = vpop.permute.xlu0 %1624
    %v1626 = vmul.f32 %v1621, %v1520
    %v1627 = vmul.f32 %v1619, %v1623
    %v1628 = vadd.f32 %v1626, %v1627
    %v1629 = vtanh.pop %v1628
    %v1630 = vmul.f32 %v1625, %v1629
    %1631 = vst [vmem:[%s564] sm:$0xff] %v1630
    %v1632 = vld [vmem:[%s566] sm:$0xff]
    %v1633 = vld [vmem:[#allocation4] sm:$0xff]
    %v1634 = vld [vmem:[#allocation4 + $0x8] sm:$0xff]
    %v1635 = vld [vmem:[#allocation4 + $0x10] sm:$0xff]
    %v1636 = vld [vmem:[#allocation4 + $0x18] sm:$0xff]
    %v1637 = vld [vmem:[#allocation4 + $0x20] sm:$0xff]
    %v1638 = vld [vmem:[#allocation4 + $0x28] sm:$0xff]
    %v1639 = vld [vmem:[#allocation4 + $0x30] sm:$0xff]
    %v1640 = vld [vmem:[#allocation4 + $0x38] sm:$0xff]
    %v1641 = vld [vmem:[#allocation4 + $0x40] sm:$0xff]
    %v1642 = vld [vmem:[#allocation4 + $0x48] sm:$0xff]
    %v1643 = vld [vmem:[#allocation4 + $0x50] sm:$0xff]
    %v1644 = vld [vmem:[#allocation4 + $0x58] sm:$0xff]
    %v1645 = vld [vmem:[#allocation4 + $0x60] sm:$0xff]
    %v1646 = vld [vmem:[#allocation4 + $0x68] sm:$0xff]
    %v1647 = vld [vmem:[#allocation4 + $0x70] sm:$0xff]
    %v1648 = vld [vmem:[#allocation4 + $0x78] sm:$0xff]
    %1649 = vmatprep.subr.mxu0 0.0
    %1650 = vmatpush1.msra.mxu0 %v1648
    %1651 = vmatprep.subr.mxu0 0.0
    %1652 = vmatpush1.msra.mxu0 %v1647
    %1653 = vmatprep.subr.mxu0 0.0
    %1654 = vmatpush1.msra.mxu0 %v1646
    %1655 = vmatprep.subr.mxu0 0.0
    %1656 = vmatpush1.msra.mxu0 %v1645
    %1657 = vmatprep.subr.mxu0 0.0
    %1658 = vmatpush1.msra.mxu0 %v1644
    %1659 = vmatprep.subr.mxu0 0.0
    %1660 = vmatpush1.msra.mxu0 %v1643
    %1661 = vmatprep.subr.mxu0 0.0
    %1662 = vmatpush1.msra.mxu0 %v1642
    %1663 = vmatprep.subr.mxu0 0.0
    %1664 = vmatpush1.msra.mxu0 %v1641
    %1665 = vmatprep.subr.mxu0 0.0
    %1666 = vmatpush1.msra.mxu0 %v1640
    %1667 = vmatprep.subr.mxu0 0.0
    %1668 = vmatpush1.msra.mxu0 %v1639
    %1669 = vmatprep.subr.mxu0 0.0
    %1670 = vmatpush1.msra.mxu0 %v1638
    %1671 = vmatprep.subr.mxu0 0.0
    %1672 = vmatpush1.msra.mxu0 %v1637
    %1673 = vmatprep.subr.mxu0 0.0
    %1674 = vmatpush1.msra.mxu0 %v1636
    %1675 = vmatprep.subr.mxu0 0.0
    %1676 = vmatpush1.msra.mxu0 %v1635
    %1677 = vmatprep.subr.mxu0 0.0
    %1678 = vmatpush1.msra.mxu0 %v1634
    %1679 = vmatprep.subr.mxu0 0.0
    %1680 = vmatpush1.msra.mxu0 %v1633
    %1681 = vmatprep.subr.mxu0 0.0
    %1682 = vmatpush2.msra.mxu0 0.0
    %1683 = vmatprep.subr.mxu0 0.0
    %1684 = vmatpush2.msra.mxu0 0.0
    %1685 = vmatprep.subr.mxu0 0.0
    %1686 = vmatpush2.msra.mxu0 0.0
    %1687 = vmatprep.subr.mxu0 0.0
    %1688 = vmatpush2.msra.mxu0 0.0
    %1689 = vmatprep.subr.mxu0 0.0
    %1690 = vmatpush2.msra.mxu0 0.0
    %1691 = vmatprep.subr.mxu0 0.0
    %1692 = vmatpush2.msra.mxu0 0.0
    %1693 = vmatprep.subr.mxu0 0.0
    %1694 = vmatpush2.msra.mxu0 0.0
    %1695 = vmatprep.subr.mxu0 0.0
    %1696 = vmatpush2.msra.mxu0 0.0
    %1697 = vmatprep.subr.mxu0 0.0
    %1698 = vmatpush2.msra.mxu0 0.0
    %1699 = vmatprep.subr.mxu0 0.0
    %1700 = vmatpush2.msra.mxu0 0.0
    %1701 = vmatprep.subr.mxu0 0.0
    %1702 = vmatpush2.msra.mxu0 0.0
    %1703 = vmatprep.subr.mxu0 0.0
    %1704 = vmatpush2.msra.mxu0 0.0
    %1705 = vmatprep.subr.mxu0 0.0
    %1706 = vmatpush2.msra.mxu0 0.0
    %1707 = vmatprep.subr.mxu0 0.0
    %1708 = vmatpush2.msra.mxu0 0.0
    %1709 = vmatprep.subr.mxu0 0.0
    %1710 = vmatpush2.msra.mxu0 0.0
    %1711 = vmatprep.subr.mxu0 0.0
    %1712 = vmatpush2.msra.mxu0 0.0
    %1713 = vmatprep.mubr.f32.mxu0 0.0
    %1714 = vmatmul.mubr.f32.gmra.mxu0 %v1630
    %v1715 = vpop.f32.mrf.mxu0
    %v1716 = vadd.f32 0.0, %v1715
    %v1717 = vpop.f32.mrf.mxu0
    %1718 = vdwg.mxu0
    %v1719 = vadd.f32 %v1632, %v1716
    %v1720 = vtanh.pop %v1719
    %v1721 = vxor.u32 %v1719, 2147483648
    %v1722 = vmul.f32 %v1721, 1.442695
    %v1723 = vpow.pop %v1722
    %v1724 = vadd.f32 %v1723, 1.0
    %v1725 = vrcp.pop %v1724
    %v1726 = vmul.f32 1.0, %v1725
    %v1727 = vsel %vm83, %v1720, %v1726
    %1728 = vrot.lane.b32.xlu0 %v1727, 96
    %v1729 = vpop.permute.xlu0 %1728
    %1730 = vrot.lane.b32.xlu0 %v1727, 64
    %v1731 = vpop.permute.xlu0 %1730
    %1732 = vrot.lane.b32.xlu0 %v1727, 32
    %v1733 = vpop.permute.xlu0 %1732
    %v1734 = vmul.f32 %v1729, %v1628
    %v1735 = vmul.f32 %v1727, %v1731
    %v1736 = vadd.f32 %v1734, %v1735
    %v1737 = vtanh.pop %v1736
    %v1738 = vmul.f32 %v1733, %v1737
    %1739 = vst [vmem:[%s674] sm:$0xff] %v1738
    %v1740 = vld [vmem:[%s676] sm:$0xff]
    %v1741 = vld [vmem:[#allocation4] sm:$0xff]
    %v1742 = vld [vmem:[#allocation4 + $0x8] sm:$0xff]
    %v1743 = vld [vmem:[#allocation4 + $0x10] sm:$0xff]
    %v1744 = vld [vmem:[#allocation4 + $0x18] sm:$0xff]
    %v1745 = vld [vmem:[#allocation4 + $0x20] sm:$0xff]
    %v1746 = vld [vmem:[#allocation4 + $0x28] sm:$0xff]
    %v1747 = vld [vmem:[#allocation4 + $0x30] sm:$0xff]
    %v1748 = vld [vmem:[#allocation4 + $0x38] sm:$0xff]
    %v1749 = vld [vmem:[#allocation4 + $0x40] sm:$0xff]
    %v1750 = vld [vmem:[#allocation4 + $0x48] sm:$0xff]
    %v1751 = vld [vmem:[#allocation4 + $0x50] sm:$0xff]
    %v1752 = vld [vmem:[#allocation4 + $0x58] sm:$0xff]
    %v1753 = vld [vmem:[#allocation4 + $0x60] sm:$0xff]
    %v1754 = vld [vmem:[#allocation4 + $0x68] sm:$0xff]
    %v1755 = vld [vmem:[#allocation4 + $0x70] sm:$0xff]
    %v1756 = vld [vmem:[#allocation4 + $0x78] sm:$0xff]
    %1757 = vmatprep.subr.mxu0 0.0
    %1758 = vmatpush1.msra.mxu0 %v1756
    %1759 = vmatprep.subr.mxu0 0.0
    %1760 = vmatpush1.msra.mxu0 %v1755
    %1761 = vmatprep.subr.mxu0 0.0
    %1762 = vmatpush1.msra.mxu0 %v1754
    %1763 = vmatprep.subr.mxu0 0.0
    %1764 = vmatpush1.msra.mxu0 %v1753
    %1765 = vmatprep.subr.mxu0 0.0
    %1766 = vmatpush1.msra.mxu0 %v1752
    %1767 = vmatprep.subr.mxu0 0.0
    %1768 = vmatpush1.msra.mxu0 %v1751
    %1769 = vmatprep.subr.mxu0 0.0
    %1770 = vmatpush1.msra.mxu0 %v1750
    %1771 = vmatprep.subr.mxu0 0.0
    %1772 = vmatpush1.msra.mxu0 %v1749
    %1773 = vmatprep.subr.mxu0 0.0
    %1774 = vmatpush1.msra.mxu0 %v1748
    %1775 = vmatprep.subr.mxu0 0.0
    %1776 = vmatpush1.msra.mxu0 %v1747
    %1777 = vmatprep.subr.mxu0 0.0
    %1778 = vmatpush1.msra.mxu0 %v1746
    %1779 = vmatprep.subr.mxu0 0.0
    %1780 = vmatpush1.msra.mxu0 %v1745
    %1781 = vmatprep.subr.mxu0 0.0
    %1782 = vmatpush1.msra.mxu0 %v1744
    %1783 = vmatprep.subr.mxu0 0.0
    %1784 = vmatpush1.msra.mxu0 %v1743
    %1785 = vmatprep.subr.mxu0 0.0
    %1786 = vmatpush1.msra.mxu0 %v1742
    %1787 = vmatprep.subr.mxu0 0.0
    %1788 = vmatpush1.msra.mxu0 %v1741
    %1789 = vmatprep.subr.mxu0 0.0
    %1790 = vmatpush2.msra.mxu0 0.0
    %1791 = vmatprep.subr.mxu0 0.0
    %1792 = vmatpush2.msra.mxu0 0.0
    %1793 = vmatprep.subr.mxu0 0.0
    %1794 = vmatpush2.msra.mxu0 0.0
    %1795 = vmatprep.subr.mxu0 0.0
    %1796 = vmatpush2.msra.mxu0 0.0
    %1797 = vmatprep.subr.mxu0 0.0
    %1798 = vmatpush2.msra.mxu0 0.0
    %1799 = vmatprep.subr.mxu0 0.0
    %1800 = vmatpush2.msra.mxu0 0.0
    %1801 = vmatprep.subr.mxu0 0.0
    %1802 = vmatpush2.msra.mxu0 0.0
    %1803 = vmatprep.subr.mxu0 0.0
    %1804 = vmatpush2.msra.mxu0 0.0
    %1805 = vmatprep.subr.mxu0 0.0
    %1806 = vmatpush2.msra.mxu0 0.0
    %1807 = vmatprep.subr.mxu0 0.0
    %1808 = vmatpush2.msra.mxu0 0.0
    %1809 = vmatprep.subr.mxu0 0.0
    %1810 = vmatpush2.msra.mxu0 0.0
    %1811 = vmatprep.subr.mxu0 0.0
    %1812 = vmatpush2.msra.mxu0 0.0
    %1813 = vmatprep.subr.mxu0 0.0
    %1814 = vmatpush2.msra.mxu0 0.0
    %1815 = vmatprep.subr.mxu0 0.0
    %1816 = vmatpush2.msra.mxu0 0.0
    %1817 = vmatprep.subr.mxu0 0.0
    %1818 = vmatpush2.msra.mxu0 0.0
    %1819 = vmatprep.subr.mxu0 0.0
    %1820 = vmatpush2.msra.mxu0 0.0
    %1821 = vmatprep.mubr.f32.mxu0 0.0
    %1822 = vmatmul.mubr.f32.gmra.mxu0 %v1738
    %v1823 = vpop.f32.mrf.mxu0
    %v1824 = vadd.f32 0.0, %v1823
    %v1825 = vpop.f32.mrf.mxu0
    %1826 = vdwg.mxu0
    %v1827 = vadd.f32 %v1740, %v1824
    %v1828 = vtanh.pop %v1827
    %v1829 = vxor.u32 %v1827, 2147483648
    %v1830 = vmul.f32 %v1829, 1.442695
    %v1831 = vpow.pop %v1830
    %v1832 = vadd.f32 %v1831, 1.0
    %v1833 = vrcp.pop %v1832
    %v1834 = vmul.f32 1.0, %v1833
    %v1835 = vsel %vm83, %v1828, %v1834
    %1836 = vrot.lane.b32.xlu0 %v1835, 96
    %v1837 = vpop.permute.xlu0 %1836
    %1838 = vrot.lane.b32.xlu0 %v1835, 64
    %v1839 = vpop.permute.xlu0 %1838
    %1840 = vrot.lane.b32.xlu0 %v1835, 32
    %v1841 = vpop.permute.xlu0 %1840
    %v1842 = vmul.f32 %v1837, %v1736
    %v1843 = vmul.f32 %v1835, %v1839
    %v1844 = vadd.f32 %v1842, %v1843
    %v1845 = vtanh.pop %v1844
    %v1846 = vmul.f32 %v1841, %v1845
    %1847 = vst [vmem:[%s784] sm:$0xff] %v1846
    %v1848 = vld [vmem:[%s786] sm:$0xff]
    %v1849 = vld [vmem:[#allocation4] sm:$0xff]
    %v1850 = vld [vmem:[#allocation4 + $0x8] sm:$0xff]
    %v1851 = vld [vmem:[#allocation4 + $0x10] sm:$0xff]
    %v1852 = vld [vmem:[#allocation4 + $0x18] sm:$0xff]
    %v1853 = vld [vmem:[#allocation4 + $0x20] sm:$0xff]
    %v1854 = vld [vmem:[#allocation4 + $0x28] sm:$0xff]
    %v1855 = vld [vmem:[#allocation4 + $0x30] sm:$0xff]
    %v1856 = vld [vmem:[#allocation4 + $0x38] sm:$0xff]
    %v1857 = vld [vmem:[#allocation4 + $0x40] sm:$0xff]
    %v1858 = vld [vmem:[#allocation4 + $0x48] sm:$0xff]
    %v1859 = vld [vmem:[#allocation4 + $0x50] sm:$0xff]
    %v1860 = vld [vmem:[#allocation4 + $0x58] sm:$0xff]
    %v1861 = vld [vmem:[#allocation4 + $0x60] sm:$0xff]
    %v1862 = vld [vmem:[#allocation4 + $0x68] sm:$0xff]
    %v1863 = vld [vmem:[#allocation4 + $0x70] sm:$0xff]
    %v1864 = vld [vmem:[#allocation4 + $0x78] sm:$0xff]
    %1865 = vmatprep.subr.mxu0 0.0
    %1866 = vmatpush1.msra.mxu0 %v1864
    %1867 = vmatprep.subr.mxu0 0.0
    %1868 = vmatpush1.msra.mxu0 %v1863
    %1869 = vmatprep.subr.mxu0 0.0
    %1870 = vmatpush1.msra.mxu0 %v1862
    %1871 = vmatprep.subr.mxu0 0.0
    %1872 = vmatpush1.msra.mxu0 %v1861
    %1873 = vmatprep.subr.mxu0 0.0
    %1874 = vmatpush1.msra.mxu0 %v1860
    %1875 = vmatprep.subr.mxu0 0.0
    %1876 = vmatpush1.msra.mxu0 %v1859
    %1877 = vmatprep.subr.mxu0 0.0
    %1878 = vmatpush1.msra.mxu0 %v1858
    %1879 = vmatprep.subr.mxu0 0.0
    %1880 = vmatpush1.msra.mxu0 %v1857
    %1881 = vmatprep.subr.mxu0 0.0
    %1882 = vmatpush1.msra.mxu0 %v1856
    %1883 = vmatprep.subr.mxu0 0.0
    %1884 = vmatpush1.msra.mxu0 %v1855
    %1885 = vmatprep.subr.mxu0 0.0
    %1886 = vmatpush1.msra.mxu0 %v1854
    %1887 = vmatprep.subr.mxu0 0.0
    %1888 = vmatpush1.msra.mxu0 %v1853
    %1889 = vmatprep.subr.mxu0 0.0
    %1890 = vmatpush1.msra.mxu0 %v1852
    %1891 = vmatprep.subr.mxu0 0.0
    %1892 = vmatpush1.msra.mxu0 %v1851
    %1893 = vmatprep.subr.mxu0 0.0
    %1894 = vmatpush1.msra.mxu0 %v1850
    %1895 = vmatprep.subr.mxu0 0.0
    %1896 = vmatpush1.msra.mxu0 %v1849
    %1897 = vmatprep.subr.mxu0 0.0
    %1898 = vmatpush2.msra.mxu0 0.0
    %1899 = vmatprep.subr.mxu0 0.0
    %1900 = vmatpush2.msra.mxu0 0.0
    %1901 = vmatprep.subr.mxu0 0.0
    %1902 = vmatpush2.msra.mxu0 0.0
    %1903 = vmatprep.subr.mxu0 0.0
    %1904 = vmatpush2.msra.mxu0 0.0
    %1905 = vmatprep.subr.mxu0 0.0
    %1906 = vmatpush2.msra.mxu0 0.0
    %1907 = vmatprep.subr.mxu0 0.0
    %1908 = vmatpush2.msra.mxu0 0.0
    %1909 = vmatprep.subr.mxu0 0.0
    %1910 = vmatpush2.msra.mxu0 0.0
    %1911 = vmatprep.subr.mxu0 0.0
    %1912 = vmatpush2.msra.mxu0 0.0
    %1913 = vmatprep.subr.mxu0 0.0
    %1914 = vmatpush2.msra.mxu0 0.0
    %1915 = vmatprep.subr.mxu0 0.0
    %1916 = vmatpush2.msra.mxu0 0.0
    %1917 = vmatprep.subr.mxu0 0.0
    %1918 = vmatpush2.msra.mxu0 0.0
    %1919 = vmatprep.subr.mxu0 0.0
    %1920 = vmatpush2.msra.mxu0 0.0
    %1921 = vmatprep.subr.mxu0 0.0
    %1922 = vmatpush2.msra.mxu0 0.0
    %1923 = vmatprep.subr.mxu0 0.0
    %1924 = vmatpush2.msra.mxu0 0.0
    %1925 = vmatprep.subr.mxu0 0.0
    %1926 = vmatpush2.msra.mxu0 0.0
    %1927 = vmatprep.subr.mxu0 0.0
    %1928 = vmatpush2.msra.mxu0 0.0
    %1929 = vmatprep.mubr.f32.mxu0 0.0
    %1930 = vmatmul.mubr.f32.gmra.mxu0 %v1846
    %v1931 = vpop.f32.mrf.mxu0
    %v1932 = vadd.f32 0.0, %v1931
    %v1933 = vpop.f32.mrf.mxu0
    %1934 = vdwg.mxu0
    %v1935 = vadd.f32 %v1848, %v1932
    %v1936 = vtanh.pop %v1935
    %v1937 = vxor.u32 %v1935, 2147483648
    %v1938 = vmul.f32 %v1937, 1.442695
    %v1939 = vpow.pop %v1938
    %v1940 = vadd.f32 %v1939, 1.0
    %v1941 = vrcp.pop %v1940
    %v1942 = vmul.f32 1.0, %v1941
    %v1943 = vsel %vm83, %v1936, %v1942
    %1944 = vrot.lane.b32.xlu0 %v1943, 96
    %v1945 = vpop.permute.xlu0 %1944
    %1946 = vrot.lane.b32.xlu0 %v1943, 64
    %v1947 = vpop.permute.xlu0 %1946
    %1948 = vrot.lane.b32.xlu0 %v1943, 32
    %v1949 = vpop.permute.xlu0 %1948
    %v1950 = vmul.f32 %v1945, %v1844
    %v1951 = vmul.f32 %v1943, %v1947
    %v1952 = vadd.f32 %v1950, %v1951
    %v1953 = vtanh.pop %v1952
    %v1954 = vmul.f32 %v1949, %v1953
    %1955 = vst [vmem:[%s894] sm:$0xff] %v1954
    %v1956 = vld [vmem:[%s896] sm:$0xff]
    %v1957 = vld [vmem:[#allocation4] sm:$0xff]
    %v1958 = vld [vmem:[#allocation4 + $0x8] sm:$0xff]
    %v1959 = vld [vmem:[#allocation4 + $0x10] sm:$0xff]
    %v1960 = vld [vmem:[#allocation4 + $0x18] sm:$0xff]
    %v1961 = vld [vmem:[#allocation4 + $0x20] sm:$0xff]
    %v1962 = vld [vmem:[#allocation4 + $0x28] sm:$0xff]
    %v1963 = vld [vmem:[#allocation4 + $0x30] sm:$0xff]
    %v1964 = vld [vmem:[#allocation4 + $0x38] sm:$0xff]
    %v1965 = vld [vmem:[#allocation4 + $0x40] sm:$0xff]
    %v1966 = vld [vmem:[#allocation4 + $0x48] sm:$0xff]
    %v1967 = vld [vmem:[#allocation4 + $0x50] sm:$0xff]
    %v1968 = vld [vmem:[#allocation4 + $0x58] sm:$0xff]
    %v1969 = vld [vmem:[#allocation4 + $0x60] sm:$0xff]
    %v1970 = vld [vmem:[#allocation4 + $0x68] sm:$0xff]
    %v1971 = vld [vmem:[#allocation4 + $0x70] sm:$0xff]
    %v1972 = vld [vmem:[#allocation4 + $0x78] sm:$0xff]
    %1973 = vmatprep.subr.mxu0 0.0
    %1974 = vmatpush1.msra.mxu0 %v1972
    %1975 = vmatprep.subr.mxu0 0.0
    %1976 = vmatpush1.msra.mxu0 %v1971
    %1977 = vmatprep.subr.mxu0 0.0
    %1978 = vmatpush1.msra.mxu0 %v1970
    %1979 = vmatprep.subr.mxu0 0.0
    %1980 = vmatpush1.msra.mxu0 %v1969
    %1981 = vmatprep.subr.mxu0 0.0
    %1982 = vmatpush1.msra.mxu0 %v1968
    %1983 = vmatprep.subr.mxu0 0.0
    %1984 = vmatpush1.msra.mxu0 %v1967
    %1985 = vmatprep.subr.mxu0 0.0
    %1986 = vmatpush1.msra.mxu0 %v1966
    %1987 = vmatprep.subr.mxu0 0.0
    %1988 = vmatpush1.msra.mxu0 %v1965
    %1989 = vmatprep.subr.mxu0 0.0
    %1990 = vmatpush1.msra.mxu0 %v1964
    %1991 = vmatprep.subr.mxu0 0.0
    %1992 = vmatpush1.msra.mxu0 %v1963
    %1993 = vmatprep.subr.mxu0 0.0
    %1994 = vmatpush1.msra.mxu0 %v1962
    %1995 = vmatprep.subr.mxu0 0.0
    %1996 = vmatpush1.msra.mxu0 %v1961
    %1997 = vmatprep.subr.mxu0 0.0
    %1998 = vmatpush1.msra.mxu0 %v1960
    %1999 = vmatprep.subr.mxu0 0.0
    %2000 = vmatpush1.msra.mxu0 %v1959
    %2001 = vmatprep.subr.mxu0 0.0
    %2002 = vmatpush1.msra.mxu0 %v1958
    %2003 = vmatprep.subr.mxu0 0.0
    %2004 = vmatpush1.msra.mxu0 %v1957
    %2005 = vmatprep.subr.mxu0 0.0
    %2006 = vmatpush2.msra.mxu0 0.0
    %2007 = vmatprep.subr.mxu0 0.0
    %2008 = vmatpush2.msra.mxu0 0.0
    %2009 = vmatprep.subr.mxu0 0.0
    %2010 = vmatpush2.msra.mxu0 0.0
    %2011 = vmatprep.subr.mxu0 0.0
    %2012 = vmatpush2.msra.mxu0 0.0
    %2013 = vmatprep.subr.mxu0 0.0
    %2014 = vmatpush2.msra.mxu0 0.0
    %2015 = vmatprep.subr.mxu0 0.0
    %2016 = vmatpush2.msra.mxu0 0.0
    %2017 = vmatprep.subr.mxu0 0.0
    %2018 = vmatpush2.msra.mxu0 0.0
    %2019 = vmatprep.subr.mxu0 0.0
    %2020 = vmatpush2.msra.mxu0 0.0
    %2021 = vmatprep.subr.mxu0 0.0
    %2022 = vmatpush2.msra.mxu0 0.0
    %2023 = vmatprep.subr.mxu0 0.0
    %2024 = vmatpush2.msra.mxu0 0.0
    %2025 = vmatprep.subr.mxu0 0.0
    %2026 = vmatpush2.msra.mxu0 0.0
    %2027 = vmatprep.subr.mxu0 0.0
    %2028 = vmatpush2.msra.mxu0 0.0
    %2029 = vmatprep.subr.mxu0 0.0
    %2030 = vmatpush2.msra.mxu0 0.0
    %2031 = vmatprep.subr.mxu0 0.0
    %2032 = vmatpush2.msra.mxu0 0.0
    %2033 = vmatprep.subr.mxu0 0.0
    %2034 = vmatpush2.msra.mxu0 0.0
    %2035 = vmatprep.subr.mxu0 0.0
    %2036 = vmatpush2.msra.mxu0 0.0
    %2037 = vmatprep.mubr.f32.mxu0 0.0
    %2038 = vmatmul.mubr.f32.gmra.mxu0 %v1954
    %v2039 = vpop.f32.mrf.mxu0
    %v2040 = vadd.f32 0.0, %v2039
    %v2041 = vpop.f32.mrf.mxu0
    %2042 = vdwg.mxu0
    %v2043 = vadd.f32 %v1956, %v2040
    %v2044 = vtanh.pop %v2043
    %v2045 = vxor.u32 %v2043, 2147483648
    %v2046 = vmul.f32 %v2045, 1.442695
    %v2047 = vpow.pop %v2046
    %v2048 = vadd.f32 %v2047, 1.0
    %v2049 = vrcp.pop %v2048
    %v2050 = vmul.f32 1.0, %v2049
    %v2051 = vsel %vm83, %v2044, %v2050
    %2052 = vrot.lane.b32.xlu0 %v2051, 96
    %v2053 = vpop.permute.xlu0 %2052
    %2054 = vrot.lane.b32.xlu0 %v2051, 64
    %v2055 = vpop.permute.xlu0 %2054
    %2056 = vrot.lane.b32.xlu0 %v2051, 32
    %v2057 = vpop.permute.xlu0 %2056
    %v2058 = vmul.f32 %v2053, %v1952
    %v2059 = vmul.f32 %v2051, %v2055
    %v2060 = vadd.f32 %v2058, %v2059
    %v2061 = vtanh.pop %v2060
    %v2062 = vmul.f32 %v2057, %v2061
    %2063 = vst [vmem:[%s1004] sm:$0xff] %v2062
    %v2064 = vld [vmem:[%s1006] sm:$0xff]
    %v2065 = vld [vmem:[#allocation4] sm:$0xff]
    %v2066 = vld [vmem:[#allocation4 + $0x8] sm:$0xff]
    %v2067 = vld [vmem:[#allocation4 + $0x10] sm:$0xff]
    %v2068 = vld [vmem:[#allocation4 + $0x18] sm:$0xff]
    %v2069 = vld [vmem:[#allocation4 + $0x20] sm:$0xff]
    %v2070 = vld [vmem:[#allocation4 + $0x28] sm:$0xff]
    %v2071 = vld [vmem:[#allocation4 + $0x30] sm:$0xff]
    %v2072 = vld [vmem:[#allocation4 + $0x38] sm:$0xff]
    %v2073 = vld [vmem:[#allocation4 + $0x40] sm:$0xff]
    %v2074 = vld [vmem:[#allocation4 + $0x48] sm:$0xff]
    %v2075 = vld [vmem:[#allocation4 + $0x50] sm:$0xff]
    %v2076 = vld [vmem:[#allocation4 + $0x58] sm:$0xff]
    %v2077 = vld [vmem:[#allocation4 + $0x60] sm:$0xff]
    %v2078 = vld [vmem:[#allocation4 + $0x68] sm:$0xff]
    %v2079 = vld [vmem:[#allocation4 + $0x70] sm:$0xff]
    %v2080 = vld [vmem:[#allocation4 + $0x78] sm:$0xff]
    %2081 = vmatprep.subr.mxu0 0.0
    %2082 = vmatpush1.msra.mxu0 %v2080
    %2083 = vmatprep.subr.mxu0 0.0
    %2084 = vmatpush1.msra.mxu0 %v2079
    %2085 = vmatprep.subr.mxu0 0.0
    %2086 = vmatpush1.msra.mxu0 %v2078
    %2087 = vmatprep.subr.mxu0 0.0
    %2088 = vmatpush1.msra.mxu0 %v2077
    %2089 = vmatprep.subr.mxu0 0.0
    %2090 = vmatpush1.msra.mxu0 %v2076
    %2091 = vmatprep.subr.mxu0 0.0
    %2092 = vmatpush1.msra.mxu0 %v2075
    %2093 = vmatprep.subr.mxu0 0.0
    %2094 = vmatpush1.msra.mxu0 %v2074
    %2095 = vmatprep.subr.mxu0 0.0
    %2096 = vmatpush1.msra.mxu0 %v2073
    %2097 = vmatprep.subr.mxu0 0.0
    %2098 = vmatpush1.msra.mxu0 %v2072
    %2099 = vmatprep.subr.mxu0 0.0
    %2100 = vmatpush1.msra.mxu0 %v2071
    %2101 = vmatprep.subr.mxu0 0.0
    %2102 = vmatpush1.msra.mxu0 %v2070
    %2103 = vmatprep.subr.mxu0 0.0
    %2104 = vmatpush1.msra.mxu0 %v2069
    %2105 = vmatprep.subr.mxu0 0.0
    %2106 = vmatpush1.msra.mxu0 %v2068
    %2107 = vmatprep.subr.mxu0 0.0
    %2108 = vmatpush1.msra.mxu0 %v2067
    %2109 = vmatprep.subr.mxu0 0.0
    %2110 = vmatpush1.msra.mxu0 %v2066
    %2111 = vmatprep.subr.mxu0 0.0
    %2112 = vmatpush1.msra.mxu0 %v2065
    %2113 = vmatprep.subr.mxu0 0.0
    %2114 = vmatpush2.msra.mxu0 0.0
    %2115 = vmatprep.subr.mxu0 0.0
    %2116 = vmatpush2.msra.mxu0 0.0
    %2117 = vmatprep.subr.mxu0 0.0
    %2118 = vmatpush2.msra.mxu0 0.0
    %2119 = vmatprep.subr.mxu0 0.0
    %2120 = vmatpush2.msra.mxu0 0.0
    %2121 = vmatprep.subr.mxu0 0.0
    %2122 = vmatpush2.msra.mxu0 0.0
    %2123 = vmatprep.subr.mxu0 0.0
    %2124 = vmatpush2.msra.mxu0 0.0
    %2125 = vmatprep.subr.mxu0 0.0
    %2126 = vmatpush2.msra.mxu0 0.0
    %2127 = vmatprep.subr.mxu0 0.0
    %2128 = vmatpush2.msra.mxu0 0.0
    %2129 = vmatprep.subr.mxu0 0.0
    %2130 = vmatpush2.msra.mxu0 0.0
    %2131 = vmatprep.subr.mxu0 0.0
    %2132 = vmatpush2.msra.mxu0 0.0
    %2133 = vmatprep.subr.mxu0 0.0
    %2134 = vmatpush2.msra.mxu0 0.0
    %2135 = vmatprep.subr.mxu0 0.0
    %2136 = vmatpush2.msra.mxu0 0.0
    %2137 = vmatprep.subr.mxu0 0.0
    %2138 = vmatpush2.msra.mxu0 0.0
    %2139 = vmatprep.subr.mxu0 0.0
    %2140 = vmatpush2.msra.mxu0 0.0
    %2141 = vmatprep.subr.mxu0 0.0
    %2142 = vmatpush2.msra.mxu0 0.0
    %2143 = vmatprep.subr.mxu0 0.0
    %2144 = vmatpush2.msra.mxu0 0.0
    %2145 = vmatprep.mubr.f32.mxu0 0.0
    %2146 = vmatmul.mubr.f32.gmra.mxu0 %v2062
    %v2147 = vpop.f32.mrf.mxu0
    %v2148 = vadd.f32 0.0, %v2147
    %v2149 = vpop.f32.mrf.mxu0
    %2150 = vdwg.mxu0
    %v2151 = vadd.f32 %v2064, %v2148
    %v2152 = vtanh.pop %v2151
    %v2153 = vxor.u32 %v2151, 2147483648
    %v2154 = vmul.f32 %v2153, 1.442695
    %v2155 = vpow.pop %v2154
    %v2156 = vadd.f32 %v2155, 1.0
    %v2157 = vrcp.pop %v2156
    %v2158 = vmul.f32 1.0, %v2157
    %v2159 = vsel %vm83, %v2152, %v2158
    %2160 = vrot.lane.b32.xlu0 %v2159, 96
    %v2161 = vpop.permute.xlu0 %2160
    %2162 = vrot.lane.b32.xlu0 %v2159, 64
    %v2163 = vpop.permute.xlu0 %2162
    %2164 = vrot.lane.b32.xlu0 %v2159, 32
    %v2165 = vpop.permute.xlu0 %2164
    %v2166 = vmul.f32 %v2161, %v2060
    %v2167 = vmul.f32 %v2159, %v2163
    %v2168 = vadd.f32 %v2166, %v2167
    %v2169 = vtanh.pop %v2168
    %v2170 = vmul.f32 %v2165, %v2169
    %2171 = vst [vmem:[%s1114] sm:$0xff] %v2170
    %v2172 = vld [vmem:[#allocation3] sm:$0xff]
    %v2173 = vld [vmem:[#allocation3 + $0x8] sm:$0xff]
    %v2174 = vld [vmem:[#allocation3 + $0x10] sm:$0xff]
    %v2175 = vld [vmem:[#allocation3 + $0x18] sm:$0xff]
    %v2176 = vld [vmem:[#allocation3 + $0x20] sm:$0xff]
    %v2177 = vld [vmem:[#allocation3 + $0x28] sm:$0xff]
    %v2178 = vld [vmem:[#allocation3 + $0x30] sm:$0xff]
    %v2179 = vld [vmem:[#allocation3 + $0x38] sm:$0xff]
    %v2180 = vld [vmem:[#allocation6] sm:$0xff]
    %v2181 = vld [vmem:[#allocation6 + $0x8] sm:$0xff]
    %v2182 = vld [vmem:[#allocation6 + $0x10] sm:$0xff]
    %v2183 = vld [vmem:[#allocation6 + $0x18] sm:$0xff]
    %v2184 = vld [vmem:[#allocation6 + $0x20] sm:$0xff]
    %v2185 = vld [vmem:[#allocation6 + $0x28] sm:$0xff]
    %v2186 = vld [vmem:[#allocation6 + $0x30] sm:$0xff]
    %v2187 = vld [vmem:[#allocation6 + $0x38] sm:$0xff]
    %v2188 = vmul.f32 %v2172, %v2180
    %v2189 = vmul.f32 %v2173, %v2181
    %v2190 = vmul.f32 %v2174, %v2182
    %v2191 = vmul.f32 %v2175, %v2183
    %v2192 = vmul.f32 %v2176, %v2184
    %v2193 = vmul.f32 %v2177, %v2185
    %v2194 = vmul.f32 %v2178, %v2186
    %v2195 = vmul.f32 %v2179, %v2187
    %v2196 = vld [vmem:[#allocation8] sm:$0xff]
    %v2197 = vld [vmem:[#allocation8 + $0x8] sm:$0xff]
    %v2198 = vld [vmem:[#allocation8 + $0x10] sm:$0xff]
    %v2199 = vld [vmem:[#allocation8 + $0x18] sm:$0xff]
    %v2200 = vld [vmem:[#allocation8 + $0x20] sm:$0xff]
    %v2201 = vld [vmem:[#allocation8 + $0x28] sm:$0xff]
    %v2202 = vld [vmem:[#allocation8 + $0x30] sm:$0xff]
    %v2203 = vld [vmem:[#allocation8 + $0x38] sm:$0xff]
    %v2204 = vadd.f32 %v2188, %v2196
    %v2205 = vadd.f32 %v2189, %v2197
    %v2206 = vadd.f32 %v2190, %v2198
    %v2207 = vadd.f32 %v2191, %v2199
    %v2208 = vadd.f32 %v2192, %v2200
    %v2209 = vadd.f32 %v2193, %v2201
    %v2210 = vadd.f32 %v2194, %v2202
    %v2211 = vadd.f32 %v2195, %v2203
    %2212 = vst [vmem:[#allocation3] sm:$0xff] %v2204
    %2213 = vst [vmem:[#allocation3 + $0x8] sm:$0xff] %v2205
    %2214 = vst [vmem:[#allocation3 + $0x10] sm:$0xff] %v2206
    %2215 = vst [vmem:[#allocation3 + $0x18] sm:$0xff] %v2207
    %2216 = vst [vmem:[#allocation3 + $0x20] sm:$0xff] %v2208
    %2217 = vst [vmem:[#allocation3 + $0x28] sm:$0xff] %v2209
    %2218 = vst [vmem:[#allocation3 + $0x30] sm:$0xff] %v2210
    %2219 = vst [vmem:[#allocation3 + $0x38] sm:$0xff] %v2211
    %v2220 = vld [vmem:[#allocation3 + $0x38] sm:$0xff]
    %v2221 = vld [vmem:[%s9] sm:$0xff]
    %v2222 = vld [vmem:[%s9 + $0x8] sm:$0xff]
    %v2223 = vld [vmem:[%s9 + $0x10] sm:$0xff]
    %v2224 = vld [vmem:[%s9 + $0x18] sm:$0xff]
    %v2225 = vld [vmem:[%s9 + $0x20] sm:$0xff]
    %v2226 = vld [vmem:[%s9 + $0x28] sm:$0xff]
    %v2227 = vld [vmem:[%s9 + $0x30] sm:$0xff]
    %v2228 = vld [vmem:[%s9 + $0x38] sm:$0xff]
    %v2229 = vld [vmem:[%s9 + $0x40] sm:$0xff]
    %v2230 = vld [vmem:[%s9 + $0x48] sm:$0xff]
    %v2231 = vld [vmem:[%s9 + $0x50] sm:$0xff]
    %v2232 = vld [vmem:[%s9 + $0x58] sm:$0xff]
    %v2233 = vld [vmem:[%s9 + $0x60] sm:$0xff]
    %v2234 = vld [vmem:[%s9 + $0x68] sm:$0xff]
    %v2235 = vld [vmem:[%s9 + $0x70] sm:$0xff]
    %v2236 = vld [vmem:[%s9 + $0x78] sm:$0xff]
    %v2237 = vld [vmem:[%s10] sm:$0x1]
    %v2239 = vlaneseq
    %v2240 = vshrl.u32 %v2239, 7
    %v2241 = vsub.s32 0, %v2240
    %v2242 = vrot.slane %v2237, %v2241
    %2244 = vmatprep.subr.mxu0 0.0
    %2245 = vmatpush1.msra.mxu0 %v2236
    %2246 = vmatprep.subr.mxu0 0.0
    %2247 = vmatpush1.msra.mxu0 %v2235
    %2248 = vmatprep.subr.mxu0 0.0
    %2249 = vmatpush1.msra.mxu0 %v2234
    %2250 = vmatprep.subr.mxu0 0.0
    %2251 = vmatpush1.msra.mxu0 %v2233
    %2252 = vmatprep.subr.mxu0 0.0
    %2253 = vmatpush1.msra.mxu0 %v2232
    %2254 = vmatprep.subr.mxu0 0.0
    %2255 = vmatpush1.msra.mxu0 %v2231
    %2256 = vmatprep.subr.mxu0 0.0
    %2257 = vmatpush1.msra.mxu0 %v2230
    %2258 = vmatprep.subr.mxu0 0.0
    %2259 = vmatpush1.msra.mxu0 %v2229
    %2260 = vmatprep.subr.mxu0 0.0
    %2261 = vmatpush1.msra.mxu0 %v2228
    %2262 = vmatprep.subr.mxu0 0.0
    %2263 = vmatpush1.msra.mxu0 %v2227
    %2264 = vmatprep.subr.mxu0 0.0
    %2265 = vmatpush1.msra.mxu0 %v2226
    %2266 = vmatprep.subr.mxu0 0.0
    %2267 = vmatpush1.msra.mxu0 %v2225
    %2268 = vmatprep.subr.mxu0 0.0
    %2269 = vmatpush1.msra.mxu0 %v2224
    %2270 = vmatprep.subr.mxu0 0.0
    %2271 = vmatpush1.msra.mxu0 %v2223
    %2272 = vmatprep.subr.mxu0 0.0
    %2273 = vmatpush1.msra.mxu0 %v2222
    %2274 = vmatprep.subr.mxu0 0.0
    %2275 = vmatpush1.msra.mxu0 %v2221
    %2276 = vmatprep.subr.mxu0 0.0
    %2277 = vmatpush2.msra.mxu0 0.0
    %2278 = vmatprep.subr.mxu0 0.0
    %2279 = vmatpush2.msra.mxu0 0.0
    %2280 = vmatprep.subr.mxu0 0.0
    %2281 = vmatpush2.msra.mxu0 0.0
    %2282 = vmatprep.subr.mxu0 0.0
    %2283 = vmatpush2.msra.mxu0 0.0
    %2284 = vmatprep.subr.mxu0 0.0
    %2285 = vmatpush2.msra.mxu0 0.0
    %2286 = vmatprep.subr.mxu0 0.0
    %2287 = vmatpush2.msra.mxu0 0.0
    %2288 = vmatprep.subr.mxu0 0.0
    %2289 = vmatpush2.msra.mxu0 0.0
    %2290 = vmatprep.subr.mxu0 0.0
    %2291 = vmatpush2.msra.mxu0 0.0
    %2292 = vmatprep.subr.mxu0 0.0
    %2293 = vmatpush2.msra.mxu0 0.0
    %2294 = vmatprep.subr.mxu0 0.0
    %2295 = vmatpush2.msra.mxu0 0.0
    %2296 = vmatprep.subr.mxu0 0.0
    %2297 = vmatpush2.msra.mxu0 0.0
    %2298 = vmatprep.subr.mxu0 0.0
    %2299 = vmatpush2.msra.mxu0 0.0
    %2300 = vmatprep.subr.mxu0 0.0
    %2301 = vmatpush2.msra.mxu0 0.0
    %2302 = vmatprep.subr.mxu0 0.0
    %2303 = vmatpush2.msra.mxu0 0.0
    %2304 = vmatprep.subr.mxu0 0.0
    %2305 = vmatpush2.msra.mxu0 0.0
    %2306 = vmatprep.subr.mxu0 0.0
    %2307 = vmatpush2.msra.mxu0 0.0
    %2308 = vmatprep.mubr.f32.mxu0 0.0
    %2309 = vmatmul.mubr.f32.gmra.mxu0 %v2220
    %v2310 = vpop.f32.mrf.mxu0
    %v2311 = vadd.f32 %v2242, %v2310
    %v2312 = vpop.f32.mrf.mxu0
    %2313 = vdwg.mxu0
    %vm2314 = vcmask 15360
    %2315 = vst.msk [vmem:[%s11] sm:$0xff] %vm2314, %v2311
    // Predicated region
    $region58: #{dalstm_forward.1} parent=1 // pred_check
      _
    $region59: #{dalstm_forward.1} parent=1 // pred_check_branch
      %2317 = sbr.rel (0) target = $region61
    $region60: #{dalstm_forward.1} parent=1 // pred_region
      _
    $region61: #{dalstm_forward.1} parent=1 // pred_fallthru
      _
    // Predicated region
    $region62: #{dalstm_forward.1} parent=1 // pred_check
      _
    $region63: #{dalstm_forward.1} parent=1 // pred_check_branch
      %2319 = sbr.rel (0) target = $region65
    $region64: #{dalstm_forward.1} parent=1 // pred_region
      _
    $region65: #{dalstm_forward.1} parent=1 // pred_fallthru
      _
    %2320 = vsyncpa [#allocation5], 1
    %2321 = vsyncpa [#allocation7], 1

</llo_original>
